<compile_context>
chip_gen: v6e
topology: v6e:2x2x1
jax: 0.10.0
libtpu: 0.0.40
codegen_flags: <defaults>
</compile_context>

<pallas_src>
import jax
import jax.numpy as jnp
from jax.experimental import pallas as pl
from jax.experimental.pallas import tpu as pltpu


def lstm_decoder_fused_kernel(h0_ref, c0_ref, enc_ref, encp_ref, xg_ref,
                              w1d_ref, w2_ref, w_cat_ref, b_ref,
                              fc1_w_ref, fc1_b_ref,
                              out_ref, h_out_ref, c_out_ref,
                              h_all_scr):
    S = xg_ref.shape[0]
    B, T, H = enc_ref.shape

    # Step-invariant operands: loaded once, stay live for every decode step.
    enc = enc_ref[...]                                   # (B, T, H)
    encp = encp_ref[...]                                 # (B, T, A)  enc @ W1_enc
    w2 = w2_ref[...]                                     # (1, 1, A)
    w1d = w1d_ref[...]                                   # (H, A)
    w_cat = w_cat_ref[...]                               # (2H, 4H)  [[fc2_w@W_ih],[W_hh]]
    b = b_ref[...]                                       # (1, 4H)   folded gate bias

    def step(s, carry):
        h, cell = carry                                  # (B, H) each

        # ---- attention (queried with the CELL state: state[-1] in PyTorch) --
        q = jnp.dot(cell, w1d, preferred_element_type=jnp.float32)    # (B, A)
        t = jnp.tanh(encp + q[:, None, :])                            # (B, T, A)
        e = jnp.sum(t * w2, axis=2)                                   # (B, T)
        e_max = jnp.max(e, axis=1, keepdims=True)
        e_exp = jnp.exp(e - e_max)
        denom = jnp.sum(e_exp, axis=1, keepdims=True)
        # exact reciprocal keeps 1e-4 parity; approx=True would move it to EUP
        alpha = e_exp * pl.reciprocal(denom)                          # (B, T)
        ctx = jnp.sum(alpha[:, :, None] * enc, axis=1)                # (B, H)

        # ---- fused LSTM gates (one K=2H MXU contraction), PyTorch order -----
        cat = jnp.concatenate([ctx, h], axis=1)                       # (B, 2H)
        gates = (jnp.dot(cat, w_cat, preferred_element_type=jnp.float32)
                 + xg_ref[s] + b)                                     # (B, 4H)
        i_g = jax.nn.sigmoid(gates[:, 0 * H:1 * H])
        f_g = jax.nn.sigmoid(gates[:, 1 * H:2 * H])
        g_g = jnp.tanh(gates[:, 2 * H:3 * H])
        o_g = jax.nn.sigmoid(gates[:, 3 * H:4 * H])
        c_new = f_g * cell + i_g * g_g
        h_new = o_g * jnp.tanh(c_new)

        h_all_scr[s] = h_new          # stash for the batched fc1 head
        return (h_new, c_new)

    h_fin, c_fin = jax.lax.fori_loop(
        0, S, step, (h0_ref[...], c0_ref[...]), unroll=True)

    # ---- fc1 head, off the serial chain: one (S*B, H) @ (H, O) matmul -------
    h_all = h_all_scr[...].reshape(S * B, H)
    logits = (jnp.dot(h_all, fc1_w_ref[...], preferred_element_type=jnp.float32)
              + fc1_b_ref[...])
    out_ref[...] = logits.reshape(out_ref.shape)

    # Final state written exactly once.
    h_out_ref[...] = h_fin
    c_out_ref[...] = c_fin


def lstm_decoder_forward(tokens, state, enc_states, params):
    """Run S teacher-forced decode steps fused in one pallas_call.

    tokens: (S, B) int32 decoder input token ids (S=1 == original forward).
    state:  (h, c), each (1, B, H) float32.
    enc_states: (B, T, H) float32 encoder outputs.
    Returns (logits (S, B, O), (h_final (1,B,H), c_final (1,B,H))).
    """
    h0, c0 = state
    S, B = tokens.shape
    _, T, H = enc_states.shape
    A = params["attn_w2"].shape[0]
    O = params["fc1_w"].shape[1]
    hi = jax.lax.Precision.HIGHEST

    # ---- decode-step-invariant precomputation (hoisted out of the kernel) ---
    w1_enc = params["attn_w1"][:H, :]
    w1_dec = params["attn_w1"][H:, :]
    enc_proj = jnp.einsum("bth,ha->bta", enc_states, w1_enc, precision=hi)  # (B,T,A)
    attn_w2 = params["attn_w2"].reshape(1, 1, A)
    # Embedding gather (padding_idx=0 row is zero) folded with W_ih; the E=13
    # dimension never reaches the kernel.
    # TODO(synk): for true autoregressive decoding (token fed back from argmax)
    # this gather+matmul must move in-kernel (SMEM token ids + dynamic row read).
    x_emb_all = jnp.take(params["emb"], tokens, axis=0)                     # (S,B,E)
    xg_all = jnp.einsum("sbe,eg->sbg", x_emb_all, params["w_ih"],
                        precision=hi)                                        # (S,B,4H)
    # Fused gate weight for the single K=2H contraction + folded gate bias.
    w_ctx = jnp.matmul(params["fc2_w"], params["w_ih"], precision=hi)        # (H,4H)
    w_cat = jnp.concatenate([w_ctx, params["w_hh"]], axis=0)                 # (2H,4H)
    b_gate = (params["b_ih"] + params["b_hh"]
              + jnp.matmul(params["fc2_b"], params["w_ih"], precision=hi))   # (1,4H)

    vmem = lambda: pl.BlockSpec(memory_space=pltpu.MemorySpace.VMEM)

    out, h_new, c_new = pl.pallas_call(
        lstm_decoder_fused_kernel,
        out_shape=(jax.ShapeDtypeStruct((S, B, O), jnp.float32),
                   jax.ShapeDtypeStruct((B, H), jnp.float32),
                   jax.ShapeDtypeStruct((B, H), jnp.float32)),
        in_specs=[vmem() for _ in range(11)],
        out_specs=(vmem(), vmem(), vmem()),
        scratch_shapes=[pltpu.VMEM((S, B, H), jnp.float32)],   # per-step h stash
    )(h0[0], c0[0], enc_states, enc_proj, xg_all, w1_dec, attn_w2,
      w_cat, b_gate, params["fc1_w"], params["fc1_b"])

    return out, (h_new[None], c_new[None])


# ----------------------------- reference (pure jnp) -----------------------------
def reference_step(tok, h, cell, enc_states, params):
    """Faithful single-step re-implementation of the PyTorch forward."""
    B, T, H = enc_states.shape
    dec = cell                                                  # state[-1].squeeze(0)
    dec_states = jnp.broadcast_to(dec[:, None, :], enc_states.shape)
    cat = jnp.concatenate([enc_states, dec_states], axis=2)     # (B, T, 2H)
    e = jnp.tanh(cat @ params["attn_w1"]) @ params["attn_w2"]   # (B, T, 1)
    alpha = jax.nn.softmax(e, axis=1)
    ctx = jnp.sum(alpha * enc_states, axis=1)                   # (B, H)
    x_emb = params["emb"][tok]                                  # (B, E)
    c_proj = ctx @ params["fc2_w"] + params["fc2_b"]
    inp = c_proj + x_emb
    gates = inp @ params["w_ih"] + params["b_ih"] + h @ params["w_hh"] + params["b_hh"]
    i_g = jax.nn.sigmoid(gates[:, 0 * H:1 * H])
    f_g = jax.nn.sigmoid(gates[:, 1 * H:2 * H])
    g_g = jnp.tanh(gates[:, 2 * H:3 * H])
    o_g = jax.nn.sigmoid(gates[:, 3 * H:4 * H])
    c_new = f_g * cell + i_g * g_g
    h_new = o_g * jnp.tanh(c_new)
    out = h_new @ params["fc1_w"] + params["fc1_b"]
    return out, h_new, c_new


def reference_forward(tokens, state, enc_states, params):
    h, c = state[0][0], state[1][0]
    outs = []
    for s in range(tokens.shape[0]):
        out, h, c = reference_step(tokens[s], h, c, enc_states, params)
        outs.append(out)
    return jnp.stack(outs, axis=0), (h[None], c[None])


def init_params(key, vocab, E, H, A, O):
    ks = jax.random.split(key, 11)
    u = lambda k, s: jax.random.uniform(k, s, jnp.float32, -0.1, 0.1)
    emb = u(ks[0], (vocab, E)).at[0].set(0.0)        # padding_idx=0
    return dict(
        emb=emb,
        attn_w1=u(ks[1], (2 * H, A)),                # Linear(2H, A, bias=False).T
        attn_w2=u(ks[2], (A, 1)),                    # Linear(A, 1, bias=False).T
        w_ih=u(ks[3], (E, 4 * H)),                   # LSTM weight_ih_l0.T
        w_hh=u(ks[4], (H, 4 * H)),                   # LSTM weight_hh_l0.T
        b_ih=u(ks[5], (1, 4 * H)),
        b_hh=u(ks[6], (1, 4 * H)),
        fc1_w=u(ks[7], (H, O)),                      # Linear(H, O).T
        fc1_b=u(ks[8], (1, O)),
        fc2_w=u(ks[9], (H, E)),                      # Linear(H, E).T
        fc2_b=u(ks[10], (1, E)),
    )


if __name__ == "__main__":
    # Small shapes consistent with the module (hidden_dim=128, embedding_dim=13).
    B, T, S = 8, 8, 6        # batch, encoder time steps, fused decode steps
    H = 128                  # hidden_dim (lane-aligned)
    E = 13                   # embedding_dim
    A = 64                   # attention_size
    VOCAB = 256              # vocab_size == output_dim (lane-dense)
    O = VOCAB

    key = jax.random.PRNGKey(0)
    kp, kt, kh, kc, ke = jax.random.split(key, 5)
    params = init_params(kp, VOCAB, E, H, A, O)

    tokens = jax.random.randint(kt, (S, B), 1, VOCAB, dtype=jnp.int32)
    tokens = tokens.at[0, 0].set(0)          # exercise padding_idx=0
    h0 = jax.random.normal(kh, (1, B, H), jnp.float32) * 0.5
    c0 = jax.random.normal(kc, (1, B, H), jnp.float32) * 0.5
    enc_states = jax.random.normal(ke, (B, T, H), jnp.float32) * 0.5

    out, (h_new, c_new) = lstm_decoder_forward(tokens, (h0, c0), enc_states, params)
    jax.block_until_ready((out, h_new, c_new))

    out_ref, (h_ref, c_ref) = reference_forward(tokens, (h0, c0), enc_states, params)
    assert jnp.allclose(out, out_ref, atol=1e-4, rtol=1e-4), "logits mismatch"
    assert jnp.allclose(h_new, h_ref, atol=1e-4, rtol=1e-4), "h state mismatch"
    assert jnp.allclose(c_new, c_ref, atol=1e-4, rtol=1e-4), "c state mismatch"

    print("KERNEL_OK")
</pallas_src>

<mosaic_0001>
module attributes {stable_mosaic.version = 11 : i64} {
  func.func @lstm_decoder_fused_kernel(%arg0: memref<8x128xf32, #tpu.memory_space<vmem>>, %arg1: memref<8x128xf32, #tpu.memory_space<vmem>>, %arg2: memref<8x8x128xf32, #tpu.memory_space<vmem>>, %arg3: memref<8x8x64xf32, #tpu.memory_space<vmem>>, %arg4: memref<6x8x512xf32, #tpu.memory_space<vmem>>, %arg5: memref<128x64xf32, #tpu.memory_space<vmem>>, %arg6: memref<1x1x64xf32, #tpu.memory_space<vmem>>, %arg7: memref<256x512xf32, #tpu.memory_space<vmem>>, %arg8: memref<1x512xf32, #tpu.memory_space<vmem>>, %arg9: memref<128x256xf32, #tpu.memory_space<vmem>>, %arg10: memref<1x256xf32, #tpu.memory_space<vmem>>, %arg11: memref<6x8x256xf32, #tpu.memory_space<vmem>>, %arg12: memref<8x128xf32, #tpu.memory_space<vmem>>, %arg13: memref<8x128xf32, #tpu.memory_space<vmem>>, %arg14: memref<6x8x128xf32, #tpu.memory_space<vmem>>) attributes {dimension_semantics = [], scalar_prefetch = 0 : i64, scratch_operands = 1 : i64, tpu.core_type = #tpu.core_type<tc>} {
    %c0 = arith.constant 0 : index
    %c0_0 = arith.constant 0 : index
    %c0_1 = arith.constant 0 : index
    %0 = vector.load %arg2[%c0, %c0_0, %c0_1] : memref<8x8x128xf32, #tpu.memory_space<vmem>>, vector<8x8x128xf32>
    %c0_2 = arith.constant 0 : index
    %c0_3 = arith.constant 0 : index
    %c0_4 = arith.constant 0 : index
    %1 = vector.load %arg3[%c0_2, %c0_3, %c0_4] : memref<8x8x64xf32, #tpu.memory_space<vmem>>, vector<8x8x64xf32>
    %c0_5 = arith.constant 0 : index
    %c0_6 = arith.constant 0 : index
    %c0_7 = arith.constant 0 : index
    %2 = vector.load %arg6[%c0_5, %c0_6, %c0_7] : memref<1x1x64xf32, #tpu.memory_space<vmem>>, vector<1x1x64xf32>
    %c0_8 = arith.constant 0 : index
    %c0_9 = arith.constant 0 : index
    %3 = vector.load %arg5[%c0_8, %c0_9] : memref<128x64xf32, #tpu.memory_space<vmem>>, vector<128x64xf32>
    %c0_10 = arith.constant 0 : index
    %c0_11 = arith.constant 0 : index
    %4 = vector.load %arg7[%c0_10, %c0_11] : memref<256x512xf32, #tpu.memory_space<vmem>>, vector<256x512xf32>
    %c0_12 = arith.constant 0 : index
    %c0_13 = arith.constant 0 : index
    %5 = vector.load %arg8[%c0_12, %c0_13] : memref<1x512xf32, #tpu.memory_space<vmem>>, vector<1x512xf32>
    %c0_14 = arith.constant 0 : index
    %c0_15 = arith.constant 0 : index
    %6 = vector.load %arg0[%c0_14, %c0_15] : memref<8x128xf32, #tpu.memory_space<vmem>>, vector<8x128xf32>
    %c0_16 = arith.constant 0 : index
    %c0_17 = arith.constant 0 : index
    %7 = vector.load %arg1[%c0_16, %c0_17] : memref<8x128xf32, #tpu.memory_space<vmem>>, vector<8x128xf32>
    %c0_i32 = arith.constant 0 : i32
    %cst = arith.constant dense<0.000000e+00> : vector<8x64xf32>
    %8 = tpu.matmul %7, %3, %cst {dimension_numbers = #tpu.dot_dimension_numbers<[1], [0], [0], [1], [0, 0, 1, 1], [], []>} : vector<8x128xf32>, vector<128x64xf32>, vector<8x64xf32> -> vector<8x64xf32>
    %9 = vector.shape_cast %8 : vector<8x64xf32> to vector<8x1x64xf32>
    %10 = vector.broadcast %9 : vector<8x1x64xf32> to vector<8x8x64xf32>
    %11 = arith.addf %1, %10 : vector<8x8x64xf32>
    %12 = math.tanh %11 : vector<8x8x64xf32>
    %13 = vector.broadcast %2 : vector<1x1x64xf32> to vector<8x8x64xf32>
    %14 = arith.mulf %12, %13 : vector<8x8x64xf32>
    %cst_18 = arith.constant dense<0.000000e+00> : vector<8x8xf32>
    %15 = vector.multi_reduction <add>, %14, %cst_18 [2] : vector<8x8x64xf32> to vector<8x8xf32>
    %cst_19 = arith.constant dense<0xFF800000> : vector<8xf32>
    %16 = vector.multi_reduction <maximumf>, %15, %cst_19 [1] : vector<8x8xf32> to vector<8xf32>
    %17 = vector.shape_cast %16 : vector<8xf32> to vector<8x1xf32>
    %18 = vector.broadcast %17 : vector<8x1xf32> to vector<8x8xf32>
    %19 = arith.subf %15, %18 : vector<8x8xf32>
    %20 = math.exp %19 : vector<8x8xf32>
    %cst_20 = arith.constant dense<0.000000e+00> : vector<8xf32>
    %21 = vector.multi_reduction <add>, %20, %cst_20 [1] : vector<8x8xf32> to vector<8xf32>
    %22 = vector.shape_cast %21 : vector<8xf32> to vector<8x1xf32>
    %23 = tpu.reciprocal %22 : vector<8x1xf32> -> vector<8x1xf32>
    %24 = vector.broadcast %23 : vector<8x1xf32> to vector<8x8xf32>
    %25 = arith.mulf %20, %24 : vector<8x8xf32>
    %26 = vector.shape_cast %25 : vector<8x8xf32> to vector<8x8x1xf32>
    %27 = vector.broadcast %26 : vector<8x8x1xf32> to vector<8x8x128xf32>
    %28 = arith.mulf %27, %0 : vector<8x8x128xf32>
    %cst_21 = arith.constant dense<0.000000e+00> : vector<8x128xf32>
    %29 = vector.multi_reduction <add>, %28, %cst_21 [1] : vector<8x8x128xf32> to vector<8x128xf32>
    %30 = tpu.concatenate %29, %6 in 1 : vector<8x128xf32>, vector<8x128xf32> -> vector<8x256xf32>
    %cst_22 = arith.constant dense<0.000000e+00> : vector<8x512xf32>
    %31 = tpu.matmul %30, %4, %cst_22 {dimension_numbers = #tpu.dot_dimension_numbers<[1], [0], [0], [1], [0, 0, 1, 1], [], []>} : vector<8x256xf32>, vector<256x512xf32>, vector<8x512xf32> -> vector<8x512xf32>
    %32 = arith.index_cast %c0_i32 : i32 to index
    %c0_23 = arith.constant 0 : index
    %c0_24 = arith.constant 0 : index
    %33 = vector.load %arg4[%32, %c0_23, %c0_24] : memref<6x8x512xf32, #tpu.memory_space<vmem>>, vector<1x8x512xf32>
    %34 = vector.shape_cast %33 : vector<1x8x512xf32> to vector<8x512xf32>
    %35 = arith.addf %31, %34 : vector<8x512xf32>
    %36 = vector.broadcast %5 : vector<1x512xf32> to vector<8x512xf32>
    %37 = arith.addf %35, %36 : vector<8x512xf32>
    %38 = vector.extract_strided_slice %37 {offsets = [0, 0], sizes = [8, 128], strides = [1, 1]} : vector<8x512xf32> to vector<8x128xf32>
    %39 = arith.negf %38 : vector<8x128xf32>
    %40 = math.exp %39 : vector<8x128xf32>
    %cst_25 = arith.constant 1.000000e+00 : f32
    %41 = vector.broadcast %cst_25 : f32 to vector<8x128xf32>
    %42 = arith.addf %41, %40 : vector<8x128xf32>
    %43 = arith.divf %41, %42 : vector<8x128xf32>
    %44 = vector.extract_strided_slice %37 {offsets = [0, 128], sizes = [8, 128], strides = [1, 1]} : vector<8x512xf32> to vector<8x128xf32>
    %45 = arith.negf %44 : vector<8x128xf32>
    %46 = math.exp %45 : vector<8x128xf32>
    %cst_26 = arith.constant 1.000000e+00 : f32
    %47 = vector.broadcast %cst_26 : f32 to vector<8x128xf32>
    %48 = arith.addf %47, %46 : vector<8x128xf32>
    %49 = arith.divf %47, %48 : vector<8x128xf32>
    %50 = vector.extract_strided_slice %37 {offsets = [0, 256], sizes = [8, 128], strides = [1, 1]} : vector<8x512xf32> to vector<8x128xf32>
    %51 = math.tanh %50 : vector<8x128xf32>
    %52 = vector.extract_strided_slice %37 {offsets = [0, 384], sizes = [8, 128], strides = [1, 1]} : vector<8x512xf32> to vector<8x128xf32>
    %53 = arith.negf %52 : vector<8x128xf32>
    %54 = math.exp %53 : vector<8x128xf32>
    %cst_27 = arith.constant 1.000000e+00 : f32
    %55 = vector.broadcast %cst_27 : f32 to vector<8x128xf32>
    %56 = arith.addf %55, %54 : vector<8x128xf32>
    %57 = arith.divf %55, %56 : vector<8x128xf32>
    %58 = arith.mulf %49, %7 : vector<8x128xf32>
    %59 = arith.mulf %43, %51 : vector<8x128xf32>
    %60 = arith.addf %58, %59 : vector<8x128xf32>
    %61 = math.tanh %60 : vector<8x128xf32>
    %62 = arith.mulf %57, %61 : vector<8x128xf32>
    %63 = arith.index_cast %c0_i32 : i32 to index
    %c0_28 = arith.constant 0 : index
    %c0_29 = arith.constant 0 : index
    %64 = vector.load %arg14[%63, %c0_28, %c0_29] : memref<6x8x128xf32, #tpu.memory_space<vmem>>, vector<1x8x128xf32>
    %65 = vector.shape_cast %64 : vector<1x8x128xf32> to vector<8x128xf32>
    %66 = vector.shape_cast %62 : vector<8x128xf32> to vector<1x8x128xf32>
    tpu.vector_store %arg14[%63, %c0_28, %c0_29], %66 {strides = array<i32>} : memref<6x8x128xf32, #tpu.memory_space<vmem>>, vector<1x8x128xf32>,
    %c1_i32 = arith.constant 1 : i32
    %cst_30 = arith.constant dense<0.000000e+00> : vector<8x64xf32>
    %67 = tpu.matmul %60, %3, %cst_30 {dimension_numbers = #tpu.dot_dimension_numbers<[1], [0], [0], [1], [0, 0, 1, 1], [], []>} : vector<8x128xf32>, vector<128x64xf32>, vector<8x64xf32> -> vector<8x64xf32>
    %68 = vector.shape_cast %67 : vector<8x64xf32> to vector<8x1x64xf32>
    %69 = vector.broadcast %68 : vector<8x1x64xf32> to vector<8x8x64xf32>
    %70 = arith.addf %1, %69 : vector<8x8x64xf32>
    %71 = math.tanh %70 : vector<8x8x64xf32>
    %72 = vector.broadcast %2 : vector<1x1x64xf32> to vector<8x8x64xf32>
    %73 = arith.mulf %71, %72 : vector<8x8x64xf32>
    %cst_31 = arith.constant dense<0.000000e+00> : vector<8x8xf32>
    %74 = vector.multi_reduction <add>, %73, %cst_31 [2] : vector<8x8x64xf32> to vector<8x8xf32>
    %cst_32 = arith.constant dense<0xFF800000> : vector<8xf32>
    %75 = vector.multi_reduction <maximumf>, %74, %cst_32 [1] : vector<8x8xf32> to vector<8xf32>
    %76 = vector.shape_cast %75 : vector<8xf32> to vector<8x1xf32>
    %77 = vector.broadcast %76 : vector<8x1xf32> to vector<8x8xf32>
    %78 = arith.subf %74, %77 : vector<8x8xf32>
    %79 = math.exp %78 : vector<8x8xf32>
    %cst_33 = arith.constant dense<0.000000e+00> : vector<8xf32>
    %80 = vector.multi_reduction <add>, %79, %cst_33 [1] : vector<8x8xf32> to vector<8xf32>
    %81 = vector.shape_cast %80 : vector<8xf32> to vector<8x1xf32>
    %82 = tpu.reciprocal %81 : vector<8x1xf32> -> vector<8x1xf32>
    %83 = vector.broadcast %82 : vector<8x1xf32> to vector<8x8xf32>
    %84 = arith.mulf %79, %83 : vector<8x8xf32>
    %85 = vector.shape_cast %84 : vector<8x8xf32> to vector<8x8x1xf32>
    %86 = vector.broadcast %85 : vector<8x8x1xf32> to vector<8x8x128xf32>
    %87 = arith.mulf %86, %0 : vector<8x8x128xf32>
    %cst_34 = arith.constant dense<0.000000e+00> : vector<8x128xf32>
    %88 = vector.multi_reduction <add>, %87, %cst_34 [1] : vector<8x8x128xf32> to vector<8x128xf32>
    %89 = tpu.concatenate %88, %62 in 1 : vector<8x128xf32>, vector<8x128xf32> -> vector<8x256xf32>
    %cst_35 = arith.constant dense<0.000000e+00> : vector<8x512xf32>
    %90 = tpu.matmul %89, %4, %cst_35 {dimension_numbers = #tpu.dot_dimension_numbers<[1], [0], [0], [1], [0, 0, 1, 1], [], []>} : vector<8x256xf32>, vector<256x512xf32>, vector<8x512xf32> -> vector<8x512xf32>
    %91 = arith.index_cast %c1_i32 : i32 to index
    %c0_36 = arith.constant 0 : index
    %c0_37 = arith.constant 0 : index
    %92 = vector.load %arg4[%91, %c0_36, %c0_37] : memref<6x8x512xf32, #tpu.memory_space<vmem>>, vector<1x8x512xf32>
    %93 = vector.shape_cast %92 : vector<1x8x512xf32> to vector<8x512xf32>
    %94 = arith.addf %90, %93 : vector<8x512xf32>
    %95 = vector.broadcast %5 : vector<1x512xf32> to vector<8x512xf32>
    %96 = arith.addf %94, %95 : vector<8x512xf32>
    %97 = vector.extract_strided_slice %96 {offsets = [0, 0], sizes = [8, 128], strides = [1, 1]} : vector<8x512xf32> to vector<8x128xf32>
    %98 = arith.negf %97 : vector<8x128xf32>
    %99 = math.exp %98 : vector<8x128xf32>
    %cst_38 = arith.constant 1.000000e+00 : f32
    %100 = vector.broadcast %cst_38 : f32 to vector<8x128xf32>
    %101 = arith.addf %100, %99 : vector<8x128xf32>
    %102 = arith.divf %100, %101 : vector<8x128xf32>
    %103 = vector.extract_strided_slice %96 {offsets = [0, 128], sizes = [8, 128], strides = [1, 1]} : vector<8x512xf32> to vector<8x128xf32>
    %104 = arith.negf %103 : vector<8x128xf32>
    %105 = math.exp %104 : vector<8x128xf32>
    %cst_39 = arith.constant 1.000000e+00 : f32
    %106 = vector.broadcast %cst_39 : f32 to vector<8x128xf32>
    %107 = arith.addf %106, %105 : vector<8x128xf32>
    %108 = arith.divf %106, %107 : vector<8x128xf32>
    %109 = vector.extract_strided_slice %96 {offsets = [0, 256], sizes = [8, 128], strides = [1, 1]} : vector<8x512xf32> to vector<8x128xf32>
    %110 = math.tanh %109 : vector<8x128xf32>
    %111 = vector.extract_strided_slice %96 {offsets = [0, 384], sizes = [8, 128], strides = [1, 1]} : vector<8x512xf32> to vector<8x128xf32>
    %112 = arith.negf %111 : vector<8x128xf32>
    %113 = math.exp %112 : vector<8x128xf32>
    %cst_40 = arith.constant 1.000000e+00 : f32
    %114 = vector.broadcast %cst_40 : f32 to vector<8x128xf32>
    %115 = arith.addf %114, %113 : vector<8x128xf32>
    %116 = arith.divf %114, %115 : vector<8x128xf32>
    %117 = arith.mulf %108, %60 : vector<8x128xf32>
    %118 = arith.mulf %102, %110 : vector<8x128xf32>
    %119 = arith.addf %117, %118 : vector<8x128xf32>
    %120 = math.tanh %119 : vector<8x128xf32>
    %121 = arith.mulf %116, %120 : vector<8x128xf32>
    %122 = arith.index_cast %c1_i32 : i32 to index
    %c0_41 = arith.constant 0 : index
    %c0_42 = arith.constant 0 : index
    %123 = vector.load %arg14[%122, %c0_41, %c0_42] : memref<6x8x128xf32, #tpu.memory_space<vmem>>, vector<1x8x128xf32>
    %124 = vector.shape_cast %123 : vector<1x8x128xf32> to vector<8x128xf32>
    %125 = vector.shape_cast %121 : vector<8x128xf32> to vector<1x8x128xf32>
    tpu.vector_store %arg14[%122, %c0_41, %c0_42], %125 {strides = array<i32>} : memref<6x8x128xf32, #tpu.memory_space<vmem>>, vector<1x8x128xf32>,
    %c2_i32 = arith.constant 2 : i32
    %cst_43 = arith.constant dense<0.000000e+00> : vector<8x64xf32>
    %126 = tpu.matmul %119, %3, %cst_43 {dimension_numbers = #tpu.dot_dimension_numbers<[1], [0], [0], [1], [0, 0, 1, 1], [], []>} : vector<8x128xf32>, vector<128x64xf32>, vector<8x64xf32> -> vector<8x64xf32>
    %127 = vector.shape_cast %126 : vector<8x64xf32> to vector<8x1x64xf32>
    %128 = vector.broadcast %127 : vector<8x1x64xf32> to vector<8x8x64xf32>
    %129 = arith.addf %1, %128 : vector<8x8x64xf32>
    %130 = math.tanh %129 : vector<8x8x64xf32>
    %131 = vector.broadcast %2 : vector<1x1x64xf32> to vector<8x8x64xf32>
    %132 = arith.mulf %130, %131 : vector<8x8x64xf32>
    %cst_44 = arith.constant dense<0.000000e+00> : vector<8x8xf32>
    %133 = vector.multi_reduction <add>, %132, %cst_44 [2] : vector<8x8x64xf32> to vector<8x8xf32>
    %cst_45 = arith.constant dense<0xFF800000> : vector<8xf32>
    %134 = vector.multi_reduction <maximumf>, %133, %cst_45 [1] : vector<8x8xf32> to vector<8xf32>
    %135 = vector.shape_cast %134 : vector<8xf32> to vector<8x1xf32>
    %136 = vector.broadcast %135 : vector<8x1xf32> to vector<8x8xf32>
    %137 = arith.subf %133, %136 : vector<8x8xf32>
    %138 = math.exp %137 : vector<8x8xf32>
    %cst_46 = arith.constant dense<0.000000e+00> : vector<8xf32>
    %139 = vector.multi_reduction <add>, %138, %cst_46 [1] : vector<8x8xf32> to vector<8xf32>
    %140 = vector.shape_cast %139 : vector<8xf32> to vector<8x1xf32>
    %141 = tpu.reciprocal %140 : vector<8x1xf32> -> vector<8x1xf32>
    %142 = vector.broadcast %141 : vector<8x1xf32> to vector<8x8xf32>
    %143 = arith.mulf %138, %142 : vector<8x8xf32>
    %144 = vector.shape_cast %143 : vector<8x8xf32> to vector<8x8x1xf32>
    %145 = vector.broadcast %144 : vector<8x8x1xf32> to vector<8x8x128xf32>
    %146 = arith.mulf %145, %0 : vector<8x8x128xf32>
    %cst_47 = arith.constant dense<0.000000e+00> : vector<8x128xf32>
    %147 = vector.multi_reduction <add>, %146, %cst_47 [1] : vector<8x8x128xf32> to vector<8x128xf32>
    %148 = tpu.concatenate %147, %121 in 1 : vector<8x128xf32>, vector<8x128xf32> -> vector<8x256xf32>
    %cst_48 = arith.constant dense<0.000000e+00> : vector<8x512xf32>
    %149 = tpu.matmul %148, %4, %cst_48 {dimension_numbers = #tpu.dot_dimension_numbers<[1], [0], [0], [1], [0, 0, 1, 1], [], []>} : vector<8x256xf32>, vector<256x512xf32>, vector<8x512xf32> -> vector<8x512xf32>
    %150 = arith.index_cast %c2_i32 : i32 to index
    %c0_49 = arith.constant 0 : index
    %c0_50 = arith.constant 0 : index
    %151 = vector.load %arg4[%150, %c0_49, %c0_50] : memref<6x8x512xf32, #tpu.memory_space<vmem>>, vector<1x8x512xf32>
    %152 = vector.shape_cast %151 : vector<1x8x512xf32> to vector<8x512xf32>
    %153 = arith.addf %149, %152 : vector<8x512xf32>
    %154 = vector.broadcast %5 : vector<1x512xf32> to vector<8x512xf32>
    %155 = arith.addf %153, %154 : vector<8x512xf32>
    %156 = vector.extract_strided_slice %155 {offsets = [0, 0], sizes = [8, 128], strides = [1, 1]} : vector<8x512xf32> to vector<8x128xf32>
    %157 = arith.negf %156 : vector<8x128xf32>
    %158 = math.exp %157 : vector<8x128xf32>
    %cst_51 = arith.constant 1.000000e+00 : f32
    %159 = vector.broadcast %cst_51 : f32 to vector<8x128xf32>
    %160 = arith.addf %159, %158 : vector<8x128xf32>
    %161 = arith.divf %159, %160 : vector<8x128xf32>
    %162 = vector.extract_strided_slice %155 {offsets = [0, 128], sizes = [8, 128], strides = [1, 1]} : vector<8x512xf32> to vector<8x128xf32>
    %163 = arith.negf %162 : vector<8x128xf32>
    %164 = math.exp %163 : vector<8x128xf32>
    %cst_52 = arith.constant 1.000000e+00 : f32
    %165 = vector.broadcast %cst_52 : f32 to vector<8x128xf32>
    %166 = arith.addf %165, %164 : vector<8x128xf32>
    %167 = arith.divf %165, %166 : vector<8x128xf32>
    %168 = vector.extract_strided_slice %155 {offsets = [0, 256], sizes = [8, 128], strides = [1, 1]} : vector<8x512xf32> to vector<8x128xf32>
    %169 = math.tanh %168 : vector<8x128xf32>
    %170 = vector.extract_strided_slice %155 {offsets = [0, 384], sizes = [8, 128], strides = [1, 1]} : vector<8x512xf32> to vector<8x128xf32>
    %171 = arith.negf %170 : vector<8x128xf32>
    %172 = math.exp %171 : vector<8x128xf32>
    %cst_53 = arith.constant 1.000000e+00 : f32
    %173 = vector.broadcast %cst_53 : f32 to vector<8x128xf32>
    %174 = arith.addf %173, %172 : vector<8x128xf32>
    %175 = arith.divf %173, %174 : vector<8x128xf32>
    %176 = arith.mulf %167, %119 : vector<8x128xf32>
    %177 = arith.mulf %161, %169 : vector<8x128xf32>
    %178 = arith.addf %176, %177 : vector<8x128xf32>
    %179 = math.tanh %178 : vector<8x128xf32>
    %180 = arith.mulf %175, %179 : vector<8x128xf32>
    %181 = arith.index_cast %c2_i32 : i32 to index
    %c0_54 = arith.constant 0 : index
    %c0_55 = arith.constant 0 : index
    %182 = vector.load %arg14[%181, %c0_54, %c0_55] : memref<6x8x128xf32, #tpu.memory_space<vmem>>, vector<1x8x128xf32>
    %183 = vector.shape_cast %182 : vector<1x8x128xf32> to vector<8x128xf32>
    %184 = vector.shape_cast %180 : vector<8x128xf32> to vector<1x8x128xf32>
    tpu.vector_store %arg14[%181, %c0_54, %c0_55], %184 {strides = array<i32>} : memref<6x8x128xf32, #tpu.memory_space<vmem>>, vector<1x8x128xf32>,
    %c3_i32 = arith.constant 3 : i32
    %cst_56 = arith.constant dense<0.000000e+00> : vector<8x64xf32>
    %185 = tpu.matmul %178, %3, %cst_56 {dimension_numbers = #tpu.dot_dimension_numbers<[1], [0], [0], [1], [0, 0, 1, 1], [], []>} : vector<8x128xf32>, vector<128x64xf32>, vector<8x64xf32> -> vector<8x64xf32>
    %186 = vector.shape_cast %185 : vector<8x64xf32> to vector<8x1x64xf32>
    %187 = vector.broadcast %186 : vector<8x1x64xf32> to vector<8x8x64xf32>
    %188 = arith.addf %1, %187 : vector<8x8x64xf32>
    %189 = math.tanh %188 : vector<8x8x64xf32>
    %190 = vector.broadcast %2 : vector<1x1x64xf32> to vector<8x8x64xf32>
    %191 = arith.mulf %189, %190 : vector<8x8x64xf32>
    %cst_57 = arith.constant dense<0.000000e+00> : vector<8x8xf32>
    %192 = vector.multi_reduction <add>, %191, %cst_57 [2] : vector<8x8x64xf32> to vector<8x8xf32>
    %cst_58 = arith.constant dense<0xFF800000> : vector<8xf32>
    %193 = vector.multi_reduction <maximumf>, %192, %cst_58 [1] : vector<8x8xf32> to vector<8xf32>
    %194 = vector.shape_cast %193 : vector<8xf32> to vector<8x1xf32>
    %195 = vector.broadcast %194 : vector<8x1xf32> to vector<8x8xf32>
    %196 = arith.subf %192, %195 : vector<8x8xf32>
    %197 = math.exp %196 : vector<8x8xf32>
    %cst_59 = arith.constant dense<0.000000e+00> : vector<8xf32>
    %198 = vector.multi_reduction <add>, %197, %cst_59 [1] : vector<8x8xf32> to vector<8xf32>
    %199 = vector.shape_cast %198 : vector<8xf32> to vector<8x1xf32>
    %200 = tpu.reciprocal %199 : vector<8x1xf32> -> vector<8x1xf32>
    %201 = vector.broadcast %200 : vector<8x1xf32> to vector<8x8xf32>
    %202 = arith.mulf %197, %201 : vector<8x8xf32>
    %203 = vector.shape_cast %202 : vector<8x8xf32> to vector<8x8x1xf32>
    %204 = vector.broadcast %203 : vector<8x8x1xf32> to vector<8x8x128xf32>
    %205 = arith.mulf %204, %0 : vector<8x8x128xf32>
    %cst_60 = arith.constant dense<0.000000e+00> : vector<8x128xf32>
    %206 = vector.multi_reduction <add>, %205, %cst_60 [1] : vector<8x8x128xf32> to vector<8x128xf32>
    %207 = tpu.concatenate %206, %180 in 1 : vector<8x128xf32>, vector<8x128xf32> -> vector<8x256xf32>
    %cst_61 = arith.constant dense<0.000000e+00> : vector<8x512xf32>
    %208 = tpu.matmul %207, %4, %cst_61 {dimension_numbers = #tpu.dot_dimension_numbers<[1], [0], [0], [1], [0, 0, 1, 1], [], []>} : vector<8x256xf32>, vector<256x512xf32>, vector<8x512xf32> -> vector<8x512xf32>
    %209 = arith.index_cast %c3_i32 : i32 to index
    %c0_62 = arith.constant 0 : index
    %c0_63 = arith.constant 0 : index
    %210 = vector.load %arg4[%209, %c0_62, %c0_63] : memref<6x8x512xf32, #tpu.memory_space<vmem>>, vector<1x8x512xf32>
    %211 = vector.shape_cast %210 : vector<1x8x512xf32> to vector<8x512xf32>
    %212 = arith.addf %208, %211 : vector<8x512xf32>
    %213 = vector.broadcast %5 : vector<1x512xf32> to vector<8x512xf32>
    %214 = arith.addf %212, %213 : vector<8x512xf32>
    %215 = vector.extract_strided_slice %214 {offsets = [0, 0], sizes = [8, 128], strides = [1, 1]} : vector<8x512xf32> to vector<8x128xf32>
    %216 = arith.negf %215 : vector<8x128xf32>
    %217 = math.exp %216 : vector<8x128xf32>
    %cst_64 = arith.constant 1.000000e+00 : f32
    %218 = vector.broadcast %cst_64 : f32 to vector<8x128xf32>
    %219 = arith.addf %218, %217 : vector<8x128xf32>
    %220 = arith.divf %218, %219 : vector<8x128xf32>
    %221 = vector.extract_strided_slice %214 {offsets = [0, 128], sizes = [8, 128], strides = [1, 1]} : vector<8x512xf32> to vector<8x128xf32>
    %222 = arith.negf %221 : vector<8x128xf32>
    %223 = math.exp %222 : vector<8x128xf32>
    %cst_65 = arith.constant 1.000000e+00 : f32
    %224 = vector.broadcast %cst_65 : f32 to vector<8x128xf32>
    %225 = arith.addf %224, %223 : vector<8x128xf32>
    %226 = arith.divf %224, %225 : vector<8x128xf32>
    %227 = vector.extract_strided_slice %214 {offsets = [0, 256], sizes = [8, 128], strides = [1, 1]} : vector<8x512xf32> to vector<8x128xf32>
    %228 = math.tanh %227 : vector<8x128xf32>
    %229 = vector.extract_strided_slice %214 {offsets = [0, 384], sizes = [8, 128], strides = [1, 1]} : vector<8x512xf32> to vector<8x128xf32>
    %230 = arith.negf %229 : vector<8x128xf32>
    %231 = math.exp %230 : vector<8x128xf32>
    %cst_66 = arith.constant 1.000000e+00 : f32
    %232 = vector.broadcast %cst_66 : f32 to vector<8x128xf32>
    %233 = arith.addf %232, %231 : vector<8x128xf32>
    %234 = arith.divf %232, %233 : vector<8x128xf32>
    %235 = arith.mulf %226, %178 : vector<8x128xf32>
    %236 = arith.mulf %220, %228 : vector<8x128xf32>
    %237 = arith.addf %235, %236 : vector<8x128xf32>
    %238 = math.tanh %237 : vector<8x128xf32>
    %239 = arith.mulf %234, %238 : vector<8x128xf32>
    %240 = arith.index_cast %c3_i32 : i32 to index
    %c0_67 = arith.constant 0 : index
    %c0_68 = arith.constant 0 : index
    %241 = vector.load %arg14[%240, %c0_67, %c0_68] : memref<6x8x128xf32, #tpu.memory_space<vmem>>, vector<1x8x128xf32>
    %242 = vector.shape_cast %241 : vector<1x8x128xf32> to vector<8x128xf32>
    %243 = vector.shape_cast %239 : vector<8x128xf32> to vector<1x8x128xf32>
    tpu.vector_store %arg14[%240, %c0_67, %c0_68], %243 {strides = array<i32>} : memref<6x8x128xf32, #tpu.memory_space<vmem>>, vector<1x8x128xf32>,
    %c4_i32 = arith.constant 4 : i32
    %cst_69 = arith.constant dense<0.000000e+00> : vector<8x64xf32>
    %244 = tpu.matmul %237, %3, %cst_69 {dimension_numbers = #tpu.dot_dimension_numbers<[1], [0], [0], [1], [0, 0, 1, 1], [], []>} : vector<8x128xf32>, vector<128x64xf32>, vector<8x64xf32> -> vector<8x64xf32>
    %245 = vector.shape_cast %244 : vector<8x64xf32> to vector<8x1x64xf32>
    %246 = vector.broadcast %245 : vector<8x1x64xf32> to vector<8x8x64xf32>
    %247 = arith.addf %1, %246 : vector<8x8x64xf32>
    %248 = math.tanh %247 : vector<8x8x64xf32>
    %249 = vector.broadcast %2 : vector<1x1x64xf32> to vector<8x8x64xf32>
    %250 = arith.mulf %248, %249 : vector<8x8x64xf32>
    %cst_70 = arith.constant dense<0.000000e+00> : vector<8x8xf32>
    %251 = vector.multi_reduction <add>, %250, %cst_70 [2] : vector<8x8x64xf32> to vector<8x8xf32>
    %cst_71 = arith.constant dense<0xFF800000> : vector<8xf32>
    %252 = vector.multi_reduction <maximumf>, %251, %cst_71 [1] : vector<8x8xf32> to vector<8xf32>
    %253 = vector.shape_cast %252 : vector<8xf32> to vector<8x1xf32>
    %254 = vector.broadcast %253 : vector<8x1xf32> to vector<8x8xf32>
    %255 = arith.subf %251, %254 : vector<8x8xf32>
    %256 = math.exp %255 : vector<8x8xf32>
    %cst_72 = arith.constant dense<0.000000e+00> : vector<8xf32>
    %257 = vector.multi_reduction <add>, %256, %cst_72 [1] : vector<8x8xf32> to vector<8xf32>
    %258 = vector.shape_cast %257 : vector<8xf32> to vector<8x1xf32>
    %259 = tpu.reciprocal %258 : vector<8x1xf32> -> vector<8x1xf32>
    %260 = vector.broadcast %259 : vector<8x1xf32> to vector<8x8xf32>
    %261 = arith.mulf %256, %260 : vector<8x8xf32>
    %262 = vector.shape_cast %261 : vector<8x8xf32> to vector<8x8x1xf32>
    %263 = vector.broadcast %262 : vector<8x8x1xf32> to vector<8x8x128xf32>
    %264 = arith.mulf %263, %0 : vector<8x8x128xf32>
    %cst_73 = arith.constant dense<0.000000e+00> : vector<8x128xf32>
    %265 = vector.multi_reduction <add>, %264, %cst_73 [1] : vector<8x8x128xf32> to vector<8x128xf32>
    %266 = tpu.concatenate %265, %239 in 1 : vector<8x128xf32>, vector<8x128xf32> -> vector<8x256xf32>
    %cst_74 = arith.constant dense<0.000000e+00> : vector<8x512xf32>
    %267 = tpu.matmul %266, %4, %cst_74 {dimension_numbers = #tpu.dot_dimension_numbers<[1], [0], [0], [1], [0, 0, 1, 1], [], []>} : vector<8x256xf32>, vector<256x512xf32>, vector<8x512xf32> -> vector<8x512xf32>
    %268 = arith.index_cast %c4_i32 : i32 to index
    %c0_75 = arith.constant 0 : index
    %c0_76 = arith.constant 0 : index
    %269 = vector.load %arg4[%268, %c0_75, %c0_76] : memref<6x8x512xf32, #tpu.memory_space<vmem>>, vector<1x8x512xf32>
    %270 = vector.shape_cast %269 : vector<1x8x512xf32> to vector<8x512xf32>
    %271 = arith.addf %267, %270 : vector<8x512xf32>
    %272 = vector.broadcast %5 : vector<1x512xf32> to vector<8x512xf32>
    %273 = arith.addf %271, %272 : vector<8x512xf32>
    %274 = vector.extract_strided_slice %273 {offsets = [0, 0], sizes = [8, 128], strides = [1, 1]} : vector<8x512xf32> to vector<8x128xf32>
    %275 = arith.negf %274 : vector<8x128xf32>
    %276 = math.exp %275 : vector<8x128xf32>
    %cst_77 = arith.constant 1.000000e+00 : f32
    %277 = vector.broadcast %cst_77 : f32 to vector<8x128xf32>
    %278 = arith.addf %277, %276 : vector<8x128xf32>
    %279 = arith.divf %277, %278 : vector<8x128xf32>
    %280 = vector.extract_strided_slice %273 {offsets = [0, 128], sizes = [8, 128], strides = [1, 1]} : vector<8x512xf32> to vector<8x128xf32>
    %281 = arith.negf %280 : vector<8x128xf32>
    %282 = math.exp %281 : vector<8x128xf32>
    %cst_78 = arith.constant 1.000000e+00 : f32
    %283 = vector.broadcast %cst_78 : f32 to vector<8x128xf32>
    %284 = arith.addf %283, %282 : vector<8x128xf32>
    %285 = arith.divf %283, %284 : vector<8x128xf32>
    %286 = vector.extract_strided_slice %273 {offsets = [0, 256], sizes = [8, 128], strides = [1, 1]} : vector<8x512xf32> to vector<8x128xf32>
    %287 = math.tanh %286 : vector<8x128xf32>
    %288 = vector.extract_strided_slice %273 {offsets = [0, 384], sizes = [8, 128], strides = [1, 1]} : vector<8x512xf32> to vector<8x128xf32>
    %289 = arith.negf %288 : vector<8x128xf32>
    %290 = math.exp %289 : vector<8x128xf32>
    %cst_79 = arith.constant 1.000000e+00 : f32
    %291 = vector.broadcast %cst_79 : f32 to vector<8x128xf32>
    %292 = arith.addf %291, %290 : vector<8x128xf32>
    %293 = arith.divf %291, %292 : vector<8x128xf32>
    %294 = arith.mulf %285, %237 : vector<8x128xf32>
    %295 = arith.mulf %279, %287 : vector<8x128xf32>
    %296 = arith.addf %294, %295 : vector<8x128xf32>
    %297 = math.tanh %296 : vector<8x128xf32>
    %298 = arith.mulf %293, %297 : vector<8x128xf32>
    %299 = arith.index_cast %c4_i32 : i32 to index
    %c0_80 = arith.constant 0 : index
    %c0_81 = arith.constant 0 : index
    %300 = vector.load %arg14[%299, %c0_80, %c0_81] : memref<6x8x128xf32, #tpu.memory_space<vmem>>, vector<1x8x128xf32>
    %301 = vector.shape_cast %300 : vector<1x8x128xf32> to vector<8x128xf32>
    %302 = vector.shape_cast %298 : vector<8x128xf32> to vector<1x8x128xf32>
    tpu.vector_store %arg14[%299, %c0_80, %c0_81], %302 {strides = array<i32>} : memref<6x8x128xf32, #tpu.memory_space<vmem>>, vector<1x8x128xf32>,
    %c5_i32 = arith.constant 5 : i32
    %cst_82 = arith.constant dense<0.000000e+00> : vector<8x64xf32>
    %303 = tpu.matmul %296, %3, %cst_82 {dimension_numbers = #tpu.dot_dimension_numbers<[1], [0], [0], [1], [0, 0, 1, 1], [], []>} : vector<8x128xf32>, vector<128x64xf32>, vector<8x64xf32> -> vector<8x64xf32>
    %304 = vector.shape_cast %303 : vector<8x64xf32> to vector<8x1x64xf32>
    %305 = vector.broadcast %304 : vector<8x1x64xf32> to vector<8x8x64xf32>
    %306 = arith.addf %1, %305 : vector<8x8x64xf32>
    %307 = math.tanh %306 : vector<8x8x64xf32>
    %308 = vector.broadcast %2 : vector<1x1x64xf32> to vector<8x8x64xf32>
    %309 = arith.mulf %307, %308 : vector<8x8x64xf32>
    %cst_83 = arith.constant dense<0.000000e+00> : vector<8x8xf32>
    %310 = vector.multi_reduction <add>, %309, %cst_83 [2] : vector<8x8x64xf32> to vector<8x8xf32>
    %cst_84 = arith.constant dense<0xFF800000> : vector<8xf32>
    %311 = vector.multi_reduction <maximumf>, %310, %cst_84 [1] : vector<8x8xf32> to vector<8xf32>
    %312 = vector.shape_cast %311 : vector<8xf32> to vector<8x1xf32>
    %313 = vector.broadcast %312 : vector<8x1xf32> to vector<8x8xf32>
    %314 = arith.subf %310, %313 : vector<8x8xf32>
    %315 = math.exp %314 : vector<8x8xf32>
    %cst_85 = arith.constant dense<0.000000e+00> : vector<8xf32>
    %316 = vector.multi_reduction <add>, %315, %cst_85 [1] : vector<8x8xf32> to vector<8xf32>
    %317 = vector.shape_cast %316 : vector<8xf32> to vector<8x1xf32>
    %318 = tpu.reciprocal %317 : vector<8x1xf32> -> vector<8x1xf32>
    %319 = vector.broadcast %318 : vector<8x1xf32> to vector<8x8xf32>
    %320 = arith.mulf %315, %319 : vector<8x8xf32>
    %321 = vector.shape_cast %320 : vector<8x8xf32> to vector<8x8x1xf32>
    %322 = vector.broadcast %321 : vector<8x8x1xf32> to vector<8x8x128xf32>
    %323 = arith.mulf %322, %0 : vector<8x8x128xf32>
    %cst_86 = arith.constant dense<0.000000e+00> : vector<8x128xf32>
    %324 = vector.multi_reduction <add>, %323, %cst_86 [1] : vector<8x8x128xf32> to vector<8x128xf32>
    %325 = tpu.concatenate %324, %298 in 1 : vector<8x128xf32>, vector<8x128xf32> -> vector<8x256xf32>
    %cst_87 = arith.constant dense<0.000000e+00> : vector<8x512xf32>
    %326 = tpu.matmul %325, %4, %cst_87 {dimension_numbers = #tpu.dot_dimension_numbers<[1], [0], [0], [1], [0, 0, 1, 1], [], []>} : vector<8x256xf32>, vector<256x512xf32>, vector<8x512xf32> -> vector<8x512xf32>
    %327 = arith.index_cast %c5_i32 : i32 to index
    %c0_88 = arith.constant 0 : index
    %c0_89 = arith.constant 0 : index
    %328 = vector.load %arg4[%327, %c0_88, %c0_89] : memref<6x8x512xf32, #tpu.memory_space<vmem>>, vector<1x8x512xf32>
    %329 = vector.shape_cast %328 : vector<1x8x512xf32> to vector<8x512xf32>
    %330 = arith.addf %326, %329 : vector<8x512xf32>
    %331 = vector.broadcast %5 : vector<1x512xf32> to vector<8x512xf32>
    %332 = arith.addf %330, %331 : vector<8x512xf32>
    %333 = vector.extract_strided_slice %332 {offsets = [0, 0], sizes = [8, 128], strides = [1, 1]} : vector<8x512xf32> to vector<8x128xf32>
    %334 = arith.negf %333 : vector<8x128xf32>
    %335 = math.exp %334 : vector<8x128xf32>
    %cst_90 = arith.constant 1.000000e+00 : f32
    %336 = vector.broadcast %cst_90 : f32 to vector<8x128xf32>
    %337 = arith.addf %336, %335 : vector<8x128xf32>
    %338 = arith.divf %336, %337 : vector<8x128xf32>
    %339 = vector.extract_strided_slice %332 {offsets = [0, 128], sizes = [8, 128], strides = [1, 1]} : vector<8x512xf32> to vector<8x128xf32>
    %340 = arith.negf %339 : vector<8x128xf32>
    %341 = math.exp %340 : vector<8x128xf32>
    %cst_91 = arith.constant 1.000000e+00 : f32
    %342 = vector.broadcast %cst_91 : f32 to vector<8x128xf32>
    %343 = arith.addf %342, %341 : vector<8x128xf32>
    %344 = arith.divf %342, %343 : vector<8x128xf32>
    %345 = vector.extract_strided_slice %332 {offsets = [0, 256], sizes = [8, 128], strides = [1, 1]} : vector<8x512xf32> to vector<8x128xf32>
    %346 = math.tanh %345 : vector<8x128xf32>
    %347 = vector.extract_strided_slice %332 {offsets = [0, 384], sizes = [8, 128], strides = [1, 1]} : vector<8x512xf32> to vector<8x128xf32>
    %348 = arith.negf %347 : vector<8x128xf32>
    %349 = math.exp %348 : vector<8x128xf32>
    %cst_92 = arith.constant 1.000000e+00 : f32
    %350 = vector.broadcast %cst_92 : f32 to vector<8x128xf32>
    %351 = arith.addf %350, %349 : vector<8x128xf32>
    %352 = arith.divf %350, %351 : vector<8x128xf32>
    %353 = arith.mulf %344, %296 : vector<8x128xf32>
    %354 = arith.mulf %338, %346 : vector<8x128xf32>
    %355 = arith.addf %353, %354 : vector<8x128xf32>
    %356 = math.tanh %355 : vector<8x128xf32>
    %357 = arith.mulf %352, %356 : vector<8x128xf32>
    %358 = arith.index_cast %c5_i32 : i32 to index
    %c0_93 = arith.constant 0 : index
    %c0_94 = arith.constant 0 : index
    %359 = vector.load %arg14[%358, %c0_93, %c0_94] : memref<6x8x128xf32, #tpu.memory_space<vmem>>, vector<1x8x128xf32>
    %360 = vector.shape_cast %359 : vector<1x8x128xf32> to vector<8x128xf32>
    %361 = vector.shape_cast %357 : vector<8x128xf32> to vector<1x8x128xf32>
    tpu.vector_store %arg14[%358, %c0_93, %c0_94], %361 {strides = array<i32>} : memref<6x8x128xf32, #tpu.memory_space<vmem>>, vector<1x8x128xf32>,
    %c6_i32 = arith.constant 6 : i32
    %c0_95 = arith.constant 0 : index
    %c0_96 = arith.constant 0 : index
    %c0_97 = arith.constant 0 : index
    %362 = vector.load %arg14[%c0_95, %c0_96, %c0_97] : memref<6x8x128xf32, #tpu.memory_space<vmem>>, vector<6x8x128xf32>
    %363 = vector.shape_cast %362 : vector<6x8x128xf32> to vector<48x128xf32>
    %c0_98 = arith.constant 0 : index
    %c0_99 = arith.constant 0 : index
    %364 = vector.load %arg9[%c0_98, %c0_99] : memref<128x256xf32, #tpu.memory_space<vmem>>, vector<128x256xf32>
    %cst_100 = arith.constant dense<0.000000e+00> : vector<48x256xf32>
    %365 = tpu.matmul %363, %364, %cst_100 {dimension_numbers = #tpu.dot_dimension_numbers<[1], [0], [0], [1], [0, 0, 1, 1], [], []>} : vector<48x128xf32>, vector<128x256xf32>, vector<48x256xf32> -> vector<48x256xf32>
    %c0_101 = arith.constant 0 : index
    %c0_102 = arith.constant 0 : index
    %366 = vector.load %arg10[%c0_101, %c0_102] : memref<1x256xf32, #tpu.memory_space<vmem>>, vector<1x256xf32>
    %367 = vector.broadcast %366 : vector<1x256xf32> to vector<48x256xf32>
    %368 = arith.addf %365, %367 : vector<48x256xf32>
    %369 = vector.shape_cast %368 : vector<48x256xf32> to vector<6x8x256xf32>
    %c0_103 = arith.constant 0 : index
    %c0_104 = arith.constant 0 : index
    %c0_105 = arith.constant 0 : index
    %370 = vector.load %arg11[%c0_103, %c0_104, %c0_105] : memref<6x8x256xf32, #tpu.memory_space<vmem>>, vector<6x8x256xf32>
    tpu.vector_store %arg11[%c0_103, %c0_104, %c0_105], %369 {strides = array<i32>} : memref<6x8x256xf32, #tpu.memory_space<vmem>>, vector<6x8x256xf32>,
    %c0_106 = arith.constant 0 : index
    %c0_107 = arith.constant 0 : index
    %371 = vector.load %arg12[%c0_106, %c0_107] : memref<8x128xf32, #tpu.memory_space<vmem>>, vector<8x128xf32>
    tpu.vector_store %arg12[%c0_106, %c0_107], %357 {strides = array<i32>} : memref<8x128xf32, #tpu.memory_space<vmem>>, vector<8x128xf32>,
    %c0_108 = arith.constant 0 : index
    %c0_109 = arith.constant 0 : index
    %372 = vector.load %arg13[%c0_108, %c0_109] : memref<8x128xf32, #tpu.memory_space<vmem>>, vector<8x128xf32>
    tpu.vector_store %arg13[%c0_108, %c0_109], %355 {strides = array<i32>} : memref<8x128xf32, #tpu.memory_space<vmem>>, vector<8x128xf32>,
    return
  }
}

</mosaic_0001>

<llo_original>
// kernel: tpu_custom_call.1
$region0: #{tpu_custom_call.1}
  #allocation0 [shape = 'u32[]', space=smem, size = 0x4, offset = 0x4, fixed_abs, tag = 'smem constant byte address 0x4 - core index']
  #allocation1 [shape = 'u32[144,128]{1,0:T(1,128)}', space=vmem, size = 0x12000, scoped, tag = 'internal scratch']
  #allocation2 [shape = 'f32[6,8,128]{2,1,0:T(8,128)}', space=vmem, size = 0x6000, scoped, tag = 'scratch operand']
  %s0 = inlined_call_operand.hbm [shape: f32[8,128], index: 0, kind: input, shape index: {}]
  %s1 = inlined_call_operand.hbm [shape: f32[8,128], index: 1, kind: input, shape index: {}]
  %s2 = inlined_call_operand.hbm [shape: f32[8,8,128], index: 2, kind: input, shape index: {}]
  %s3 = inlined_call_operand.hbm [shape: f32[8,8,64], index: 3, kind: input, shape index: {}]
  %s4 = inlined_call_operand.vmem [shape: f32[6,8,512], index: 4, kind: input, shape index: {}]
  %s5 = inlined_call_operand.vmem [shape: f32[128,64], index: 5, kind: input, shape index: {}]
  %s6 = inlined_call_operand.vmem [shape: f32[1,1,64], index: 6, kind: input, shape index: {}]
  %s7 = inlined_call_operand.hbm [shape: f32[256,512], index: 7, kind: input, shape index: {}]
  %s8 = inlined_call_operand.vmem [shape: f32[1,512], index: 8, kind: input, shape index: {}]
  %s9 = inlined_call_operand.hbm [shape: f32[128,256], index: 9, kind: input, shape index: {}]
  %s10 = inlined_call_operand.vmem [shape: f32[1,256], index: 10, kind: input, shape index: {}]
  %s11 = inlined_call_operand.hbm [shape: f32[6,8,256], index: 11, kind: output, shape index: {0}]
  %s12 = inlined_call_operand.hbm [shape: f32[8,128], index: 12, kind: output, shape index: {1}]
  %s13 = inlined_call_operand.hbm [shape: f32[8,128], index: 13, kind: output, shape index: {2}]
  %14 = xla_tuple %s11, %s12, %s13
  %s15 = sld [smem:[#allocation0]]
  $region94: #{tpu_custom_call.1} parent=0
    _
  %s17 = ssub.s32 1, %s15
  %s18 = scalar_select 0, %s17, %s15
  $region1: #{tpu_custom_call.1} parent=0
    #allocation3 [shape = 'u8[4096]{0}', space=vmem, size = 0x1000, scoped, tag = 'input window, operand 0, single buffered']
    #allocation4 [shape = 's32[1]{0}', space=sflag, size = 0x4, scoped, tag = 'scoped memory for tpu_custom_call.1']
    #allocation5 [shape = 's32[1]{0}', space=sflag, size = 0x4, scoped, tag = 'scoped memory for tpu_custom_call.1']
    #allocation6 [shape = 'u8[4096]{0}', space=vmem, size = 0x1000, scoped, tag = 'input window, operand 1, single buffered']
    #allocation7 [shape = 's32[1]{0}', space=sflag, size = 0x4, scoped, tag = 'scoped memory for tpu_custom_call.1']
    #allocation8 [shape = 'u8[32768]{0}', space=vmem, size = 0x8000, scoped, tag = 'input window, operand 2, single buffered']
    #allocation9 [shape = 'u8[32768]{0}', space=vmem, size = 0x8000, scoped, tag = 'input window, operand 3, single buffered']
    #allocation10 [shape = 's32[1]{0}', space=sflag, size = 0x4, scoped, tag = 'scoped memory for tpu_custom_call.1']
    #allocation11 [shape = 'u8[524288]{0}', space=vmem, size = 0x80000, scoped, tag = 'input window, operand 7, single buffered']
    #allocation12 [shape = 'u8[131072]{0}', space=vmem, size = 0x20000, scoped, tag = 'input window, operand 9, single buffered']
    #allocation13 [shape = 's32[1]{0}', space=sflag, size = 0x4, scoped, tag = 'scoped memory for tpu_custom_call.1']
    #allocation14 [shape = 'u8[49152]{0}', space=vmem, size = 0xc000, scoped, tag = 'output window, operand 0, single buffered']
    #allocation15 [shape = 'u8[4096]{0}', space=vmem, size = 0x1000, scoped, tag = 'output window, operand 1, single buffered']
    #allocation16 [shape = 's32[1]{0}', space=sflag, size = 0x4, scoped, tag = 'scoped memory for tpu_custom_call.1']
    #allocation17 [shape = 'u8[4096]{0}', space=vmem, size = 0x1000, scoped, tag = 'output window, operand 2, single buffered']
    %19 = vsyncpa [#allocation4], 0
    %20 = vsyncpa [#allocation7], 0
    %21 = vsyncpa [#allocation10], 0
    %22 = vsyncpa [#allocation13], 0
    %23 = vsyncpa [#allocation5], 0
    %24 = vsyncpa [#allocation16], 0
    // Predicated region
    $region2: #{tpu_custom_call.1} parent=1 // pred_check
      _
    $region3: #{tpu_custom_call.1} parent=1 // pred_check_branch
      %26 = sbr.rel (0) target = $region5
    $region4: #{tpu_custom_call.1} parent=1 // pred_region
      %s28 = ssub.s32 128, 128
      %29 = vsyncadd [#allocation4], %s28
      %s31 = sshll.u32 [#allocation3], 4
      %s32 = int_to_ptr.vmem [resolvable:$true] %s31
      %34 = dma.hbm_to_vmem [thread:$0]  %s0, 128, %s32, [#allocation4]
    $region5: #{tpu_custom_call.1} parent=1 // pred_fallthru
      _
    // Predicated region
    $region6: #{tpu_custom_call.1} parent=1 // pred_check
      _
    $region7: #{tpu_custom_call.1} parent=1 // pred_check_branch
      %36 = sbr.rel (0) target = $region9
    $region8: #{tpu_custom_call.1} parent=1 // pred_region
      %s38 = ssub.s32 128, 128
      %39 = vsyncadd [#allocation7], %s38
      %s41 = sshll.u32 [#allocation6], 4
      %s42 = int_to_ptr.vmem [resolvable:$true] %s41
      %44 = dma.hbm_to_vmem [thread:$0]  %s1, 128, %s42, [#allocation7]
    $region9: #{tpu_custom_call.1} parent=1 // pred_fallthru
      _
    // Predicated region
    $region10: #{tpu_custom_call.1} parent=1 // pred_check
      _
    $region11: #{tpu_custom_call.1} parent=1 // pred_check_branch
      %46 = sbr.rel (0) target = $region13
    $region12: #{tpu_custom_call.1} parent=1 // pred_region
      %s48 = ssub.s32 1024, 1024
      %49 = vsyncadd [#allocation7], %s48
      %s50 = sshll.u32 [#allocation8], 4
      %s51 = int_to_ptr.vmem [resolvable:$true] %s50
      %56 = dma.hbm_to_vmem [thread:$0]  %s2, 1024, %s51, [#allocation7], 128, 128, 8
    $region13: #{tpu_custom_call.1} parent=1 // pred_fallthru
      _
    // Predicated region
    $region14: #{tpu_custom_call.1} parent=1 // pred_check
      _
    $region15: #{tpu_custom_call.1} parent=1 // pred_check_branch
      %58 = sbr.rel (0) target = $region17
    $region16: #{tpu_custom_call.1} parent=1 // pred_region
      %s60 = ssub.s32 1024, 1024
      %61 = vsyncadd [#allocation10], %s60
      %s62 = sshll.u32 [#allocation9], 4
      %s63 = int_to_ptr.vmem [resolvable:$true] %s62
      %68 = dma.hbm_to_vmem [thread:$0]  %s3, 1024, %s63, [#allocation10], 128, 128, 8
    $region17: #{tpu_custom_call.1} parent=1 // pred_fallthru
      _
    // Predicated region
    $region18: #{tpu_custom_call.1} parent=1 // pred_check
      _
    $region19: #{tpu_custom_call.1} parent=1 // pred_check_branch
      %70 = sbr.rel (0) target = $region21
    $region20: #{tpu_custom_call.1} parent=1 // pred_region
      _
    $region21: #{tpu_custom_call.1} parent=1 // pred_fallthru
      _
    // Predicated region
    $region22: #{tpu_custom_call.1} parent=1 // pred_check
      _
    $region23: #{tpu_custom_call.1} parent=1 // pred_check_branch
      %72 = sbr.rel (0) target = $region25
    $region24: #{tpu_custom_call.1} parent=1 // pred_region
      _
    $region25: #{tpu_custom_call.1} parent=1 // pred_fallthru
      _
    // Predicated region
    $region26: #{tpu_custom_call.1} parent=1 // pred_check
      _
    $region27: #{tpu_custom_call.1} parent=1 // pred_check_branch
      %74 = sbr.rel (0) target = $region29
    $region28: #{tpu_custom_call.1} parent=1 // pred_region
      _
    $region29: #{tpu_custom_call.1} parent=1 // pred_fallthru
      _
    // Predicated region
    $region30: #{tpu_custom_call.1} parent=1 // pred_check
      _
    $region31: #{tpu_custom_call.1} parent=1 // pred_check_branch
      %76 = sbr.rel (0) target = $region33
    $region32: #{tpu_custom_call.1} parent=1 // pred_region
      %s78 = ssub.s32 16384, 16384
      %79 = vsyncadd [#allocation10], %s78
      %s80 = sshll.u32 [#allocation11], 4
      %s81 = int_to_ptr.vmem [resolvable:$true] %s80
      %86 = dma.hbm_to_vmem [thread:$0]  %s7, 16384, %s81, [#allocation10], 512, 512, 32
    $region33: #{tpu_custom_call.1} parent=1 // pred_fallthru
      _
    // Predicated region
    $region34: #{tpu_custom_call.1} parent=1 // pred_check
      _
    $region35: #{tpu_custom_call.1} parent=1 // pred_check_branch
      %88 = sbr.rel (0) target = $region37
    $region36: #{tpu_custom_call.1} parent=1 // pred_region
      _
    $region37: #{tpu_custom_call.1} parent=1 // pred_fallthru
      _
    // Predicated region
    $region38: #{tpu_custom_call.1} parent=1 // pred_check
      _
    $region39: #{tpu_custom_call.1} parent=1 // pred_check_branch
      %90 = sbr.rel (0) target = $region41
    $region40: #{tpu_custom_call.1} parent=1 // pred_region
      %s92 = ssub.s32 4096, 4096
      %93 = vsyncadd [#allocation13], %s92
      %s94 = sshll.u32 [#allocation12], 4
      %s95 = int_to_ptr.vmem [resolvable:$true] %s94
      %100 = dma.hbm_to_vmem [thread:$0]  %s9, 4096, %s95, [#allocation13], 256, 256, 16
    $region41: #{tpu_custom_call.1} parent=1 // pred_fallthru
      _
    // Predicated region
    $region42: #{tpu_custom_call.1} parent=1 // pred_check
      _
    $region43: #{tpu_custom_call.1} parent=1 // pred_check_branch
      %102 = sbr.rel (0) target = $region45
    $region44: #{tpu_custom_call.1} parent=1 // pred_region
      _
    $region45: #{tpu_custom_call.1} parent=1 // pred_fallthru
      _
    // Predicated region
    $region46: #{tpu_custom_call.1} parent=1 // pred_check
      _
    $region47: #{tpu_custom_call.1} parent=1 // pred_check_branch
      %104 = sbr.rel (0) target = $region49
    $region48: #{tpu_custom_call.1} parent=1 // pred_region
      %105 = dma.done [#allocation4], 128
    $region49: #{tpu_custom_call.1} parent=1 // pred_fallthru
      _
    // Predicated region
    $region50: #{tpu_custom_call.1} parent=1 // pred_check
      _
    $region51: #{tpu_custom_call.1} parent=1 // pred_check_branch
      %107 = sbr.rel (0) target = $region53
    $region52: #{tpu_custom_call.1} parent=1 // pred_region
      %108 = dma.done [#allocation7], 128
    $region53: #{tpu_custom_call.1} parent=1 // pred_fallthru
      _
    // Predicated region
    $region54: #{tpu_custom_call.1} parent=1 // pred_check
      _
    $region55: #{tpu_custom_call.1} parent=1 // pred_check_branch
      %110 = sbr.rel (0) target = $region57
    $region56: #{tpu_custom_call.1} parent=1 // pred_region
      %111 = dma.done [#allocation7], 1024
    $region57: #{tpu_custom_call.1} parent=1 // pred_fallthru
      _
    // Predicated region
    $region58: #{tpu_custom_call.1} parent=1 // pred_check
      _
    $region59: #{tpu_custom_call.1} parent=1 // pred_check_branch
      %113 = sbr.rel (0) target = $region61
    $region60: #{tpu_custom_call.1} parent=1 // pred_region
      %114 = dma.done [#allocation10], 1024
    $region61: #{tpu_custom_call.1} parent=1 // pred_fallthru
      _
    // Predicated region
    $region62: #{tpu_custom_call.1} parent=1 // pred_check
      _
    $region63: #{tpu_custom_call.1} parent=1 // pred_check_branch
      %116 = sbr.rel (0) target = $region65
    $region64: #{tpu_custom_call.1} parent=1 // pred_region
      %117 = dma.done [#allocation10], 16384
    $region65: #{tpu_custom_call.1} parent=1 // pred_fallthru
      _
    // Predicated region
    $region66: #{tpu_custom_call.1} parent=1 // pred_check
      _
    $region67: #{tpu_custom_call.1} parent=1 // pred_check_branch
      %119 = sbr.rel (0) target = $region69
    $region68: #{tpu_custom_call.1} parent=1 // pred_region
      %120 = dma.done [#allocation13], 4096
    $region69: #{tpu_custom_call.1} parent=1 // pred_fallthru
      _
    %v121 = vld [vmem:[#allocation8] sm:$0xff]
    %v122 = vld [vmem:[#allocation8 + $0x8] sm:$0xff]
    %v123 = vld [vmem:[#allocation8 + $0x10] sm:$0xff]
    %v124 = vld [vmem:[#allocation8 + $0x18] sm:$0xff]
    %v125 = vld [vmem:[#allocation8 + $0x20] sm:$0xff]
    %v126 = vld [vmem:[#allocation8 + $0x28] sm:$0xff]
    %v127 = vld [vmem:[#allocation8 + $0x30] sm:$0xff]
    %v128 = vld [vmem:[#allocation8 + $0x38] sm:$0xff]
    %v129 = vld [vmem:[#allocation9] sm:$0xff]
    %v130 = vld [vmem:[#allocation9 + $0x8] sm:$0xff]
    %v131 = vld [vmem:[#allocation9 + $0x10] sm:$0xff]
    %v132 = vld [vmem:[#allocation9 + $0x18] sm:$0xff]
    %v133 = vld [vmem:[#allocation9 + $0x20] sm:$0xff]
    %v134 = vld [vmem:[#allocation9 + $0x28] sm:$0xff]
    %v135 = vld [vmem:[#allocation9 + $0x30] sm:$0xff]
    %v136 = vld [vmem:[#allocation9 + $0x38] sm:$0xff]
    %v137 = vld [vmem:[%s6] sm:$0x1]
    %v138 = vld [vmem:[%s5] sm:$0xff]
    %v139 = vld [vmem:[%s5 + $0x8] sm:$0xff]
    %v140 = vld [vmem:[%s5 + $0x10] sm:$0xff]
    %v141 = vld [vmem:[%s5 + $0x18] sm:$0xff]
    %v142 = vld [vmem:[%s5 + $0x20] sm:$0xff]
    %v143 = vld [vmem:[%s5 + $0x28] sm:$0xff]
    %v144 = vld [vmem:[%s5 + $0x30] sm:$0xff]
    %v145 = vld [vmem:[%s5 + $0x38] sm:$0xff]
    %v146 = vld [vmem:[%s5 + $0x40] sm:$0xff]
    %v147 = vld [vmem:[%s5 + $0x48] sm:$0xff]
    %v148 = vld [vmem:[%s5 + $0x50] sm:$0xff]
    %v149 = vld [vmem:[%s5 + $0x58] sm:$0xff]
    %v150 = vld [vmem:[%s5 + $0x60] sm:$0xff]
    %v151 = vld [vmem:[%s5 + $0x68] sm:$0xff]
    %v152 = vld [vmem:[%s5 + $0x70] sm:$0xff]
    %v153 = vld [vmem:[%s5 + $0x78] sm:$0xff]
    %v154 = vld [vmem:[#allocation11] sm:$0xff]
    %v155 = vld [vmem:[#allocation11 + $0x8] sm:$0xff]
    %v156 = vld [vmem:[#allocation11 + $0x10] sm:$0xff]
    %v157 = vld [vmem:[#allocation11 + $0x18] sm:$0xff]
    %v158 = vld [vmem:[#allocation11 + $0x20] sm:$0xff]
    %v159 = vld [vmem:[#allocation11 + $0x28] sm:$0xff]
    %v160 = vld [vmem:[#allocation11 + $0x30] sm:$0xff]
    %v161 = vld [vmem:[#allocation11 + $0x38] sm:$0xff]
    %v162 = vld [vmem:[#allocation11 + $0x40] sm:$0xff]
    %v163 = vld [vmem:[#allocation11 + $0x48] sm:$0xff]
    %v164 = vld [vmem:[#allocation11 + $0x50] sm:$0xff]
    %v165 = vld [vmem:[#allocation11 + $0x58] sm:$0xff]
    %v166 = vld [vmem:[#allocation11 + $0x60] sm:$0xff]
    %v167 = vld [vmem:[#allocation11 + $0x68] sm:$0xff]
    %v168 = vld [vmem:[#allocation11 + $0x70] sm:$0xff]
    %v169 = vld [vmem:[#allocation11 + $0x78] sm:$0xff]
    %v170 = vld [vmem:[#allocation11 + $0x80] sm:$0xff]
    %v171 = vld [vmem:[#allocation11 + $0x88] sm:$0xff]
    %v172 = vld [vmem:[#allocation11 + $0x90] sm:$0xff]
    %v173 = vld [vmem:[#allocation11 + $0x98] sm:$0xff]
    %v174 = vld [vmem:[#allocation11 + $0xa0] sm:$0xff]
    %v175 = vld [vmem:[#allocation11 + $0xa8] sm:$0xff]
    %v176 = vld [vmem:[#allocation11 + $0xb0] sm:$0xff]
    %v177 = vld [vmem:[#allocation11 + $0xb8] sm:$0xff]
    %v178 = vld [vmem:[#allocation11 + $0xc0] sm:$0xff]
    %v179 = vld [vmem:[#allocation11 + $0xc8] sm:$0xff]
    %v180 = vld [vmem:[#allocation11 + $0xd0] sm:$0xff]
    %v181 = vld [vmem:[#allocation11 + $0xd8] sm:$0xff]
    %v182 = vld [vmem:[#allocation11 + $0xe0] sm:$0xff]
    %v183 = vld [vmem:[#allocation11 + $0xe8] sm:$0xff]
    %v184 = vld [vmem:[#allocation11 + $0xf0] sm:$0xff]
    %v185 = vld [vmem:[#allocation11 + $0xf8] sm:$0xff]
    %v186 = vld [vmem:[#allocation11 + $0x100] sm:$0xff]
    %v187 = vld [vmem:[#allocation11 + $0x108] sm:$0xff]
    %v188 = vld [vmem:[#allocation11 + $0x110] sm:$0xff]
    %v189 = vld [vmem:[#allocation11 + $0x118] sm:$0xff]
    %v190 = vld [vmem:[#allocation11 + $0x120] sm:$0xff]
    %v191 = vld [vmem:[#allocation11 + $0x128] sm:$0xff]
    %v192 = vld [vmem:[#allocation11 + $0x130] sm:$0xff]
    %v193 = vld [vmem:[#allocation11 + $0x138] sm:$0xff]
    %v194 = vld [vmem:[#allocation11 + $0x140] sm:$0xff]
    %v195 = vld [vmem:[#allocation11 + $0x148] sm:$0xff]
    %v196 = vld [vmem:[#allocation11 + $0x150] sm:$0xff]
    %v197 = vld [vmem:[#allocation11 + $0x158] sm:$0xff]
    %v198 = vld [vmem:[#allocation11 + $0x160] sm:$0xff]
    %v199 = vld [vmem:[#allocation11 + $0x168] sm:$0xff]
    %v200 = vld [vmem:[#allocation11 + $0x170] sm:$0xff]
    %v201 = vld [vmem:[#allocation11 + $0x178] sm:$0xff]
    %v202 = vld [vmem:[#allocation11 + $0x180] sm:$0xff]
    %v203 = vld [vmem:[#allocation11 + $0x188] sm:$0xff]
    %v204 = vld [vmem:[#allocation11 + $0x190] sm:$0xff]
    %v205 = vld [vmem:[#allocation11 + $0x198] sm:$0xff]
    %v206 = vld [vmem:[#allocation11 + $0x1a0] sm:$0xff]
    %v207 = vld [vmem:[#allocation11 + $0x1a8] sm:$0xff]
    %v208 = vld [vmem:[#allocation11 + $0x1b0] sm:$0xff]
    %v209 = vld [vmem:[#allocation11 + $0x1b8] sm:$0xff]
    %v210 = vld [vmem:[#allocation11 + $0x1c0] sm:$0xff]
    %v211 = vld [vmem:[#allocation11 + $0x1c8] sm:$0xff]
    %v212 = vld [vmem:[#allocation11 + $0x1d0] sm:$0xff]
    %v213 = vld [vmem:[#allocation11 + $0x1d8] sm:$0xff]
    %v214 = vld [vmem:[#allocation11 + $0x1e0] sm:$0xff]
    %v215 = vld [vmem:[#allocation11 + $0x1e8] sm:$0xff]
    %v216 = vld [vmem:[#allocation11 + $0x1f0] sm:$0xff]
    %v217 = vld [vmem:[#allocation11 + $0x1f8] sm:$0xff]
    %v218 = vld [vmem:[#allocation11 + $0x200] sm:$0xff]
    %v219 = vld [vmem:[#allocation11 + $0x208] sm:$0xff]
    %v220 = vld [vmem:[#allocation11 + $0x210] sm:$0xff]
    %v221 = vld [vmem:[#allocation11 + $0x218] sm:$0xff]
    %v222 = vld [vmem:[#allocation11 + $0x220] sm:$0xff]
    %v223 = vld [vmem:[#allocation11 + $0x228] sm:$0xff]
    %v224 = vld [vmem:[#allocation11 + $0x230] sm:$0xff]
    %v225 = vld [vmem:[#allocation11 + $0x238] sm:$0xff]
    %v226 = vld [vmem:[#allocation11 + $0x240] sm:$0xff]
    %v227 = vld [vmem:[#allocation11 + $0x248] sm:$0xff]
    %v228 = vld [vmem:[#allocation11 + $0x250] sm:$0xff]
    %v229 = vld [vmem:[#allocation11 + $0x258] sm:$0xff]
    %v230 = vld [vmem:[#allocation11 + $0x260] sm:$0xff]
    %v231 = vld [vmem:[#allocation11 + $0x268] sm:$0xff]
    %v232 = vld [vmem:[#allocation11 + $0x270] sm:$0xff]
    %v233 = vld [vmem:[#allocation11 + $0x278] sm:$0xff]
    %v234 = vld [vmem:[#allocation11 + $0x280] sm:$0xff]
    %v235 = vld [vmem:[#allocation11 + $0x288] sm:$0xff]
    %v236 = vld [vmem:[#allocation11 + $0x290] sm:$0xff]
    %v237 = vld [vmem:[#allocation11 + $0x298] sm:$0xff]
    %v238 = vld [vmem:[#allocation11 + $0x2a0] sm:$0xff]
    %v239 = vld [vmem:[#allocation11 + $0x2a8] sm:$0xff]
    %v240 = vld [vmem:[#allocation11 + $0x2b0] sm:$0xff]
    %v241 = vld [vmem:[#allocation11 + $0x2b8] sm:$0xff]
    %v242 = vld [vmem:[#allocation11 + $0x2c0] sm:$0xff]
    %v243 = vld [vmem:[#allocation11 + $0x2c8] sm:$0xff]
    %v244 = vld [vmem:[#allocation11 + $0x2d0] sm:$0xff]
    %v245 = vld [vmem:[#allocation11 + $0x2d8] sm:$0xff]
    %v246 = vld [vmem:[#allocation11 + $0x2e0] sm:$0xff]
    %v247 = vld [vmem:[#allocation11 + $0x2e8] sm:$0xff]
    %v248 = vld [vmem:[#allocation11 + $0x2f0] sm:$0xff]
    %v249 = vld [vmem:[#allocation11 + $0x2f8] sm:$0xff]
    %v250 = vld [vmem:[#allocation11 + $0x300] sm:$0xff]
    %v251 = vld [vmem:[#allocation11 + $0x308] sm:$0xff]
    %v252 = vld [vmem:[#allocation11 + $0x310] sm:$0xff]
    %v253 = vld [vmem:[#allocation11 + $0x318] sm:$0xff]
    %v254 = vld [vmem:[#allocation11 + $0x320] sm:$0xff]
    %v255 = vld [vmem:[#allocation11 + $0x328] sm:$0xff]
    %v256 = vld [vmem:[#allocation11 + $0x330] sm:$0xff]
    %v257 = vld [vmem:[#allocation11 + $0x338] sm:$0xff]
    %v258 = vld [vmem:[#allocation11 + $0x340] sm:$0xff]
    %v259 = vld [vmem:[#allocation11 + $0x348] sm:$0xff]
    %v260 = vld [vmem:[#allocation11 + $0x350] sm:$0xff]
    %v261 = vld [vmem:[#allocation11 + $0x358] sm:$0xff]
    %v262 = vld [vmem:[#allocation11 + $0x360] sm:$0xff]
    %v263 = vld [vmem:[#allocation11 + $0x368] sm:$0xff]
    %v264 = vld [vmem:[#allocation11 + $0x370] sm:$0xff]
    %v265 = vld [vmem:[#allocation11 + $0x378] sm:$0xff]
    %v266 = vld [vmem:[#allocation11 + $0x380] sm:$0xff]
    %v267 = vld [vmem:[#allocation11 + $0x388] sm:$0xff]
    %v268 = vld [vmem:[#allocation11 + $0x390] sm:$0xff]
    %v269 = vld [vmem:[#allocation11 + $0x398] sm:$0xff]
    %v270 = vld [vmem:[#allocation11 + $0x3a0] sm:$0xff]
    %v271 = vld [vmem:[#allocation11 + $0x3a8] sm:$0xff]
    %v272 = vld [vmem:[#allocation11 + $0x3b0] sm:$0xff]
    %v273 = vld [vmem:[#allocation11 + $0x3b8] sm:$0xff]
    %v274 = vld [vmem:[#allocation11 + $0x3c0] sm:$0xff]
    %v275 = vld [vmem:[#allocation11 + $0x3c8] sm:$0xff]
    %v276 = vld [vmem:[#allocation11 + $0x3d0] sm:$0xff]
    %v277 = vld [vmem:[#allocation11 + $0x3d8] sm:$0xff]
    %v278 = vld [vmem:[#allocation11 + $0x3e0] sm:$0xff]
    %v279 = vld [vmem:[#allocation11 + $0x3e8] sm:$0xff]
    %v280 = vld [vmem:[#allocation11 + $0x3f0] sm:$0xff]
    %v281 = vld [vmem:[#allocation11 + $0x3f8] sm:$0xff]
    %v282 = vld [vmem:[%s8] sm:$0xf]
    %v283 = vld [vmem:[#allocation3] sm:$0xff]
    %v284 = vld [vmem:[#allocation6] sm:$0xff]
    %285 = vmatprep.subr.mxu0 0.0
    %286 = vmatpush1.msra.mxu0 %v153
    %287 = vmatprep.subr.mxu0 0.0
    %288 = vmatpush1.msra.mxu0 %v152
    %289 = vmatprep.subr.mxu0 0.0
    %290 = vmatpush1.msra.mxu0 %v151
    %291 = vmatprep.subr.mxu0 0.0
    %292 = vmatpush1.msra.mxu0 %v150
    %293 = vmatprep.subr.mxu0 0.0
    %294 = vmatpush1.msra.mxu0 %v149
    %295 = vmatprep.subr.mxu0 0.0
    %296 = vmatpush1.msra.mxu0 %v148
    %297 = vmatprep.subr.mxu0 0.0
    %298 = vmatpush1.msra.mxu0 %v147
    %299 = vmatprep.subr.mxu0 0.0
    %300 = vmatpush1.msra.mxu0 %v146
    %301 = vmatprep.subr.mxu0 0.0
    %302 = vmatpush1.msra.mxu0 %v145
    %303 = vmatprep.subr.mxu0 0.0
    %304 = vmatpush1.msra.mxu0 %v144
    %305 = vmatprep.subr.mxu0 0.0
    %306 = vmatpush1.msra.mxu0 %v143
    %307 = vmatprep.subr.mxu0 0.0
    %308 = vmatpush1.msra.mxu0 %v142
    %309 = vmatprep.subr.mxu0 0.0
    %310 = vmatpush1.msra.mxu0 %v141
    %311 = vmatprep.subr.mxu0 0.0
    %312 = vmatpush1.msra.mxu0 %v140
    %313 = vmatprep.subr.mxu0 0.0
    %314 = vmatpush1.msra.mxu0 %v139
    %315 = vmatprep.subr.mxu0 0.0
    %316 = vmatpush1.msra.mxu0 %v138
    %317 = vmatprep.subr.mxu0 0.0
    %318 = vmatpush2.msra.mxu0 0.0
    %319 = vmatprep.subr.mxu0 0.0
    %320 = vmatpush2.msra.mxu0 0.0
    %321 = vmatprep.subr.mxu0 0.0
    %322 = vmatpush2.msra.mxu0 0.0
    %323 = vmatprep.subr.mxu0 0.0
    %324 = vmatpush2.msra.mxu0 0.0
    %325 = vmatprep.subr.mxu0 0.0
    %326 = vmatpush2.msra.mxu0 0.0
    %327 = vmatprep.subr.mxu0 0.0
    %328 = vmatpush2.msra.mxu0 0.0
    %329 = vmatprep.subr.mxu0 0.0
    %330 = vmatpush2.msra.mxu0 0.0
    %331 = vmatprep.subr.mxu0 0.0
    %332 = vmatpush2.msra.mxu0 0.0
    %333 = vmatprep.subr.mxu0 0.0
    %334 = vmatpush2.msra.mxu0 0.0
    %335 = vmatprep.subr.mxu0 0.0
    %336 = vmatpush2.msra.mxu0 0.0
    %337 = vmatprep.subr.mxu0 0.0
    %338 = vmatpush2.msra.mxu0 0.0
    %339 = vmatprep.subr.mxu0 0.0
    %340 = vmatpush2.msra.mxu0 0.0
    %341 = vmatprep.subr.mxu0 0.0
    %342 = vmatpush2.msra.mxu0 0.0
    %343 = vmatprep.subr.mxu0 0.0
    %344 = vmatpush2.msra.mxu0 0.0
    %345 = vmatprep.subr.mxu0 0.0
    %346 = vmatpush2.msra.mxu0 0.0
    %347 = vmatprep.subr.mxu0 0.0
    %348 = vmatpush2.msra.mxu0 0.0
    %349 = vmatprep.mubr.f32.mxu0 0.0
    %350 = vmatmul.mubr.f32.gmra.mxu0 %v284
    %v351 = vpop.f32.mrf.mxu0
    %v352 = vadd.f32 0.0, %v351
    %v353 = vpop.f32.mrf.mxu0
    %354 = vdwg.mxu0
    %v356 = vcombine.high %v352, %v352
    %v358 = vunpack.c.l.s4 1966171168
    %v359 = vunpack.c.0.s8 %v358
    %v360 = vlaneseq
    %v361 = vshrl.u32 %v360, 7
    %v362 = vsub.s32 %v359, %v361
    %v363 = vrot.slane %v352, %v362
    %v365 = vunpack.c.l.s4 1966171168
    %v366 = vunpack.c.0.s8 %v365
    %v367 = vlaneseq
    %v368 = vshrl.u32 %v367, 7
    %v369 = vsub.s32 %v366, %v368
    %v370 = vrot.slane %v356, %v369
    %v371 = vcombine.high %v363, %v363
    %v372 = vcombine.high %v370, %v370
    %v374 = vunpack.c.l.s4 1966171168
    %v375 = vunpack.c.0.s8 %v374
    %v376 = vlaneseq
    %v377 = vshrl.u32 %v376, 7
    %v378 = vsub.s32 %v375, %v377
    %v379 = vrot.slane %v363, %v378
    %v381 = vunpack.c.l.s4 1966171168
    %v382 = vunpack.c.0.s8 %v381
    %v383 = vlaneseq
    %v384 = vshrl.u32 %v383, 7
    %v385 = vsub.s32 %v382, %v384
    %v386 = vrot.slane %v370, %v385
    %v388 = vunpack.c.l.s4 1966171168
    %v389 = vunpack.c.0.s8 %v388
    %v390 = vlaneseq
    %v391 = vshrl.u32 %v390, 7
    %v392 = vsub.s32 %v389, %v391
    %v393 = vrot.slane %v371, %v392
    %v395 = vunpack.c.l.s4 1966171168
    %v396 = vunpack.c.0.s8 %v395
    %v397 = vlaneseq
    %v398 = vshrl.u32 %v397, 7
    %v399 = vsub.s32 %v396, %v398
    %v400 = vrot.slane %v372, %v399
    %v401 = vcombine.high %v379, %v379
    %v402 = vcombine.high %v386, %v386
    %v403 = vcombine.high %v393, %v393
    %v404 = vcombine.high %v400, %v400
    %v405 = vlaneseq
    %v406 = vshrl.u32 %v405, 7
    %v407 = vsub.s32 0, %v406
    %v408 = vrot.slane %v379, %v407
    %v409 = vlaneseq
    %v410 = vshrl.u32 %v409, 7
    %v411 = vsub.s32 0, %v410
    %v412 = vrot.slane %v393, %v411
    %v413 = vlaneseq
    %v414 = vshrl.u32 %v413, 7
    %v415 = vsub.s32 0, %v414
    %v416 = vrot.slane %v401, %v415
    %v417 = vlaneseq
    %v418 = vshrl.u32 %v417, 7
    %v419 = vsub.s32 0, %v418
    %v420 = vrot.slane %v403, %v419
    %v421 = vlaneseq
    %v422 = vshrl.u32 %v421, 7
    %v423 = vsub.s32 0, %v422
    %v424 = vrot.slane %v386, %v423
    %v425 = vlaneseq
    %v426 = vshrl.u32 %v425, 7
    %v427 = vsub.s32 0, %v426
    %v428 = vrot.slane %v400, %v427
    %v429 = vlaneseq
    %v430 = vshrl.u32 %v429, 7
    %v431 = vsub.s32 0, %v430
    %v432 = vrot.slane %v402, %v431
    %v433 = vlaneseq
    %v434 = vshrl.u32 %v433, 7
    %v435 = vsub.s32 0, %v434
    %v436 = vrot.slane %v404, %v435
    %v445 = vadd.f32 %v129, %v408
    %v446 = vadd.f32 %v130, %v412
    %v447 = vadd.f32 %v131, %v416
    %v448 = vadd.f32 %v132, %v420
    %v449 = vadd.f32 %v133, %v424
    %v450 = vadd.f32 %v134, %v428
    %v451 = vadd.f32 %v135, %v432
    %v452 = vadd.f32 %v136, %v436
    %v453 = vtanh.pop %v445
    %v454 = vtanh.pop %v446
    %v455 = vtanh.pop %v447
    %v456 = vtanh.pop %v448
    %v457 = vtanh.pop %v449
    %v458 = vtanh.pop %v450
    %v459 = vtanh.pop %v451
    %v460 = vtanh.pop %v452
    %v462 = vlaneseq
    %v463 = vshrl.u32 %v462, 7
    %v464 = vsub.s32 0, %v463
    %v465 = vrot.slane %v137, %v464
    %v467 = vmul.f32 %v453, %v465
    %v468 = vmul.f32 %v454, %v465
    %v469 = vmul.f32 %v455, %v465
    %v470 = vmul.f32 %v456, %v465
    %v471 = vmul.f32 %v457, %v465
    %v472 = vmul.f32 %v458, %v465
    %v473 = vmul.f32 %v459, %v465
    %v474 = vmul.f32 %v460, %v465
    %vm475 = vcmask 523264
    %v476 = vsel %vm475, %v467, 0.0
    %477 = vadd.xlane.f32.xlu0 %v476
    %v478 = vpop.xlane.xlu0 %477
    %v479 = vsel %vm475, %v468, 0.0
    %480 = vadd.xlane.f32.xlu0 %v479
    %v481 = vpop.xlane.xlu0 %480
    %v482 = vsel %vm475, %v469, 0.0
    %483 = vadd.xlane.f32.xlu0 %v482
    %v484 = vpop.xlane.xlu0 %483
    %v485 = vsel %vm475, %v470, 0.0
    %486 = vadd.xlane.f32.xlu0 %v485
    %v487 = vpop.xlane.xlu0 %486
    %v488 = vsel %vm475, %v471, 0.0
    %489 = vadd.xlane.f32.xlu0 %v488
    %v490 = vpop.xlane.xlu0 %489
    %v491 = vsel %vm475, %v472, 0.0
    %492 = vadd.xlane.f32.xlu0 %v491
    %v493 = vpop.xlane.xlu0 %492
    %v494 = vsel %vm475, %v473, 0.0
    %495 = vadd.xlane.f32.xlu0 %v494
    %v496 = vpop.xlane.xlu0 %495
    %v497 = vsel %vm475, %v474, 0.0
    %498 = vadd.xlane.f32.xlu0 %v497
    %v499 = vpop.xlane.xlu0 %498
    %v508 = vlaneseq
    %v509 = vand.u32 %v508, 127
    %v510 = vlaneseq
    %v511 = vshrl.u32 %v510, 7
    %v512 = vsub.s32 %v509, %v511
    %v513 = vrot.slane %v478, %v512
    %v514 = vlaneseq
    %v515 = vshrl.u32 %v514, 7
    %v516 = vsub.s32 %v509, %v515
    %v517 = vrot.slane %v481, %v516
    %v518 = vlaneseq
    %v519 = vshrl.u32 %v518, 7
    %v520 = vsub.s32 %v509, %v519
    %v521 = vrot.slane %v484, %v520
    %v522 = vlaneseq
    %v523 = vshrl.u32 %v522, 7
    %v524 = vsub.s32 %v509, %v523
    %v525 = vrot.slane %v487, %v524
    %v526 = vlaneseq
    %v527 = vshrl.u32 %v526, 7
    %v528 = vsub.s32 %v509, %v527
    %v529 = vrot.slane %v490, %v528
    %v530 = vlaneseq
    %v531 = vshrl.u32 %v530, 7
    %v532 = vsub.s32 %v509, %v531
    %v533 = vrot.slane %v493, %v532
    %v534 = vlaneseq
    %v535 = vshrl.u32 %v534, 7
    %v536 = vsub.s32 %v509, %v535
    %v537 = vrot.slane %v496, %v536
    %v538 = vlaneseq
    %v539 = vshrl.u32 %v538, 7
    %v540 = vsub.s32 %v509, %v539
    %v541 = vrot.slane %v499, %v540
    %vm542 = vcmask 1041409
    %v543 = vsel %vm542, %v517, %v513
    %vm544 = vcmask 1042434
    %v545 = vsel %vm544, %v521, %v543
    %vm546 = vcmask 1043459
    %v547 = vsel %vm546, %v525, %v545
    %vm548 = vcmask 1044484
    %v549 = vsel %vm548, %v529, %v547
    %vm550 = vcmask 1045509
    %v551 = vsel %vm550, %v533, %v549
    %vm552 = vcmask 1046534
    %v553 = vsel %vm552, %v537, %v551
    %vm554 = vcmask 1047559
    %v555 = vsel %vm554, %v541, %v553
    %vm557 = vcmask 64512
    %v558 = vsel %vm557, %v555, -inf
    %559 = vmax.xlane.f32.xlu0 %v558
    %v560 = vpop.xlane.xlu0 %559
    %v562 = vlaneseq
    %v563 = vshrl.u32 %v562, 7
    %v564 = vsub.s32 0, %v563
    %v565 = vrot.slane %v560, %v564
    %v566 = vlaneseq
    %v567 = vshrl.u32 %v566, 7
    %v568 = vsub.s32 1, %v567
    %v569 = vrot.slane %v560, %v568
    %v570 = vlaneseq
    %v571 = vshrl.u32 %v570, 7
    %v572 = vsub.s32 2, %v571
    %v573 = vrot.slane %v560, %v572
    %v574 = vlaneseq
    %v575 = vshrl.u32 %v574, 7
    %v576 = vsub.s32 3, %v575
    %v577 = vrot.slane %v560, %v576
    %v578 = vlaneseq
    %v579 = vshrl.u32 %v578, 7
    %v580 = vsub.s32 4, %v579
    %v581 = vrot.slane %v560, %v580
    %v582 = vlaneseq
    %v583 = vshrl.u32 %v582, 7
    %v584 = vsub.s32 5, %v583
    %v585 = vrot.slane %v560, %v584
    %v586 = vlaneseq
    %v587 = vshrl.u32 %v586, 7
    %v588 = vsub.s32 6, %v587
    %v589 = vrot.slane %v560, %v588
    %v590 = vlaneseq
    %v591 = vshrl.u32 %v590, 7
    %v592 = vsub.s32 7, %v591
    %v593 = vrot.slane %v560, %v592
    %v602 = vsub.f32 %v478, %v565
    %v603 = vsub.f32 %v481, %v569
    %v604 = vsub.f32 %v484, %v573
    %v605 = vsub.f32 %v487, %v577
    %v606 = vsub.f32 %v490, %v581
    %v607 = vsub.f32 %v493, %v585
    %v608 = vsub.f32 %v496, %v589
    %v609 = vsub.f32 %v499, %v593
    %v610 = vmul.f32 %v602, 1.442695
    %v611 = vpow.pop %v610
    %v612 = vmul.f32 %v603, 1.442695
    %v613 = vpow.pop %v612
    %v614 = vmul.f32 %v604, 1.442695
    %v615 = vpow.pop %v614
    %v616 = vmul.f32 %v605, 1.442695
    %v617 = vpow.pop %v616
    %v618 = vmul.f32 %v606, 1.442695
    %v619 = vpow.pop %v618
    %v620 = vmul.f32 %v607, 1.442695
    %v621 = vpow.pop %v620
    %v622 = vmul.f32 %v608, 1.442695
    %v623 = vpow.pop %v622
    %v624 = vmul.f32 %v609, 1.442695
    %v625 = vpow.pop %v624
    %634 = vset.pattern.permute.xlu0 0
    %635 = vperm.xlu0 %634, %v611
    %v636 = vpop.permute.xlu0 %635
    %637 = vset.pattern.permute.xlu0 0
    %638 = vperm.xlu0 %637, %v613
    %v639 = vpop.permute.xlu0 %638
    %640 = vset.pattern.permute.xlu0 0
    %641 = vperm.xlu0 %640, %v615
    %v642 = vpop.permute.xlu0 %641
    %643 = vset.pattern.permute.xlu0 0
    %644 = vperm.xlu0 %643, %v617
    %v645 = vpop.permute.xlu0 %644
    %646 = vset.pattern.permute.xlu0 0
    %647 = vperm.xlu0 %646, %v619
    %v648 = vpop.permute.xlu0 %647
    %649 = vset.pattern.permute.xlu0 0
    %650 = vperm.xlu0 %649, %v621
    %v651 = vpop.permute.xlu0 %650
    %652 = vset.pattern.permute.xlu0 0
    %653 = vperm.xlu0 %652, %v623
    %v654 = vpop.permute.xlu0 %653
    %655 = vset.pattern.permute.xlu0 0
    %656 = vperm.xlu0 %655, %v625
    %v657 = vpop.permute.xlu0 %656
    %v658 = vlaneseq
    %v659 = vshrl.u32 %v658, 7
    %v660 = vsub.s32 %v509, %v659
    %v661 = vrot.slane %v636, %v660
    %v662 = vlaneseq
    %v663 = vshrl.u32 %v662, 7
    %v664 = vsub.s32 %v509, %v663
    %v665 = vrot.slane %v639, %v664
    %v666 = vlaneseq
    %v667 = vshrl.u32 %v666, 7
    %v668 = vsub.s32 %v509, %v667
    %v669 = vrot.slane %v642, %v668
    %v670 = vlaneseq
    %v671 = vshrl.u32 %v670, 7
    %v672 = vsub.s32 %v509, %v671
    %v673 = vrot.slane %v645, %v672
    %v674 = vlaneseq
    %v675 = vshrl.u32 %v674, 7
    %v676 = vsub.s32 %v509, %v675
    %v677 = vrot.slane %v648, %v676
    %v678 = vlaneseq
    %v679 = vshrl.u32 %v678, 7
    %v680 = vsub.s32 %v509, %v679
    %v681 = vrot.slane %v651, %v680
    %v682 = vlaneseq
    %v683 = vshrl.u32 %v682, 7
    %v684 = vsub.s32 %v509, %v683
    %v685 = vrot.slane %v654, %v684
    %v686 = vlaneseq
    %v687 = vshrl.u32 %v686, 7
    %v688 = vsub.s32 %v509, %v687
    %v689 = vrot.slane %v657, %v688
    %v690 = vsel %vm542, %v665, %v661
    %v691 = vsel %vm544, %v669, %v690
    %v692 = vsel %vm546, %v673, %v691
    %v693 = vsel %vm548, %v677, %v692
    %v694 = vsel %vm550, %v681, %v693
    %v695 = vsel %vm552, %v685, %v694
    %v696 = vsel %vm554, %v689, %v695
    %v698 = vsel %vm557, %v696, 0.0
    %699 = vadd.xlane.f32.xlu0 %v698
    %v700 = vpop.xlane.xlu0 %699
    %v701 = vrcp.pop %v700
    %v703 = vlaneseq
    %v704 = vshrl.u32 %v703, 7
    %v705 = vsub.s32 0, %v704
    %v706 = vrot.slane %v701, %v705
    %v707 = vlaneseq
    %v708 = vshrl.u32 %v707, 7
    %v709 = vsub.s32 1, %v708
    %v710 = vrot.slane %v701, %v709
    %v711 = vlaneseq
    %v712 = vshrl.u32 %v711, 7
    %v713 = vsub.s32 2, %v712
    %v714 = vrot.slane %v701, %v713
    %v715 = vlaneseq
    %v716 = vshrl.u32 %v715, 7
    %v717 = vsub.s32 3, %v716
    %v718 = vrot.slane %v701, %v717
    %v719 = vlaneseq
    %v720 = vshrl.u32 %v719, 7
    %v721 = vsub.s32 4, %v720
    %v722 = vrot.slane %v701, %v721
    %v723 = vlaneseq
    %v724 = vshrl.u32 %v723, 7
    %v725 = vsub.s32 5, %v724
    %v726 = vrot.slane %v701, %v725
    %v727 = vlaneseq
    %v728 = vshrl.u32 %v727, 7
    %v729 = vsub.s32 6, %v728
    %v730 = vrot.slane %v701, %v729
    %v731 = vlaneseq
    %v732 = vshrl.u32 %v731, 7
    %v733 = vsub.s32 7, %v732
    %v734 = vrot.slane %v701, %v733
    %v743 = vmul.f32 %v611, %v706
    %v744 = vmul.f32 %v613, %v710
    %v745 = vmul.f32 %v615, %v714
    %v746 = vmul.f32 %v617, %v718
    %v747 = vmul.f32 %v619, %v722
    %v748 = vmul.f32 %v621, %v726
    %v749 = vmul.f32 %v623, %v730
    %v750 = vmul.f32 %v625, %v734
    %752 = vset.pattern.permute.xlu0 0
    %753 = vperm.xlu0 %752, %v743
    %v754 = vpop.permute.xlu0 %753
    %757 = vset.pattern.permute.xlu0 0
    %758 = vperm.xlu0 %757, %v744
    %v759 = vpop.permute.xlu0 %758
    %762 = vset.pattern.permute.xlu0 0
    %763 = vperm.xlu0 %762, %v745
    %v764 = vpop.permute.xlu0 %763
    %767 = vset.pattern.permute.xlu0 0
    %768 = vperm.xlu0 %767, %v746
    %v769 = vpop.permute.xlu0 %768
    %772 = vset.pattern.permute.xlu0 0
    %773 = vperm.xlu0 %772, %v747
    %v774 = vpop.permute.xlu0 %773
    %777 = vset.pattern.permute.xlu0 0
    %778 = vperm.xlu0 %777, %v748
    %v779 = vpop.permute.xlu0 %778
    %782 = vset.pattern.permute.xlu0 0
    %783 = vperm.xlu0 %782, %v749
    %v784 = vpop.permute.xlu0 %783
    %787 = vset.pattern.permute.xlu0 0
    %788 = vperm.xlu0 %787, %v750
    %v789 = vpop.permute.xlu0 %788
    %v791 = vmul.f32 %v754, %v121
    %v792 = vmul.f32 %v759, %v122
    %v793 = vmul.f32 %v764, %v123
    %v794 = vmul.f32 %v769, %v124
    %v795 = vmul.f32 %v774, %v125
    %v796 = vmul.f32 %v779, %v126
    %v797 = vmul.f32 %v784, %v127
    %v798 = vmul.f32 %v789, %v128
    %v799 = vrot.slane %v791, 4
    %v800 = vadd.f32 %v791, %v799
    %v801 = vrot.slane %v800, 2
    %v802 = vadd.f32 %v800, %v801
    %v803 = vrot.slane %v802, 1
    %v804 = vadd.f32 %v802, %v803
    %v805 = vrot.slane %v792, 4
    %v806 = vadd.f32 %v792, %v805
    %v807 = vrot.slane %v806, 2
    %v808 = vadd.f32 %v806, %v807
    %v809 = vrot.slane %v808, 1
    %v810 = vadd.f32 %v808, %v809
    %v811 = vrot.slane %v793, 4
    %v812 = vadd.f32 %v793, %v811
    %v813 = vrot.slane %v812, 2
    %v814 = vadd.f32 %v812, %v813
    %v815 = vrot.slane %v814, 1
    %v816 = vadd.f32 %v814, %v815
    %v817 = vrot.slane %v794, 4
    %v818 = vadd.f32 %v794, %v817
    %v819 = vrot.slane %v818, 2
    %v820 = vadd.f32 %v818, %v819
    %v821 = vrot.slane %v820, 1
    %v822 = vadd.f32 %v820, %v821
    %v823 = vrot.slane %v795, 4
    %v824 = vadd.f32 %v795, %v823
    %v825 = vrot.slane %v824, 2
    %v826 = vadd.f32 %v824, %v825
    %v827 = vrot.slane %v826, 1
    %v828 = vadd.f32 %v826, %v827
    %v829 = vrot.slane %v796, 4
    %v830 = vadd.f32 %v796, %v829
    %v831 = vrot.slane %v830, 2
    %v832 = vadd.f32 %v830, %v831
    %v833 = vrot.slane %v832, 1
    %v834 = vadd.f32 %v832, %v833
    %v835 = vrot.slane %v797, 4
    %v836 = vadd.f32 %v797, %v835
    %v837 = vrot.slane %v836, 2
    %v838 = vadd.f32 %v836, %v837
    %v839 = vrot.slane %v838, 1
    %v840 = vadd.f32 %v838, %v839
    %v841 = vrot.slane %v798, 4
    %v842 = vadd.f32 %v798, %v841
    %v843 = vrot.slane %v842, 2
    %v844 = vadd.f32 %v842, %v843
    %v845 = vrot.slane %v844, 1
    %v846 = vadd.f32 %v844, %v845
    %v855 = vsel %vm542, %v810, %v804
    %v856 = vsel %vm544, %v816, %v855
    %v857 = vsel %vm546, %v822, %v856
    %v858 = vsel %vm548, %v828, %v857
    %v859 = vsel %vm550, %v834, %v858
    %v860 = vsel %vm552, %v840, %v859
    %v861 = vsel %vm554, %v846, %v860
    %v863 = vld [vmem:[%s4] sm:$0xff]
    %v864 = vld [vmem:[%s4 + $0x8] sm:$0xff]
    %v865 = vld [vmem:[%s4 + $0x10] sm:$0xff]
    %v866 = vld [vmem:[%s4 + $0x18] sm:$0xff]
    %867 = vmatprep.subr.mxu0 %v215
    %868 = vmatpush1.msra.mxu0 %v214
    %869 = vmatprep.subr.mxu0 %v211
    %870 = vmatpush1.msra.mxu0 %v210
    %871 = vmatprep.subr.mxu0 %v207
    %872 = vmatpush1.msra.mxu0 %v206
    %873 = vmatprep.subr.mxu0 %v203
    %874 = vmatpush1.msra.mxu0 %v202
    %875 = vmatprep.subr.mxu0 %v199
    %876 = vmatpush1.msra.mxu0 %v198
    %877 = vmatprep.subr.mxu0 %v195
    %878 = vmatpush1.msra.mxu0 %v194
    %879 = vmatprep.subr.mxu0 %v191
    %880 = vmatpush1.msra.mxu0 %v190
    %881 = vmatprep.subr.mxu0 %v187
    %882 = vmatpush1.msra.mxu0 %v186
    %883 = vmatprep.subr.mxu0 %v183
    %884 = vmatpush1.msra.mxu0 %v182
    %885 = vmatprep.subr.mxu0 %v179
    %886 = vmatpush1.msra.mxu0 %v178
    %887 = vmatprep.subr.mxu0 %v175
    %888 = vmatpush1.msra.mxu0 %v174
    %889 = vmatprep.subr.mxu0 %v171
    %890 = vmatpush1.msra.mxu0 %v170
    %891 = vmatprep.subr.mxu0 %v167
    %892 = vmatpush1.msra.mxu0 %v166
    %893 = vmatprep.subr.mxu0 %v163
    %894 = vmatpush1.msra.mxu0 %v162
    %895 = vmatprep.subr.mxu0 %v159
    %896 = vmatpush1.msra.mxu0 %v158
    %897 = vmatprep.subr.mxu0 %v155
    %898 = vmatpush1.msra.mxu0 %v154
    %899 = vmatprep.subr.mxu0 %v279
    %900 = vmatpush2.msra.mxu0 %v278
    %901 = vmatprep.subr.mxu0 %v275
    %902 = vmatpush2.msra.mxu0 %v274
    %903 = vmatprep.subr.mxu0 %v271
    %904 = vmatpush2.msra.mxu0 %v270
    %905 = vmatprep.subr.mxu0 %v267
    %906 = vmatpush2.msra.mxu0 %v266
    %907 = vmatprep.subr.mxu0 %v263
    %908 = vmatpush2.msra.mxu0 %v262
    %909 = vmatprep.subr.mxu0 %v259
    %910 = vmatpush2.msra.mxu0 %v258
    %911 = vmatprep.subr.mxu0 %v255
    %912 = vmatpush2.msra.mxu0 %v254
    %913 = vmatprep.subr.mxu0 %v251
    %914 = vmatpush2.msra.mxu0 %v250
    %915 = vmatprep.subr.mxu0 %v247
    %916 = vmatpush2.msra.mxu0 %v246
    %917 = vmatprep.subr.mxu0 %v243
    %918 = vmatpush2.msra.mxu0 %v242
    %919 = vmatprep.subr.mxu0 %v239
    %920 = vmatpush2.msra.mxu0 %v238
    %921 = vmatprep.subr.mxu0 %v235
    %922 = vmatpush2.msra.mxu0 %v234
    %923 = vmatprep.subr.mxu0 %v231
    %924 = vmatpush2.msra.mxu0 %v230
    %925 = vmatprep.subr.mxu0 %v227
    %926 = vmatpush2.msra.mxu0 %v226
    %927 = vmatprep.subr.mxu0 %v223
    %928 = vmatpush2.msra.mxu0 %v222
    %929 = vmatprep.subr.mxu0 %v219
    %930 = vmatpush2.msra.mxu0 %v218
    %931 = vmatprep.mubr.f32.mxu0 %v283
    %932 = vmatmul.mubr.f32.gmra.mxu0 %v861
    %v933 = vpop.f32.mrf.mxu0
    %v934 = vadd.f32 %v863, %v933
    %v935 = vpop.f32.mrf.mxu0
    %v936 = vadd.f32 %v864, %v935
    %937 = vdwg.mxu0
    %938 = vmatprep.subr.mxu0 %v217
    %939 = vmatpush1.msra.mxu0 %v216
    %940 = vmatprep.subr.mxu0 %v213
    %941 = vmatpush1.msra.mxu0 %v212
    %942 = vmatprep.subr.mxu0 %v209
    %943 = vmatpush1.msra.mxu0 %v208
    %944 = vmatprep.subr.mxu0 %v205
    %945 = vmatpush1.msra.mxu0 %v204
    %946 = vmatprep.subr.mxu0 %v201
    %947 = vmatpush1.msra.mxu0 %v200
    %948 = vmatprep.subr.mxu0 %v197
    %949 = vmatpush1.msra.mxu0 %v196
    %950 = vmatprep.subr.mxu0 %v193
    %951 = vmatpush1.msra.mxu0 %v192
    %952 = vmatprep.subr.mxu0 %v189
    %953 = vmatpush1.msra.mxu0 %v188
    %954 = vmatprep.subr.mxu0 %v185
    %955 = vmatpush1.msra.mxu0 %v184
    %956 = vmatprep.subr.mxu0 %v181
    %957 = vmatpush1.msra.mxu0 %v180
    %958 = vmatprep.subr.mxu0 %v177
    %959 = vmatpush1.msra.mxu0 %v176
    %960 = vmatprep.subr.mxu0 %v173
    %961 = vmatpush1.msra.mxu0 %v172
    %962 = vmatprep.subr.mxu0 %v169
    %963 = vmatpush1.msra.mxu0 %v168
    %964 = vmatprep.subr.mxu0 %v165
    %965 = vmatpush1.msra.mxu0 %v164
    %966 = vmatprep.subr.mxu0 %v161
    %967 = vmatpush1.msra.mxu0 %v160
    %968 = vmatprep.subr.mxu0 %v157
    %969 = vmatpush1.msra.mxu0 %v156
    %970 = vmatprep.subr.mxu0 %v281
    %971 = vmatpush2.msra.mxu0 %v280
    %972 = vmatprep.subr.mxu0 %v277
    %973 = vmatpush2.msra.mxu0 %v276
    %974 = vmatprep.subr.mxu0 %v273
    %975 = vmatpush2.msra.mxu0 %v272
    %976 = vmatprep.subr.mxu0 %v269
    %977 = vmatpush2.msra.mxu0 %v268
    %978 = vmatprep.subr.mxu0 %v265
    %979 = vmatpush2.msra.mxu0 %v264
    %980 = vmatprep.subr.mxu0 %v261
    %981 = vmatpush2.msra.mxu0 %v260
    %982 = vmatprep.subr.mxu0 %v257
    %983 = vmatpush2.msra.mxu0 %v256
    %984 = vmatprep.subr.mxu0 %v253
    %985 = vmatpush2.msra.mxu0 %v252
    %986 = vmatprep.subr.mxu0 %v249
    %987 = vmatpush2.msra.mxu0 %v248
    %988 = vmatprep.subr.mxu0 %v245
    %989 = vmatpush2.msra.mxu0 %v244
    %990 = vmatprep.subr.mxu0 %v241
    %991 = vmatpush2.msra.mxu0 %v240
    %992 = vmatprep.subr.mxu0 %v237
    %993 = vmatpush2.msra.mxu0 %v236
    %994 = vmatprep.subr.mxu0 %v233
    %995 = vmatpush2.msra.mxu0 %v232
    %996 = vmatprep.subr.mxu0 %v229
    %997 = vmatpush2.msra.mxu0 %v228
    %998 = vmatprep.subr.mxu0 %v225
    %999 = vmatpush2.msra.mxu0 %v224
    %1000 = vmatprep.subr.mxu0 %v221
    %1001 = vmatpush2.msra.mxu0 %v220
    %1002 = vmatprep.mubr.f32.mxu0 %v283
    %1003 = vmatmul.mubr.f32.gmra.mxu0 %v861
    %v1004 = vpop.f32.mrf.mxu0
    %v1005 = vadd.f32 %v865, %v1004
    %v1006 = vpop.f32.mrf.mxu0
    %v1007 = vadd.f32 %v866, %v1006
    %1008 = vdwg.mxu0
    %v1010 = vlaneseq
    %v1011 = vshrl.u32 %v1010, 7
    %v1012 = vsub.s32 0, %v1011
    %v1013 = vrot.slane %v282, %v1012
    %v1014 = vlaneseq
    %v1015 = vshrl.u32 %v1014, 7
    %v1016 = vsub.s32 1, %v1015
    %v1017 = vrot.slane %v282, %v1016
    %v1018 = vlaneseq
    %v1019 = vshrl.u32 %v1018, 7
    %v1020 = vsub.s32 2, %v1019
    %v1021 = vrot.slane %v282, %v1020
    %v1022 = vlaneseq
    %v1023 = vshrl.u32 %v1022, 7
    %v1024 = vsub.s32 3, %v1023
    %v1025 = vrot.slane %v282, %v1024
    %v1030 = vadd.f32 %v934, %v1013
    %v1031 = vadd.f32 %v936, %v1017
    %v1032 = vadd.f32 %v1005, %v1021
    %v1033 = vadd.f32 %v1007, %v1025
    %v1034 = vxor.u32 %v1030, 2147483648
    %v1035 = vmul.f32 %v1034, 1.442695
    %v1036 = vpow.pop %v1035
    %v1037 = vadd.f32 %v1036, 1.0
    %v1038 = vrcp.pop %v1037
    %v1039 = vmul.f32 1.0, %v1038
    %v1040 = vxor.u32 %v1031, 2147483648
    %v1041 = vmul.f32 %v1040, 1.442695
    %v1042 = vpow.pop %v1041
    %v1043 = vadd.f32 %v1042, 1.0
    %v1044 = vrcp.pop %v1043
    %v1045 = vmul.f32 1.0, %v1044
    %v1046 = vtanh.pop %v1032
    %v1047 = vxor.u32 %v1033, 2147483648
    %v1048 = vmul.f32 %v1047, 1.442695
    %v1049 = vpow.pop %v1048
    %v1050 = vadd.f32 %v1049, 1.0
    %v1051 = vrcp.pop %v1050
    %v1052 = vmul.f32 1.0, %v1051
    %v1053 = vmul.f32 %v1045, %v284
    %v1054 = vmul.f32 %v1039, %v1046
    %v1055 = vadd.f32 %v1053, %v1054
    %v1056 = vtanh.pop %v1055
    %v1057 = vmul.f32 %v1052, %v1056
    %1058 = vst [vmem:[#allocation2] sm:$0xff] %v1057
    %1059 = vmatprep.subr.mxu0 0.0
    %1060 = vmatpush1.msra.mxu0 %v153
    %1061 = vmatprep.subr.mxu0 0.0
    %1062 = vmatpush1.msra.mxu0 %v152
    %1063 = vmatprep.subr.mxu0 0.0
    %1064 = vmatpush1.msra.mxu0 %v151
    %1065 = vmatprep.subr.mxu0 0.0
    %1066 = vmatpush1.msra.mxu0 %v150
    %1067 = vmatprep.subr.mxu0 0.0
    %1068 = vmatpush1.msra.mxu0 %v149
    %1069 = vmatprep.subr.mxu0 0.0
    %1070 = vmatpush1.msra.mxu0 %v148
    %1071 = vmatprep.subr.mxu0 0.0
    %1072 = vmatpush1.msra.mxu0 %v147
    %1073 = vmatprep.subr.mxu0 0.0
    %1074 = vmatpush1.msra.mxu0 %v146
    %1075 = vmatprep.subr.mxu0 0.0
    %1076 = vmatpush1.msra.mxu0 %v145
    %1077 = vmatprep.subr.mxu0 0.0
    %1078 = vmatpush1.msra.mxu0 %v144
    %1079 = vmatprep.subr.mxu0 0.0
    %1080 = vmatpush1.msra.mxu0 %v143
    %1081 = vmatprep.subr.mxu0 0.0
    %1082 = vmatpush1.msra.mxu0 %v142
    %1083 = vmatprep.subr.mxu0 0.0
    %1084 = vmatpush1.msra.mxu0 %v141
    %1085 = vmatprep.subr.mxu0 0.0
    %1086 = vmatpush1.msra.mxu0 %v140
    %1087 = vmatprep.subr.mxu0 0.0
    %1088 = vmatpush1.msra.mxu0 %v139
    %1089 = vmatprep.subr.mxu0 0.0
    %1090 = vmatpush1.msra.mxu0 %v138
    %1091 = vmatprep.subr.mxu0 0.0
    %1092 = vmatpush2.msra.mxu0 0.0
    %1093 = vmatprep.subr.mxu0 0.0
    %1094 = vmatpush2.msra.mxu0 0.0
    %1095 = vmatprep.subr.mxu0 0.0
    %1096 = vmatpush2.msra.mxu0 0.0
    %1097 = vmatprep.subr.mxu0 0.0
    %1098 = vmatpush2.msra.mxu0 0.0
    %1099 = vmatprep.subr.mxu0 0.0
    %1100 = vmatpush2.msra.mxu0 0.0
    %1101 = vmatprep.subr.mxu0 0.0
    %1102 = vmatpush2.msra.mxu0 0.0
    %1103 = vmatprep.subr.mxu0 0.0
    %1104 = vmatpush2.msra.mxu0 0.0
    %1105 = vmatprep.subr.mxu0 0.0
    %1106 = vmatpush2.msra.mxu0 0.0
    %1107 = vmatprep.subr.mxu0 0.0
    %1108 = vmatpush2.msra.mxu0 0.0
    %1109 = vmatprep.subr.mxu0 0.0
    %1110 = vmatpush2.msra.mxu0 0.0
    %1111 = vmatprep.subr.mxu0 0.0
    %1112 = vmatpush2.msra.mxu0 0.0
    %1113 = vmatprep.subr.mxu0 0.0
    %1114 = vmatpush2.msra.mxu0 0.0
    %1115 = vmatprep.subr.mxu0 0.0
    %1116 = vmatpush2.msra.mxu0 0.0
    %1117 = vmatprep.subr.mxu0 0.0
    %1118 = vmatpush2.msra.mxu0 0.0
    %1119 = vmatprep.subr.mxu0 0.0
    %1120 = vmatpush2.msra.mxu0 0.0
    %1121 = vmatprep.subr.mxu0 0.0
    %1122 = vmatpush2.msra.mxu0 0.0
    %1123 = vmatprep.mubr.f32.mxu0 0.0
    %1124 = vmatmul.mubr.f32.gmra.mxu0 %v1055
    %v1125 = vpop.f32.mrf.mxu0
    %v1126 = vadd.f32 0.0, %v1125
    %v1127 = vpop.f32.mrf.mxu0
    %1128 = vdwg.mxu0
    %v1130 = vcombine.high %v1126, %v1126
    %v1132 = vunpack.c.l.s4 1966171168
    %v1133 = vunpack.c.0.s8 %v1132
    %v1134 = vlaneseq
    %v1135 = vshrl.u32 %v1134, 7
    %v1136 = vsub.s32 %v1133, %v1135
    %v1137 = vrot.slane %v1126, %v1136
    %v1139 = vunpack.c.l.s4 1966171168
    %v1140 = vunpack.c.0.s8 %v1139
    %v1141 = vlaneseq
    %v1142 = vshrl.u32 %v1141, 7
    %v1143 = vsub.s32 %v1140, %v1142
    %v1144 = vrot.slane %v1130, %v1143
    %v1145 = vcombine.high %v1137, %v1137
    %v1146 = vcombine.high %v1144, %v1144
    %v1148 = vunpack.c.l.s4 1966171168
    %v1149 = vunpack.c.0.s8 %v1148
    %v1150 = vlaneseq
    %v1151 = vshrl.u32 %v1150, 7
    %v1152 = vsub.s32 %v1149, %v1151
    %v1153 = vrot.slane %v1137, %v1152
    %v1155 = vunpack.c.l.s4 1966171168
    %v1156 = vunpack.c.0.s8 %v1155
    %v1157 = vlaneseq
    %v1158 = vshrl.u32 %v1157, 7
    %v1159 = vsub.s32 %v1156, %v1158
    %v1160 = vrot.slane %v1144, %v1159
    %v1162 = vunpack.c.l.s4 1966171168
    %v1163 = vunpack.c.0.s8 %v1162
    %v1164 = vlaneseq
    %v1165 = vshrl.u32 %v1164, 7
    %v1166 = vsub.s32 %v1163, %v1165
    %v1167 = vrot.slane %v1145, %v1166
    %v1169 = vunpack.c.l.s4 1966171168
    %v1170 = vunpack.c.0.s8 %v1169
    %v1171 = vlaneseq
    %v1172 = vshrl.u32 %v1171, 7
    %v1173 = vsub.s32 %v1170, %v1172
    %v1174 = vrot.slane %v1146, %v1173
    %v1175 = vcombine.high %v1153, %v1153
    %v1176 = vcombine.high %v1160, %v1160
    %v1177 = vcombine.high %v1167, %v1167
    %v1178 = vcombine.high %v1174, %v1174
    %v1179 = vlaneseq
    %v1180 = vshrl.u32 %v1179, 7
    %v1181 = vsub.s32 0, %v1180
    %v1182 = vrot.slane %v1153, %v1181
    %v1183 = vlaneseq
    %v1184 = vshrl.u32 %v1183, 7
    %v1185 = vsub.s32 0, %v1184
    %v1186 = vrot.slane %v1167, %v1185
    %v1187 = vlaneseq
    %v1188 = vshrl.u32 %v1187, 7
    %v1189 = vsub.s32 0, %v1188
    %v1190 = vrot.slane %v1175, %v1189
    %v1191 = vlaneseq
    %v1192 = vshrl.u32 %v1191, 7
    %v1193 = vsub.s32 0, %v1192
    %v1194 = vrot.slane %v1177, %v1193
    %v1195 = vlaneseq
    %v1196 = vshrl.u32 %v1195, 7
    %v1197 = vsub.s32 0, %v1196
    %v1198 = vrot.slane %v1160, %v1197
    %v1199 = vlaneseq
    %v1200 = vshrl.u32 %v1199, 7
    %v1201 = vsub.s32 0, %v1200
    %v1202 = vrot.slane %v1174, %v1201
    %v1203 = vlaneseq
    %v1204 = vshrl.u32 %v1203, 7
    %v1205 = vsub.s32 0, %v1204
    %v1206 = vrot.slane %v1176, %v1205
    %v1207 = vlaneseq
    %v1208 = vshrl.u32 %v1207, 7
    %v1209 = vsub.s32 0, %v1208
    %v1210 = vrot.slane %v1178, %v1209
    %v1219 = vadd.f32 %v129, %v1182
    %v1220 = vadd.f32 %v130, %v1186
    %v1221 = vadd.f32 %v131, %v1190
    %v1222 = vadd.f32 %v132, %v1194
    %v1223 = vadd.f32 %v133, %v1198
    %v1224 = vadd.f32 %v134, %v1202
    %v1225 = vadd.f32 %v135, %v1206
    %v1226 = vadd.f32 %v136, %v1210
    %v1227 = vtanh.pop %v1219
    %v1228 = vtanh.pop %v1220
    %v1229 = vtanh.pop %v1221
    %v1230 = vtanh.pop %v1222
    %v1231 = vtanh.pop %v1223
    %v1232 = vtanh.pop %v1224
    %v1233 = vtanh.pop %v1225
    %v1234 = vtanh.pop %v1226
    %v1235 = vmul.f32 %v1227, %v465
    %v1236 = vmul.f32 %v1228, %v465
    %v1237 = vmul.f32 %v1229, %v465
    %v1238 = vmul.f32 %v1230, %v465
    %v1239 = vmul.f32 %v1231, %v465
    %v1240 = vmul.f32 %v1232, %v465
    %v1241 = vmul.f32 %v1233, %v465
    %v1242 = vmul.f32 %v1234, %v465
    %v1243 = vsel %vm475, %v1235, 0.0
    %1244 = vadd.xlane.f32.xlu0 %v1243
    %v1245 = vpop.xlane.xlu0 %1244
    %v1246 = vsel %vm475, %v1236, 0.0
    %1247 = vadd.xlane.f32.xlu0 %v1246
    %v1248 = vpop.xlane.xlu0 %1247
    %v1249 = vsel %vm475, %v1237, 0.0
    %1250 = vadd.xlane.f32.xlu0 %v1249
    %v1251 = vpop.xlane.xlu0 %1250
    %v1252 = vsel %vm475, %v1238, 0.0
    %1253 = vadd.xlane.f32.xlu0 %v1252
    %v1254 = vpop.xlane.xlu0 %1253
    %v1255 = vsel %vm475, %v1239, 0.0
    %1256 = vadd.xlane.f32.xlu0 %v1255
    %v1257 = vpop.xlane.xlu0 %1256
    %v1258 = vsel %vm475, %v1240, 0.0
    %1259 = vadd.xlane.f32.xlu0 %v1258
    %v1260 = vpop.xlane.xlu0 %1259
    %v1261 = vsel %vm475, %v1241, 0.0
    %1262 = vadd.xlane.f32.xlu0 %v1261
    %v1263 = vpop.xlane.xlu0 %1262
    %v1264 = vsel %vm475, %v1242, 0.0
    %1265 = vadd.xlane.f32.xlu0 %v1264
    %v1266 = vpop.xlane.xlu0 %1265
    %v1275 = vlaneseq
    %v1276 = vshrl.u32 %v1275, 7
    %v1277 = vsub.s32 %v509, %v1276
    %v1278 = vrot.slane %v1245, %v1277
    %v1279 = vlaneseq
    %v1280 = vshrl.u32 %v1279, 7
    %v1281 = vsub.s32 %v509, %v1280
    %v1282 = vrot.slane %v1248, %v1281
    %v1283 = vlaneseq
    %v1284 = vshrl.u32 %v1283, 7
    %v1285 = vsub.s32 %v509, %v1284
    %v1286 = vrot.slane %v1251, %v1285
    %v1287 = vlaneseq
    %v1288 = vshrl.u32 %v1287, 7
    %v1289 = vsub.s32 %v509, %v1288
    %v1290 = vrot.slane %v1254, %v1289
    %v1291 = vlaneseq
    %v1292 = vshrl.u32 %v1291, 7
    %v1293 = vsub.s32 %v509, %v1292
    %v1294 = vrot.slane %v1257, %v1293
    %v1295 = vlaneseq
    %v1296 = vshrl.u32 %v1295, 7
    %v1297 = vsub.s32 %v509, %v1296
    %v1298 = vrot.slane %v1260, %v1297
    %v1299 = vlaneseq
    %v1300 = vshrl.u32 %v1299, 7
    %v1301 = vsub.s32 %v509, %v1300
    %v1302 = vrot.slane %v1263, %v1301
    %v1303 = vlaneseq
    %v1304 = vshrl.u32 %v1303, 7
    %v1305 = vsub.s32 %v509, %v1304
    %v1306 = vrot.slane %v1266, %v1305
    %v1307 = vsel %vm542, %v1282, %v1278
    %v1308 = vsel %vm544, %v1286, %v1307
    %v1309 = vsel %vm546, %v1290, %v1308
    %v1310 = vsel %vm548, %v1294, %v1309
    %v1311 = vsel %vm550, %v1298, %v1310
    %v1312 = vsel %vm552, %v1302, %v1311
    %v1313 = vsel %vm554, %v1306, %v1312
    %v1315 = vsel %vm557, %v1313, -inf
    %1316 = vmax.xlane.f32.xlu0 %v1315
    %v1317 = vpop.xlane.xlu0 %1316
    %v1319 = vlaneseq
    %v1320 = vshrl.u32 %v1319, 7
    %v1321 = vsub.s32 0, %v1320
    %v1322 = vrot.slane %v1317, %v1321
    %v1323 = vlaneseq
    %v1324 = vshrl.u32 %v1323, 7
    %v1325 = vsub.s32 1, %v1324
    %v1326 = vrot.slane %v1317, %v1325
    %v1327 = vlaneseq
    %v1328 = vshrl.u32 %v1327, 7
    %v1329 = vsub.s32 2, %v1328
    %v1330 = vrot.slane %v1317, %v1329
    %v1331 = vlaneseq
    %v1332 = vshrl.u32 %v1331, 7
    %v1333 = vsub.s32 3, %v1332
    %v1334 = vrot.slane %v1317, %v1333
    %v1335 = vlaneseq
    %v1336 = vshrl.u32 %v1335, 7
    %v1337 = vsub.s32 4, %v1336
    %v1338 = vrot.slane %v1317, %v1337
    %v1339 = vlaneseq
    %v1340 = vshrl.u32 %v1339, 7
    %v1341 = vsub.s32 5, %v1340
    %v1342 = vrot.slane %v1317, %v1341
    %v1343 = vlaneseq
    %v1344 = vshrl.u32 %v1343, 7
    %v1345 = vsub.s32 6, %v1344
    %v1346 = vrot.slane %v1317, %v1345
    %v1347 = vlaneseq
    %v1348 = vshrl.u32 %v1347, 7
    %v1349 = vsub.s32 7, %v1348
    %v1350 = vrot.slane %v1317, %v1349
    %v1359 = vsub.f32 %v1245, %v1322
    %v1360 = vsub.f32 %v1248, %v1326
    %v1361 = vsub.f32 %v1251, %v1330
    %v1362 = vsub.f32 %v1254, %v1334
    %v1363 = vsub.f32 %v1257, %v1338
    %v1364 = vsub.f32 %v1260, %v1342
    %v1365 = vsub.f32 %v1263, %v1346
    %v1366 = vsub.f32 %v1266, %v1350
    %v1367 = vmul.f32 %v1359, 1.442695
    %v1368 = vpow.pop %v1367
    %v1369 = vmul.f32 %v1360, 1.442695
    %v1370 = vpow.pop %v1369
    %v1371 = vmul.f32 %v1361, 1.442695
    %v1372 = vpow.pop %v1371
    %v1373 = vmul.f32 %v1362, 1.442695
    %v1374 = vpow.pop %v1373
    %v1375 = vmul.f32 %v1363, 1.442695
    %v1376 = vpow.pop %v1375
    %v1377 = vmul.f32 %v1364, 1.442695
    %v1378 = vpow.pop %v1377
    %v1379 = vmul.f32 %v1365, 1.442695
    %v1380 = vpow.pop %v1379
    %v1381 = vmul.f32 %v1366, 1.442695
    %v1382 = vpow.pop %v1381
    %1391 = vset.pattern.permute.xlu0 0
    %1392 = vperm.xlu0 %1391, %v1368
    %v1393 = vpop.permute.xlu0 %1392
    %1394 = vset.pattern.permute.xlu0 0
    %1395 = vperm.xlu0 %1394, %v1370
    %v1396 = vpop.permute.xlu0 %1395
    %1397 = vset.pattern.permute.xlu0 0
    %1398 = vperm.xlu0 %1397, %v1372
    %v1399 = vpop.permute.xlu0 %1398
    %1400 = vset.pattern.permute.xlu0 0
    %1401 = vperm.xlu0 %1400, %v1374
    %v1402 = vpop.permute.xlu0 %1401
    %1403 = vset.pattern.permute.xlu0 0
    %1404 = vperm.xlu0 %1403, %v1376
    %v1405 = vpop.permute.xlu0 %1404
    %1406 = vset.pattern.permute.xlu0 0
    %1407 = vperm.xlu0 %1406, %v1378
    %v1408 = vpop.permute.xlu0 %1407
    %1409 = vset.pattern.permute.xlu0 0
    %1410 = vperm.xlu0 %1409, %v1380
    %v1411 = vpop.permute.xlu0 %1410
    %1412 = vset.pattern.permute.xlu0 0
    %1413 = vperm.xlu0 %1412, %v1382
    %v1414 = vpop.permute.xlu0 %1413
    %v1415 = vlaneseq
    %v1416 = vshrl.u32 %v1415, 7
    %v1417 = vsub.s32 %v509, %v1416
    %v1418 = vrot.slane %v1393, %v1417
    %v1419 = vlaneseq
    %v1420 = vshrl.u32 %v1419, 7
    %v1421 = vsub.s32 %v509, %v1420
    %v1422 = vrot.slane %v1396, %v1421
    %v1423 = vlaneseq
    %v1424 = vshrl.u32 %v1423, 7
    %v1425 = vsub.s32 %v509, %v1424
    %v1426 = vrot.slane %v1399, %v1425
    %v1427 = vlaneseq
    %v1428 = vshrl.u32 %v1427, 7
    %v1429 = vsub.s32 %v509, %v1428
    %v1430 = vrot.slane %v1402, %v1429
    %v1431 = vlaneseq
    %v1432 = vshrl.u32 %v1431, 7
    %v1433 = vsub.s32 %v509, %v1432
    %v1434 = vrot.slane %v1405, %v1433
    %v1435 = vlaneseq
    %v1436 = vshrl.u32 %v1435, 7
    %v1437 = vsub.s32 %v509, %v1436
    %v1438 = vrot.slane %v1408, %v1437
    %v1439 = vlaneseq
    %v1440 = vshrl.u32 %v1439, 7
    %v1441 = vsub.s32 %v509, %v1440
    %v1442 = vrot.slane %v1411, %v1441
    %v1443 = vlaneseq
    %v1444 = vshrl.u32 %v1443, 7
    %v1445 = vsub.s32 %v509, %v1444
    %v1446 = vrot.slane %v1414, %v1445
    %v1447 = vsel %vm542, %v1422, %v1418
    %v1448 = vsel %vm544, %v1426, %v1447
    %v1449 = vsel %vm546, %v1430, %v1448
    %v1450 = vsel %vm548, %v1434, %v1449
    %v1451 = vsel %vm550, %v1438, %v1450
    %v1452 = vsel %vm552, %v1442, %v1451
    %v1453 = vsel %vm554, %v1446, %v1452
    %v1455 = vsel %vm557, %v1453, 0.0
    %1456 = vadd.xlane.f32.xlu0 %v1455
    %v1457 = vpop.xlane.xlu0 %1456
    %v1458 = vrcp.pop %v1457
    %v1460 = vlaneseq
    %v1461 = vshrl.u32 %v1460, 7
    %v1462 = vsub.s32 0, %v1461
    %v1463 = vrot.slane %v1458, %v1462
    %v1464 = vlaneseq
    %v1465 = vshrl.u32 %v1464, 7
    %v1466 = vsub.s32 1, %v1465
    %v1467 = vrot.slane %v1458, %v1466
    %v1468 = vlaneseq
    %v1469 = vshrl.u32 %v1468, 7
    %v1470 = vsub.s32 2, %v1469
    %v1471 = vrot.slane %v1458, %v1470
    %v1472 = vlaneseq
    %v1473 = vshrl.u32 %v1472, 7
    %v1474 = vsub.s32 3, %v1473
    %v1475 = vrot.slane %v1458, %v1474
    %v1476 = vlaneseq
    %v1477 = vshrl.u32 %v1476, 7
    %v1478 = vsub.s32 4, %v1477
    %v1479 = vrot.slane %v1458, %v1478
    %v1480 = vlaneseq
    %v1481 = vshrl.u32 %v1480, 7
    %v1482 = vsub.s32 5, %v1481
    %v1483 = vrot.slane %v1458, %v1482
    %v1484 = vlaneseq
    %v1485 = vshrl.u32 %v1484, 7
    %v1486 = vsub.s32 6, %v1485
    %v1487 = vrot.slane %v1458, %v1486
    %v1488 = vlaneseq
    %v1489 = vshrl.u32 %v1488, 7
    %v1490 = vsub.s32 7, %v1489
    %v1491 = vrot.slane %v1458, %v1490
    %v1500 = vmul.f32 %v1368, %v1463
    %v1501 = vmul.f32 %v1370, %v1467
    %v1502 = vmul.f32 %v1372, %v1471
    %v1503 = vmul.f32 %v1374, %v1475
    %v1504 = vmul.f32 %v1376, %v1479
    %v1505 = vmul.f32 %v1378, %v1483
    %v1506 = vmul.f32 %v1380, %v1487
    %v1507 = vmul.f32 %v1382, %v1491
    %1509 = vset.pattern.permute.xlu0 0
    %1510 = vperm.xlu0 %1509, %v1500
    %v1511 = vpop.permute.xlu0 %1510
    %1514 = vset.pattern.permute.xlu0 0
    %1515 = vperm.xlu0 %1514, %v1501
    %v1516 = vpop.permute.xlu0 %1515
    %1519 = vset.pattern.permute.xlu0 0
    %1520 = vperm.xlu0 %1519, %v1502
    %v1521 = vpop.permute.xlu0 %1520
    %1524 = vset.pattern.permute.xlu0 0
    %1525 = vperm.xlu0 %1524, %v1503
    %v1526 = vpop.permute.xlu0 %1525
    %1529 = vset.pattern.permute.xlu0 0
    %1530 = vperm.xlu0 %1529, %v1504
    %v1531 = vpop.permute.xlu0 %1530
    %1534 = vset.pattern.permute.xlu0 0
    %1535 = vperm.xlu0 %1534, %v1505
    %v1536 = vpop.permute.xlu0 %1535
    %1539 = vset.pattern.permute.xlu0 0
    %1540 = vperm.xlu0 %1539, %v1506
    %v1541 = vpop.permute.xlu0 %1540
    %1544 = vset.pattern.permute.xlu0 0
    %1545 = vperm.xlu0 %1544, %v1507
    %v1546 = vpop.permute.xlu0 %1545
    %v1548 = vmul.f32 %v1511, %v121
    %v1549 = vmul.f32 %v1516, %v122
    %v1550 = vmul.f32 %v1521, %v123
    %v1551 = vmul.f32 %v1526, %v124
    %v1552 = vmul.f32 %v1531, %v125
    %v1553 = vmul.f32 %v1536, %v126
    %v1554 = vmul.f32 %v1541, %v127
    %v1555 = vmul.f32 %v1546, %v128
    %v1556 = vrot.slane %v1548, 4
    %v1557 = vadd.f32 %v1548, %v1556
    %v1558 = vrot.slane %v1557, 2
    %v1559 = vadd.f32 %v1557, %v1558
    %v1560 = vrot.slane %v1559, 1
    %v1561 = vadd.f32 %v1559, %v1560
    %v1562 = vrot.slane %v1549, 4
    %v1563 = vadd.f32 %v1549, %v1562
    %v1564 = vrot.slane %v1563, 2
    %v1565 = vadd.f32 %v1563, %v1564
    %v1566 = vrot.slane %v1565, 1
    %v1567 = vadd.f32 %v1565, %v1566
    %v1568 = vrot.slane %v1550, 4
    %v1569 = vadd.f32 %v1550, %v1568
    %v1570 = vrot.slane %v1569, 2
    %v1571 = vadd.f32 %v1569, %v1570
    %v1572 = vrot.slane %v1571, 1
    %v1573 = vadd.f32 %v1571, %v1572
    %v1574 = vrot.slane %v1551, 4
    %v1575 = vadd.f32 %v1551, %v1574
    %v1576 = vrot.slane %v1575, 2
    %v1577 = vadd.f32 %v1575, %v1576
    %v1578 = vrot.slane %v1577, 1
    %v1579 = vadd.f32 %v1577, %v1578
    %v1580 = vrot.slane %v1552, 4
    %v1581 = vadd.f32 %v1552, %v1580
    %v1582 = vrot.slane %v1581, 2
    %v1583 = vadd.f32 %v1581, %v1582
    %v1584 = vrot.slane %v1583, 1
    %v1585 = vadd.f32 %v1583, %v1584
    %v1586 = vrot.slane %v1553, 4
    %v1587 = vadd.f32 %v1553, %v1586
    %v1588 = vrot.slane %v1587, 2
    %v1589 = vadd.f32 %v1587, %v1588
    %v1590 = vrot.slane %v1589, 1
    %v1591 = vadd.f32 %v1589, %v1590
    %v1592 = vrot.slane %v1554, 4
    %v1593 = vadd.f32 %v1554, %v1592
    %v1594 = vrot.slane %v1593, 2
    %v1595 = vadd.f32 %v1593, %v1594
    %v1596 = vrot.slane %v1595, 1
    %v1597 = vadd.f32 %v1595, %v1596
    %v1598 = vrot.slane %v1555, 4
    %v1599 = vadd.f32 %v1555, %v1598
    %v1600 = vrot.slane %v1599, 2
    %v1601 = vadd.f32 %v1599, %v1600
    %v1602 = vrot.slane %v1601, 1
    %v1603 = vadd.f32 %v1601, %v1602
    %v1612 = vsel %vm542, %v1567, %v1561
    %v1613 = vsel %vm544, %v1573, %v1612
    %v1614 = vsel %vm546, %v1579, %v1613
    %v1615 = vsel %vm548, %v1585, %v1614
    %v1616 = vsel %vm550, %v1591, %v1615
    %v1617 = vsel %vm552, %v1597, %v1616
    %v1618 = vsel %vm554, %v1603, %v1617
    %s1620 = scalar_lea.vmem %s4, 32
    %v1621 = vld [vmem:[%s1620] sm:$0xff]
    %v1622 = vld [vmem:[%s1620 + $0x8] sm:$0xff]
    %v1623 = vld [vmem:[%s1620 + $0x10] sm:$0xff]
    %v1624 = vld [vmem:[%s1620 + $0x18] sm:$0xff]
    %1625 = vmatprep.subr.mxu0 %v215
    %1626 = vmatpush1.msra.mxu0 %v214
    %1627 = vmatprep.subr.mxu0 %v211
    %1628 = vmatpush1.msra.mxu0 %v210
    %1629 = vmatprep.subr.mxu0 %v207
    %1630 = vmatpush1.msra.mxu0 %v206
    %1631 = vmatprep.subr.mxu0 %v203
    %1632 = vmatpush1.msra.mxu0 %v202
    %1633 = vmatprep.subr.mxu0 %v199
    %1634 = vmatpush1.msra.mxu0 %v198
    %1635 = vmatprep.subr.mxu0 %v195
    %1636 = vmatpush1.msra.mxu0 %v194
    %1637 = vmatprep.subr.mxu0 %v191
    %1638 = vmatpush1.msra.mxu0 %v190
    %1639 = vmatprep.subr.mxu0 %v187
    %1640 = vmatpush1.msra.mxu0 %v186
    %1641 = vmatprep.subr.mxu0 %v183
    %1642 = vmatpush1.msra.mxu0 %v182
    %1643 = vmatprep.subr.mxu0 %v179
    %1644 = vmatpush1.msra.mxu0 %v178
    %1645 = vmatprep.subr.mxu0 %v175
    %1646 = vmatpush1.msra.mxu0 %v174
    %1647 = vmatprep.subr.mxu0 %v171
    %1648 = vmatpush1.msra.mxu0 %v170
    %1649 = vmatprep.subr.mxu0 %v167
    %1650 = vmatpush1.msra.mxu0 %v166
    %1651 = vmatprep.subr.mxu0 %v163
    %1652 = vmatpush1.msra.mxu0 %v162
    %1653 = vmatprep.subr.mxu0 %v159
    %1654 = vmatpush1.msra.mxu0 %v158
    %1655 = vmatprep.subr.mxu0 %v155
    %1656 = vmatpush1.msra.mxu0 %v154
    %1657 = vmatprep.subr.mxu0 %v279
    %1658 = vmatpush2.msra.mxu0 %v278
    %1659 = vmatprep.subr.mxu0 %v275
    %1660 = vmatpush2.msra.mxu0 %v274
    %1661 = vmatprep.subr.mxu0 %v271
    %1662 = vmatpush2.msra.mxu0 %v270
    %1663 = vmatprep.subr.mxu0 %v267
    %1664 = vmatpush2.msra.mxu0 %v266
    %1665 = vmatprep.subr.mxu0 %v263
    %1666 = vmatpush2.msra.mxu0 %v262
    %1667 = vmatprep.subr.mxu0 %v259
    %1668 = vmatpush2.msra.mxu0 %v258
    %1669 = vmatprep.subr.mxu0 %v255
    %1670 = vmatpush2.msra.mxu0 %v254
    %1671 = vmatprep.subr.mxu0 %v251
    %1672 = vmatpush2.msra.mxu0 %v250
    %1673 = vmatprep.subr.mxu0 %v247
    %1674 = vmatpush2.msra.mxu0 %v246
    %1675 = vmatprep.subr.mxu0 %v243
    %1676 = vmatpush2.msra.mxu0 %v242
    %1677 = vmatprep.subr.mxu0 %v239
    %1678 = vmatpush2.msra.mxu0 %v238
    %1679 = vmatprep.subr.mxu0 %v235
    %1680 = vmatpush2.msra.mxu0 %v234
    %1681 = vmatprep.subr.mxu0 %v231
    %1682 = vmatpush2.msra.mxu0 %v230
    %1683 = vmatprep.subr.mxu0 %v227
    %1684 = vmatpush2.msra.mxu0 %v226
    %1685 = vmatprep.subr.mxu0 %v223
    %1686 = vmatpush2.msra.mxu0 %v222
    %1687 = vmatprep.subr.mxu0 %v219
    %1688 = vmatpush2.msra.mxu0 %v218
    %1689 = vmatprep.mubr.f32.mxu0 %v1057
    %1690 = vmatmul.mubr.f32.gmra.mxu0 %v1618
    %v1691 = vpop.f32.mrf.mxu0
    %v1692 = vadd.f32 %v1621, %v1691
    %v1693 = vpop.f32.mrf.mxu0
    %v1694 = vadd.f32 %v1622, %v1693
    %1695 = vdwg.mxu0
    %1696 = vmatprep.subr.mxu0 %v217
    %1697 = vmatpush1.msra.mxu0 %v216
    %1698 = vmatprep.subr.mxu0 %v213
    %1699 = vmatpush1.msra.mxu0 %v212
    %1700 = vmatprep.subr.mxu0 %v209
    %1701 = vmatpush1.msra.mxu0 %v208
    %1702 = vmatprep.subr.mxu0 %v205
    %1703 = vmatpush1.msra.mxu0 %v204
    %1704 = vmatprep.subr.mxu0 %v201
    %1705 = vmatpush1.msra.mxu0 %v200
    %1706 = vmatprep.subr.mxu0 %v197
    %1707 = vmatpush1.msra.mxu0 %v196
    %1708 = vmatprep.subr.mxu0 %v193
    %1709 = vmatpush1.msra.mxu0 %v192
    %1710 = vmatprep.subr.mxu0 %v189
    %1711 = vmatpush1.msra.mxu0 %v188
    %1712 = vmatprep.subr.mxu0 %v185
    %1713 = vmatpush1.msra.mxu0 %v184
    %1714 = vmatprep.subr.mxu0 %v181
    %1715 = vmatpush1.msra.mxu0 %v180
    %1716 = vmatprep.subr.mxu0 %v177
    %1717 = vmatpush1.msra.mxu0 %v176
    %1718 = vmatprep.subr.mxu0 %v173
    %1719 = vmatpush1.msra.mxu0 %v172
    %1720 = vmatprep.subr.mxu0 %v169
    %1721 = vmatpush1.msra.mxu0 %v168
    %1722 = vmatprep.subr.mxu0 %v165
    %1723 = vmatpush1.msra.mxu0 %v164
    %1724 = vmatprep.subr.mxu0 %v161
    %1725 = vmatpush1.msra.mxu0 %v160
    %1726 = vmatprep.subr.mxu0 %v157
    %1727 = vmatpush1.msra.mxu0 %v156
    %1728 = vmatprep.subr.mxu0 %v281
    %1729 = vmatpush2.msra.mxu0 %v280
    %1730 = vmatprep.subr.mxu0 %v277
    %1731 = vmatpush2.msra.mxu0 %v276
    %1732 = vmatprep.subr.mxu0 %v273
    %1733 = vmatpush2.msra.mxu0 %v272
    %1734 = vmatprep.subr.mxu0 %v269
    %1735 = vmatpush2.msra.mxu0 %v268
    %1736 = vmatprep.subr.mxu0 %v265
    %1737 = vmatpush2.msra.mxu0 %v264
    %1738 = vmatprep.subr.mxu0 %v261
    %1739 = vmatpush2.msra.mxu0 %v260
    %1740 = vmatprep.subr.mxu0 %v257
    %1741 = vmatpush2.msra.mxu0 %v256
    %1742 = vmatprep.subr.mxu0 %v253
    %1743 = vmatpush2.msra.mxu0 %v252
    %1744 = vmatprep.subr.mxu0 %v249
    %1745 = vmatpush2.msra.mxu0 %v248
    %1746 = vmatprep.subr.mxu0 %v245
    %1747 = vmatpush2.msra.mxu0 %v244
    %1748 = vmatprep.subr.mxu0 %v241
    %1749 = vmatpush2.msra.mxu0 %v240
    %1750 = vmatprep.subr.mxu0 %v237
    %1751 = vmatpush2.msra.mxu0 %v236
    %1752 = vmatprep.subr.mxu0 %v233
    %1753 = vmatpush2.msra.mxu0 %v232
    %1754 = vmatprep.subr.mxu0 %v229
    %1755 = vmatpush2.msra.mxu0 %v228
    %1756 = vmatprep.subr.mxu0 %v225
    %1757 = vmatpush2.msra.mxu0 %v224
    %1758 = vmatprep.subr.mxu0 %v221
    %1759 = vmatpush2.msra.mxu0 %v220
    %1760 = vmatprep.mubr.f32.mxu0 %v1057
    %1761 = vmatmul.mubr.f32.gmra.mxu0 %v1618
    %v1762 = vpop.f32.mrf.mxu0
    %v1763 = vadd.f32 %v1623, %v1762
    %v1764 = vpop.f32.mrf.mxu0
    %v1765 = vadd.f32 %v1624, %v1764
    %1766 = vdwg.mxu0
    %v1767 = vadd.f32 %v1692, %v1013
    %v1768 = vadd.f32 %v1694, %v1017
    %v1769 = vadd.f32 %v1763, %v1021
    %v1770 = vadd.f32 %v1765, %v1025
    %v1771 = vxor.u32 %v1767, 2147483648
    %v1772 = vmul.f32 %v1771, 1.442695
    %v1773 = vpow.pop %v1772
    %v1774 = vadd.f32 %v1773, 1.0
    %v1775 = vrcp.pop %v1774
    %v1776 = vmul.f32 1.0, %v1775
    %v1777 = vxor.u32 %v1768, 2147483648
    %v1778 = vmul.f32 %v1777, 1.442695
    %v1779 = vpow.pop %v1778
    %v1780 = vadd.f32 %v1779, 1.0
    %v1781 = vrcp.pop %v1780
    %v1782 = vmul.f32 1.0, %v1781
    %v1783 = vtanh.pop %v1769
    %v1784 = vxor.u32 %v1770, 2147483648
    %v1785 = vmul.f32 %v1784, 1.442695
    %v1786 = vpow.pop %v1785
    %v1787 = vadd.f32 %v1786, 1.0
    %v1788 = vrcp.pop %v1787
    %v1789 = vmul.f32 1.0, %v1788
    %v1790 = vmul.f32 %v1782, %v1055
    %v1791 = vmul.f32 %v1776, %v1783
    %v1792 = vadd.f32 %v1790, %v1791
    %v1793 = vtanh.pop %v1792
    %v1794 = vmul.f32 %v1789, %v1793
    %s1795 = scalar_lea.vmem [#allocation2], 8
    %1796 = vst [vmem:[%s1795] sm:$0xff] %v1794
    %1797 = vmatprep.subr.mxu0 0.0
    %1798 = vmatpush1.msra.mxu0 %v153
    %1799 = vmatprep.subr.mxu0 0.0
    %1800 = vmatpush1.msra.mxu0 %v152
    %1801 = vmatprep.subr.mxu0 0.0
    %1802 = vmatpush1.msra.mxu0 %v151
    %1803 = vmatprep.subr.mxu0 0.0
    %1804 = vmatpush1.msra.mxu0 %v150
    %1805 = vmatprep.subr.mxu0 0.0
    %1806 = vmatpush1.msra.mxu0 %v149
    %1807 = vmatprep.subr.mxu0 0.0
    %1808 = vmatpush1.msra.mxu0 %v148
    %1809 = vmatprep.subr.mxu0 0.0
    %1810 = vmatpush1.msra.mxu0 %v147
    %1811 = vmatprep.subr.mxu0 0.0
    %1812 = vmatpush1.msra.mxu0 %v146
    %1813 = vmatprep.subr.mxu0 0.0
    %1814 = vmatpush1.msra.mxu0 %v145
    %1815 = vmatprep.subr.mxu0 0.0
    %1816 = vmatpush1.msra.mxu0 %v144
    %1817 = vmatprep.subr.mxu0 0.0
    %1818 = vmatpush1.msra.mxu0 %v143
    %1819 = vmatprep.subr.mxu0 0.0
    %1820 = vmatpush1.msra.mxu0 %v142
    %1821 = vmatprep.subr.mxu0 0.0
    %1822 = vmatpush1.msra.mxu0 %v141
    %1823 = vmatprep.subr.mxu0 0.0
    %1824 = vmatpush1.msra.mxu0 %v140
    %1825 = vmatprep.subr.mxu0 0.0
    %1826 = vmatpush1.msra.mxu0 %v139
    %1827 = vmatprep.subr.mxu0 0.0
    %1828 = vmatpush1.msra.mxu0 %v138
    %1829 = vmatprep.subr.mxu0 0.0
    %1830 = vmatpush2.msra.mxu0 0.0
    %1831 = vmatprep.subr.mxu0 0.0
    %1832 = vmatpush2.msra.mxu0 0.0
    %1833 = vmatprep.subr.mxu0 0.0
    %1834 = vmatpush2.msra.mxu0 0.0
    %1835 = vmatprep.subr.mxu0 0.0
    %1836 = vmatpush2.msra.mxu0 0.0
    %1837 = vmatprep.subr.mxu0 0.0
    %1838 = vmatpush2.msra.mxu0 0.0
    %1839 = vmatprep.subr.mxu0 0.0
    %1840 = vmatpush2.msra.mxu0 0.0
    %1841 = vmatprep.subr.mxu0 0.0
    %1842 = vmatpush2.msra.mxu0 0.0
    %1843 = vmatprep.subr.mxu0 0.0
    %1844 = vmatpush2.msra.mxu0 0.0
    %1845 = vmatprep.subr.mxu0 0.0
    %1846 = vmatpush2.msra.mxu0 0.0
    %1847 = vmatprep.subr.mxu0 0.0
    %1848 = vmatpush2.msra.mxu0 0.0
    %1849 = vmatprep.subr.mxu0 0.0
    %1850 = vmatpush2.msra.mxu0 0.0
    %1851 = vmatprep.subr.mxu0 0.0
    %1852 = vmatpush2.msra.mxu0 0.0
    %1853 = vmatprep.subr.mxu0 0.0
    %1854 = vmatpush2.msra.mxu0 0.0
    %1855 = vmatprep.subr.mxu0 0.0
    %1856 = vmatpush2.msra.mxu0 0.0
    %1857 = vmatprep.subr.mxu0 0.0
    %1858 = vmatpush2.msra.mxu0 0.0
    %1859 = vmatprep.subr.mxu0 0.0
    %1860 = vmatpush2.msra.mxu0 0.0
    %1861 = vmatprep.mubr.f32.mxu0 0.0
    %1862 = vmatmul.mubr.f32.gmra.mxu0 %v1792
    %v1863 = vpop.f32.mrf.mxu0
    %v1864 = vadd.f32 0.0, %v1863
    %v1865 = vpop.f32.mrf.mxu0
    %1866 = vdwg.mxu0
    %v1868 = vcombine.high %v1864, %v1864
    %v1870 = vunpack.c.l.s4 1966171168
    %v1871 = vunpack.c.0.s8 %v1870
    %v1872 = vlaneseq
    %v1873 = vshrl.u32 %v1872, 7
    %v1874 = vsub.s32 %v1871, %v1873
    %v1875 = vrot.slane %v1864, %v1874
    %v1877 = vunpack.c.l.s4 1966171168
    %v1878 = vunpack.c.0.s8 %v1877
    %v1879 = vlaneseq
    %v1880 = vshrl.u32 %v1879, 7
    %v1881 = vsub.s32 %v1878, %v1880
    %v1882 = vrot.slane %v1868, %v1881
    %v1883 = vcombine.high %v1875, %v1875
    %v1884 = vcombine.high %v1882, %v1882
    %v1886 = vunpack.c.l.s4 1966171168
    %v1887 = vunpack.c.0.s8 %v1886
    %v1888 = vlaneseq
    %v1889 = vshrl.u32 %v1888, 7
    %v1890 = vsub.s32 %v1887, %v1889
    %v1891 = vrot.slane %v1875, %v1890
    %v1893 = vunpack.c.l.s4 1966171168
    %v1894 = vunpack.c.0.s8 %v1893
    %v1895 = vlaneseq
    %v1896 = vshrl.u32 %v1895, 7
    %v1897 = vsub.s32 %v1894, %v1896
    %v1898 = vrot.slane %v1882, %v1897
    %v1900 = vunpack.c.l.s4 1966171168
    %v1901 = vunpack.c.0.s8 %v1900
    %v1902 = vlaneseq
    %v1903 = vshrl.u32 %v1902, 7
    %v1904 = vsub.s32 %v1901, %v1903
    %v1905 = vrot.slane %v1883, %v1904
    %v1907 = vunpack.c.l.s4 1966171168
    %v1908 = vunpack.c.0.s8 %v1907
    %v1909 = vlaneseq
    %v1910 = vshrl.u32 %v1909, 7
    %v1911 = vsub.s32 %v1908, %v1910
    %v1912 = vrot.slane %v1884, %v1911
    %v1913 = vcombine.high %v1891, %v1891
    %v1914 = vcombine.high %v1898, %v1898
    %v1915 = vcombine.high %v1905, %v1905
    %v1916 = vcombine.high %v1912, %v1912
    %v1917 = vlaneseq
    %v1918 = vshrl.u32 %v1917, 7
    %v1919 = vsub.s32 0, %v1918
    %v1920 = vrot.slane %v1891, %v1919
    %v1921 = vlaneseq
    %v1922 = vshrl.u32 %v1921, 7
    %v1923 = vsub.s32 0, %v1922
    %v1924 = vrot.slane %v1905, %v1923
    %v1925 = vlaneseq
    %v1926 = vshrl.u32 %v1925, 7
    %v1927 = vsub.s32 0, %v1926
    %v1928 = vrot.slane %v1913, %v1927
    %v1929 = vlaneseq
    %v1930 = vshrl.u32 %v1929, 7
    %v1931 = vsub.s32 0, %v1930
    %v1932 = vrot.slane %v1915, %v1931
    %v1933 = vlaneseq
    %v1934 = vshrl.u32 %v1933, 7
    %v1935 = vsub.s32 0, %v1934
    %v1936 = vrot.slane %v1898, %v1935
    %v1937 = vlaneseq
    %v1938 = vshrl.u32 %v1937, 7
    %v1939 = vsub.s32 0, %v1938
    %v1940 = vrot.slane %v1912, %v1939
    %v1941 = vlaneseq
    %v1942 = vshrl.u32 %v1941, 7
    %v1943 = vsub.s32 0, %v1942
    %v1944 = vrot.slane %v1914, %v1943
    %v1945 = vlaneseq
    %v1946 = vshrl.u32 %v1945, 7
    %v1947 = vsub.s32 0, %v1946
    %v1948 = vrot.slane %v1916, %v1947
    %v1957 = vadd.f32 %v129, %v1920
    %v1958 = vadd.f32 %v130, %v1924
    %v1959 = vadd.f32 %v131, %v1928
    %v1960 = vadd.f32 %v132, %v1932
    %v1961 = vadd.f32 %v133, %v1936
    %v1962 = vadd.f32 %v134, %v1940
    %v1963 = vadd.f32 %v135, %v1944
    %v1964 = vadd.f32 %v136, %v1948
    %v1965 = vtanh.pop %v1957
    %v1966 = vtanh.pop %v1958
    %v1967 = vtanh.pop %v1959
    %v1968 = vtanh.pop %v1960
    %v1969 = vtanh.pop %v1961
    %v1970 = vtanh.pop %v1962
    %v1971 = vtanh.pop %v1963
    %v1972 = vtanh.pop %v1964
    %v1973 = vmul.f32 %v1965, %v465
    %v1974 = vmul.f32 %v1966, %v465
    %v1975 = vmul.f32 %v1967, %v465
    %v1976 = vmul.f32 %v1968, %v465
    %v1977 = vmul.f32 %v1969, %v465
    %v1978 = vmul.f32 %v1970, %v465
    %v1979 = vmul.f32 %v1971, %v465
    %v1980 = vmul.f32 %v1972, %v465
    %v1981 = vsel %vm475, %v1973, 0.0
    %1982 = vadd.xlane.f32.xlu0 %v1981
    %v1983 = vpop.xlane.xlu0 %1982
    %v1984 = vsel %vm475, %v1974, 0.0
    %1985 = vadd.xlane.f32.xlu0 %v1984
    %v1986 = vpop.xlane.xlu0 %1985
    %v1987 = vsel %vm475, %v1975, 0.0
    %1988 = vadd.xlane.f32.xlu0 %v1987
    %v1989 = vpop.xlane.xlu0 %1988
    %v1990 = vsel %vm475, %v1976, 0.0
    %1991 = vadd.xlane.f32.xlu0 %v1990
    %v1992 = vpop.xlane.xlu0 %1991
    %v1993 = vsel %vm475, %v1977, 0.0
    %1994 = vadd.xlane.f32.xlu0 %v1993
    %v1995 = vpop.xlane.xlu0 %1994
    %v1996 = vsel %vm475, %v1978, 0.0
    %1997 = vadd.xlane.f32.xlu0 %v1996
    %v1998 = vpop.xlane.xlu0 %1997
    %v1999 = vsel %vm475, %v1979, 0.0
    %2000 = vadd.xlane.f32.xlu0 %v1999
    %v2001 = vpop.xlane.xlu0 %2000
    %v2002 = vsel %vm475, %v1980, 0.0
    %2003 = vadd.xlane.f32.xlu0 %v2002
    %v2004 = vpop.xlane.xlu0 %2003
    %v2013 = vlaneseq
    %v2014 = vshrl.u32 %v2013, 7
    %v2015 = vsub.s32 %v509, %v2014
    %v2016 = vrot.slane %v1983, %v2015
    %v2017 = vlaneseq
    %v2018 = vshrl.u32 %v2017, 7
    %v2019 = vsub.s32 %v509, %v2018
    %v2020 = vrot.slane %v1986, %v2019
    %v2021 = vlaneseq
    %v2022 = vshrl.u32 %v2021, 7
    %v2023 = vsub.s32 %v509, %v2022
    %v2024 = vrot.slane %v1989, %v2023
    %v2025 = vlaneseq
    %v2026 = vshrl.u32 %v2025, 7
    %v2027 = vsub.s32 %v509, %v2026
    %v2028 = vrot.slane %v1992, %v2027
    %v2029 = vlaneseq
    %v2030 = vshrl.u32 %v2029, 7
    %v2031 = vsub.s32 %v509, %v2030
    %v2032 = vrot.slane %v1995, %v2031
    %v2033 = vlaneseq
    %v2034 = vshrl.u32 %v2033, 7
    %v2035 = vsub.s32 %v509, %v2034
    %v2036 = vrot.slane %v1998, %v2035
    %v2037 = vlaneseq
    %v2038 = vshrl.u32 %v2037, 7
    %v2039 = vsub.s32 %v509, %v2038
    %v2040 = vrot.slane %v2001, %v2039
    %v2041 = vlaneseq
    %v2042 = vshrl.u32 %v2041, 7
    %v2043 = vsub.s32 %v509, %v2042
    %v2044 = vrot.slane %v2004, %v2043
    %v2045 = vsel %vm542, %v2020, %v2016
    %v2046 = vsel %vm544, %v2024, %v2045
    %v2047 = vsel %vm546, %v2028, %v2046
    %v2048 = vsel %vm548, %v2032, %v2047
    %v2049 = vsel %vm550, %v2036, %v2048
    %v2050 = vsel %vm552, %v2040, %v2049
    %v2051 = vsel %vm554, %v2044, %v2050
    %v2053 = vsel %vm557, %v2051, -inf
    %2054 = vmax.xlane.f32.xlu0 %v2053
    %v2055 = vpop.xlane.xlu0 %2054
    %v2057 = vlaneseq
    %v2058 = vshrl.u32 %v2057, 7
    %v2059 = vsub.s32 0, %v2058
    %v2060 = vrot.slane %v2055, %v2059
    %v2061 = vlaneseq
    %v2062 = vshrl.u32 %v2061, 7
    %v2063 = vsub.s32 1, %v2062
    %v2064 = vrot.slane %v2055, %v2063
    %v2065 = vlaneseq
    %v2066 = vshrl.u32 %v2065, 7
    %v2067 = vsub.s32 2, %v2066
    %v2068 = vrot.slane %v2055, %v2067
    %v2069 = vlaneseq
    %v2070 = vshrl.u32 %v2069, 7
    %v2071 = vsub.s32 3, %v2070
    %v2072 = vrot.slane %v2055, %v2071
    %v2073 = vlaneseq
    %v2074 = vshrl.u32 %v2073, 7
    %v2075 = vsub.s32 4, %v2074
    %v2076 = vrot.slane %v2055, %v2075
    %v2077 = vlaneseq
    %v2078 = vshrl.u32 %v2077, 7
    %v2079 = vsub.s32 5, %v2078
    %v2080 = vrot.slane %v2055, %v2079
    %v2081 = vlaneseq
    %v2082 = vshrl.u32 %v2081, 7
    %v2083 = vsub.s32 6, %v2082
    %v2084 = vrot.slane %v2055, %v2083
    %v2085 = vlaneseq
    %v2086 = vshrl.u32 %v2085, 7
    %v2087 = vsub.s32 7, %v2086
    %v2088 = vrot.slane %v2055, %v2087
    %v2097 = vsub.f32 %v1983, %v2060
    %v2098 = vsub.f32 %v1986, %v2064
    %v2099 = vsub.f32 %v1989, %v2068
    %v2100 = vsub.f32 %v1992, %v2072
    %v2101 = vsub.f32 %v1995, %v2076
    %v2102 = vsub.f32 %v1998, %v2080
    %v2103 = vsub.f32 %v2001, %v2084
    %v2104 = vsub.f32 %v2004, %v2088
    %v2105 = vmul.f32 %v2097, 1.442695
    %v2106 = vpow.pop %v2105
    %v2107 = vmul.f32 %v2098, 1.442695
    %v2108 = vpow.pop %v2107
    %v2109 = vmul.f32 %v2099, 1.442695
    %v2110 = vpow.pop %v2109
    %v2111 = vmul.f32 %v2100, 1.442695
    %v2112 = vpow.pop %v2111
    %v2113 = vmul.f32 %v2101, 1.442695
    %v2114 = vpow.pop %v2113
    %v2115 = vmul.f32 %v2102, 1.442695
    %v2116 = vpow.pop %v2115
    %v2117 = vmul.f32 %v2103, 1.442695
    %v2118 = vpow.pop %v2117
    %v2119 = vmul.f32 %v2104, 1.442695
    %v2120 = vpow.pop %v2119
    %2129 = vset.pattern.permute.xlu0 0
    %2130 = vperm.xlu0 %2129, %v2106
    %v2131 = vpop.permute.xlu0 %2130
    %2132 = vset.pattern.permute.xlu0 0
    %2133 = vperm.xlu0 %2132, %v2108
    %v2134 = vpop.permute.xlu0 %2133
    %2135 = vset.pattern.permute.xlu0 0
    %2136 = vperm.xlu0 %2135, %v2110
    %v2137 = vpop.permute.xlu0 %2136
    %2138 = vset.pattern.permute.xlu0 0
    %2139 = vperm.xlu0 %2138, %v2112
    %v2140 = vpop.permute.xlu0 %2139
    %2141 = vset.pattern.permute.xlu0 0
    %2142 = vperm.xlu0 %2141, %v2114
    %v2143 = vpop.permute.xlu0 %2142
    %2144 = vset.pattern.permute.xlu0 0
    %2145 = vperm.xlu0 %2144, %v2116
    %v2146 = vpop.permute.xlu0 %2145
    %2147 = vset.pattern.permute.xlu0 0
    %2148 = vperm.xlu0 %2147, %v2118
    %v2149 = vpop.permute.xlu0 %2148
    %2150 = vset.pattern.permute.xlu0 0
    %2151 = vperm.xlu0 %2150, %v2120
    %v2152 = vpop.permute.xlu0 %2151
    %v2153 = vlaneseq
    %v2154 = vshrl.u32 %v2153, 7
    %v2155 = vsub.s32 %v509, %v2154
    %v2156 = vrot.slane %v2131, %v2155
    %v2157 = vlaneseq
    %v2158 = vshrl.u32 %v2157, 7
    %v2159 = vsub.s32 %v509, %v2158
    %v2160 = vrot.slane %v2134, %v2159
    %v2161 = vlaneseq
    %v2162 = vshrl.u32 %v2161, 7
    %v2163 = vsub.s32 %v509, %v2162
    %v2164 = vrot.slane %v2137, %v2163
    %v2165 = vlaneseq
    %v2166 = vshrl.u32 %v2165, 7
    %v2167 = vsub.s32 %v509, %v2166
    %v2168 = vrot.slane %v2140, %v2167
    %v2169 = vlaneseq
    %v2170 = vshrl.u32 %v2169, 7
    %v2171 = vsub.s32 %v509, %v2170
    %v2172 = vrot.slane %v2143, %v2171
    %v2173 = vlaneseq
    %v2174 = vshrl.u32 %v2173, 7
    %v2175 = vsub.s32 %v509, %v2174
    %v2176 = vrot.slane %v2146, %v2175
    %v2177 = vlaneseq
    %v2178 = vshrl.u32 %v2177, 7
    %v2179 = vsub.s32 %v509, %v2178
    %v2180 = vrot.slane %v2149, %v2179
    %v2181 = vlaneseq
    %v2182 = vshrl.u32 %v2181, 7
    %v2183 = vsub.s32 %v509, %v2182
    %v2184 = vrot.slane %v2152, %v2183
    %v2185 = vsel %vm542, %v2160, %v2156
    %v2186 = vsel %vm544, %v2164, %v2185
    %v2187 = vsel %vm546, %v2168, %v2186
    %v2188 = vsel %vm548, %v2172, %v2187
    %v2189 = vsel %vm550, %v2176, %v2188
    %v2190 = vsel %vm552, %v2180, %v2189
    %v2191 = vsel %vm554, %v2184, %v2190
    %v2193 = vsel %vm557, %v2191, 0.0
    %2194 = vadd.xlane.f32.xlu0 %v2193
    %v2195 = vpop.xlane.xlu0 %2194
    %v2196 = vrcp.pop %v2195
    %v2198 = vlaneseq
    %v2199 = vshrl.u32 %v2198, 7
    %v2200 = vsub.s32 0, %v2199
    %v2201 = vrot.slane %v2196, %v2200
    %v2202 = vlaneseq
    %v2203 = vshrl.u32 %v2202, 7
    %v2204 = vsub.s32 1, %v2203
    %v2205 = vrot.slane %v2196, %v2204
    %v2206 = vlaneseq
    %v2207 = vshrl.u32 %v2206, 7
    %v2208 = vsub.s32 2, %v2207
    %v2209 = vrot.slane %v2196, %v2208
    %v2210 = vlaneseq
    %v2211 = vshrl.u32 %v2210, 7
    %v2212 = vsub.s32 3, %v2211
    %v2213 = vrot.slane %v2196, %v2212
    %v2214 = vlaneseq
    %v2215 = vshrl.u32 %v2214, 7
    %v2216 = vsub.s32 4, %v2215
    %v2217 = vrot.slane %v2196, %v2216
    %v2218 = vlaneseq
    %v2219 = vshrl.u32 %v2218, 7
    %v2220 = vsub.s32 5, %v2219
    %v2221 = vrot.slane %v2196, %v2220
    %v2222 = vlaneseq
    %v2223 = vshrl.u32 %v2222, 7
    %v2224 = vsub.s32 6, %v2223
    %v2225 = vrot.slane %v2196, %v2224
    %v2226 = vlaneseq
    %v2227 = vshrl.u32 %v2226, 7
    %v2228 = vsub.s32 7, %v2227
    %v2229 = vrot.slane %v2196, %v2228
    %v2238 = vmul.f32 %v2106, %v2201
    %v2239 = vmul.f32 %v2108, %v2205
    %v2240 = vmul.f32 %v2110, %v2209
    %v2241 = vmul.f32 %v2112, %v2213
    %v2242 = vmul.f32 %v2114, %v2217
    %v2243 = vmul.f32 %v2116, %v2221
    %v2244 = vmul.f32 %v2118, %v2225
    %v2245 = vmul.f32 %v2120, %v2229
    %2247 = vset.pattern.permute.xlu0 0
    %2248 = vperm.xlu0 %2247, %v2238
    %v2249 = vpop.permute.xlu0 %2248
    %2252 = vset.pattern.permute.xlu0 0
    %2253 = vperm.xlu0 %2252, %v2239
    %v2254 = vpop.permute.xlu0 %2253
    %2257 = vset.pattern.permute.xlu0 0
    %2258 = vperm.xlu0 %2257, %v2240
    %v2259 = vpop.permute.xlu0 %2258
    %2262 = vset.pattern.permute.xlu0 0
    %2263 = vperm.xlu0 %2262, %v2241
    %v2264 = vpop.permute.xlu0 %2263
    %2267 = vset.pattern.permute.xlu0 0
    %2268 = vperm.xlu0 %2267, %v2242
    %v2269 = vpop.permute.xlu0 %2268
    %2272 = vset.pattern.permute.xlu0 0
    %2273 = vperm.xlu0 %2272, %v2243
    %v2274 = vpop.permute.xlu0 %2273
    %2277 = vset.pattern.permute.xlu0 0
    %2278 = vperm.xlu0 %2277, %v2244
    %v2279 = vpop.permute.xlu0 %2278
    %2282 = vset.pattern.permute.xlu0 0
    %2283 = vperm.xlu0 %2282, %v2245
    %v2284 = vpop.permute.xlu0 %2283
    %v2286 = vmul.f32 %v2249, %v121
    %v2287 = vmul.f32 %v2254, %v122
    %v2288 = vmul.f32 %v2259, %v123
    %v2289 = vmul.f32 %v2264, %v124
    %v2290 = vmul.f32 %v2269, %v125
    %v2291 = vmul.f32 %v2274, %v126
    %v2292 = vmul.f32 %v2279, %v127
    %v2293 = vmul.f32 %v2284, %v128
    %v2294 = vrot.slane %v2286, 4
    %v2295 = vadd.f32 %v2286, %v2294
    %v2296 = vrot.slane %v2295, 2
    %v2297 = vadd.f32 %v2295, %v2296
    %v2298 = vrot.slane %v2297, 1
    %v2299 = vadd.f32 %v2297, %v2298
    %v2300 = vrot.slane %v2287, 4
    %v2301 = vadd.f32 %v2287, %v2300
    %v2302 = vrot.slane %v2301, 2
    %v2303 = vadd.f32 %v2301, %v2302
    %v2304 = vrot.slane %v2303, 1
    %v2305 = vadd.f32 %v2303, %v2304
    %v2306 = vrot.slane %v2288, 4
    %v2307 = vadd.f32 %v2288, %v2306
    %v2308 = vrot.slane %v2307, 2
    %v2309 = vadd.f32 %v2307, %v2308
    %v2310 = vrot.slane %v2309, 1
    %v2311 = vadd.f32 %v2309, %v2310
    %v2312 = vrot.slane %v2289, 4
    %v2313 = vadd.f32 %v2289, %v2312
    %v2314 = vrot.slane %v2313, 2
    %v2315 = vadd.f32 %v2313, %v2314
    %v2316 = vrot.slane %v2315, 1
    %v2317 = vadd.f32 %v2315, %v2316
    %v2318 = vrot.slane %v2290, 4
    %v2319 = vadd.f32 %v2290, %v2318
    %v2320 = vrot.slane %v2319, 2
    %v2321 = vadd.f32 %v2319, %v2320
    %v2322 = vrot.slane %v2321, 1
    %v2323 = vadd.f32 %v2321, %v2322
    %v2324 = vrot.slane %v2291, 4
    %v2325 = vadd.f32 %v2291, %v2324
    %v2326 = vrot.slane %v2325, 2
    %v2327 = vadd.f32 %v2325, %v2326
    %v2328 = vrot.slane %v2327, 1
    %v2329 = vadd.f32 %v2327, %v2328
    %v2330 = vrot.slane %v2292, 4
    %v2331 = vadd.f32 %v2292, %v2330
    %v2332 = vrot.slane %v2331, 2
    %v2333 = vadd.f32 %v2331, %v2332
    %v2334 = vrot.slane %v2333, 1
    %v2335 = vadd.f32 %v2333, %v2334
    %v2336 = vrot.slane %v2293, 4
    %v2337 = vadd.f32 %v2293, %v2336
    %v2338 = vrot.slane %v2337, 2
    %v2339 = vadd.f32 %v2337, %v2338
    %v2340 = vrot.slane %v2339, 1
    %v2341 = vadd.f32 %v2339, %v2340
    %v2350 = vsel %vm542, %v2305, %v2299
    %v2351 = vsel %vm544, %v2311, %v2350
    %v2352 = vsel %vm546, %v2317, %v2351
    %v2353 = vsel %vm548, %v2323, %v2352
    %v2354 = vsel %vm550, %v2329, %v2353
    %v2355 = vsel %vm552, %v2335, %v2354
    %v2356 = vsel %vm554, %v2341, %v2355
    %s2358 = scalar_lea.vmem %s4, 64
    %v2359 = vld [vmem:[%s2358] sm:$0xff]
    %v2360 = vld [vmem:[%s2358 + $0x8] sm:$0xff]
    %v2361 = vld [vmem:[%s2358 + $0x10] sm:$0xff]
    %v2362 = vld [vmem:[%s2358 + $0x18] sm:$0xff]
    %2363 = vmatprep.subr.mxu0 %v215
    %2364 = vmatpush1.msra.mxu0 %v214
    %2365 = vmatprep.subr.mxu0 %v211
    %2366 = vmatpush1.msra.mxu0 %v210
    %2367 = vmatprep.subr.mxu0 %v207
    %2368 = vmatpush1.msra.mxu0 %v206
    %2369 = vmatprep.subr.mxu0 %v203
    %2370 = vmatpush1.msra.mxu0 %v202
    %2371 = vmatprep.subr.mxu0 %v199
    %2372 = vmatpush1.msra.mxu0 %v198
    %2373 = vmatprep.subr.mxu0 %v195
    %2374 = vmatpush1.msra.mxu0 %v194
    %2375 = vmatprep.subr.mxu0 %v191
    %2376 = vmatpush1.msra.mxu0 %v190
    %2377 = vmatprep.subr.mxu0 %v187
    %2378 = vmatpush1.msra.mxu0 %v186
    %2379 = vmatprep.subr.mxu0 %v183
    %2380 = vmatpush1.msra.mxu0 %v182
    %2381 = vmatprep.subr.mxu0 %v179
    %2382 = vmatpush1.msra.mxu0 %v178
    %2383 = vmatprep.subr.mxu0 %v175
    %2384 = vmatpush1.msra.mxu0 %v174
    %2385 = vmatprep.subr.mxu0 %v171
    %2386 = vmatpush1.msra.mxu0 %v170
    %2387 = vmatprep.subr.mxu0 %v167
    %2388 = vmatpush1.msra.mxu0 %v166
    %2389 = vmatprep.subr.mxu0 %v163
    %2390 = vmatpush1.msra.mxu0 %v162
    %2391 = vmatprep.subr.mxu0 %v159
    %2392 = vmatpush1.msra.mxu0 %v158
    %2393 = vmatprep.subr.mxu0 %v155
    %2394 = vmatpush1.msra.mxu0 %v154
    %2395 = vmatprep.subr.mxu0 %v279
    %2396 = vmatpush2.msra.mxu0 %v278
    %2397 = vmatprep.subr.mxu0 %v275
    %2398 = vmatpush2.msra.mxu0 %v274
    %2399 = vmatprep.subr.mxu0 %v271
    %2400 = vmatpush2.msra.mxu0 %v270
    %2401 = vmatprep.subr.mxu0 %v267
    %2402 = vmatpush2.msra.mxu0 %v266
    %2403 = vmatprep.subr.mxu0 %v263
    %2404 = vmatpush2.msra.mxu0 %v262
    %2405 = vmatprep.subr.mxu0 %v259
    %2406 = vmatpush2.msra.mxu0 %v258
    %2407 = vmatprep.subr.mxu0 %v255
    %2408 = vmatpush2.msra.mxu0 %v254
    %2409 = vmatprep.subr.mxu0 %v251
    %2410 = vmatpush2.msra.mxu0 %v250
    %2411 = vmatprep.subr.mxu0 %v247
    %2412 = vmatpush2.msra.mxu0 %v246
    %2413 = vmatprep.subr.mxu0 %v243
    %2414 = vmatpush2.msra.mxu0 %v242
    %2415 = vmatprep.subr.mxu0 %v239
    %2416 = vmatpush2.msra.mxu0 %v238
    %2417 = vmatprep.subr.mxu0 %v235
    %2418 = vmatpush2.msra.mxu0 %v234
    %2419 = vmatprep.subr.mxu0 %v231
    %2420 = vmatpush2.msra.mxu0 %v230
    %2421 = vmatprep.subr.mxu0 %v227
    %2422 = vmatpush2.msra.mxu0 %v226
    %2423 = vmatprep.subr.mxu0 %v223
    %2424 = vmatpush2.msra.mxu0 %v222
    %2425 = vmatprep.subr.mxu0 %v219
    %2426 = vmatpush2.msra.mxu0 %v218
    %2427 = vmatprep.mubr.f32.mxu0 %v1794
    %2428 = vmatmul.mubr.f32.gmra.mxu0 %v2356
    %v2429 = vpop.f32.mrf.mxu0
    %v2430 = vadd.f32 %v2359, %v2429
    %v2431 = vpop.f32.mrf.mxu0
    %v2432 = vadd.f32 %v2360, %v2431
    %2433 = vdwg.mxu0
    %2434 = vmatprep.subr.mxu0 %v217
    %2435 = vmatpush1.msra.mxu0 %v216
    %2436 = vmatprep.subr.mxu0 %v213
    %2437 = vmatpush1.msra.mxu0 %v212
    %2438 = vmatprep.subr.mxu0 %v209
    %2439 = vmatpush1.msra.mxu0 %v208
    %2440 = vmatprep.subr.mxu0 %v205
    %2441 = vmatpush1.msra.mxu0 %v204
    %2442 = vmatprep.subr.mxu0 %v201
    %2443 = vmatpush1.msra.mxu0 %v200
    %2444 = vmatprep.subr.mxu0 %v197
    %2445 = vmatpush1.msra.mxu0 %v196
    %2446 = vmatprep.subr.mxu0 %v193
    %2447 = vmatpush1.msra.mxu0 %v192
    %2448 = vmatprep.subr.mxu0 %v189
    %2449 = vmatpush1.msra.mxu0 %v188
    %2450 = vmatprep.subr.mxu0 %v185
    %2451 = vmatpush1.msra.mxu0 %v184
    %2452 = vmatprep.subr.mxu0 %v181
    %2453 = vmatpush1.msra.mxu0 %v180
    %2454 = vmatprep.subr.mxu0 %v177
    %2455 = vmatpush1.msra.mxu0 %v176
    %2456 = vmatprep.subr.mxu0 %v173
    %2457 = vmatpush1.msra.mxu0 %v172
    %2458 = vmatprep.subr.mxu0 %v169
    %2459 = vmatpush1.msra.mxu0 %v168
    %2460 = vmatprep.subr.mxu0 %v165
    %2461 = vmatpush1.msra.mxu0 %v164
    %2462 = vmatprep.subr.mxu0 %v161
    %2463 = vmatpush1.msra.mxu0 %v160
    %2464 = vmatprep.subr.mxu0 %v157
    %2465 = vmatpush1.msra.mxu0 %v156
    %2466 = vmatprep.subr.mxu0 %v281
    %2467 = vmatpush2.msra.mxu0 %v280
    %2468 = vmatprep.subr.mxu0 %v277
    %2469 = vmatpush2.msra.mxu0 %v276
    %2470 = vmatprep.subr.mxu0 %v273
    %2471 = vmatpush2.msra.mxu0 %v272
    %2472 = vmatprep.subr.mxu0 %v269
    %2473 = vmatpush2.msra.mxu0 %v268
    %2474 = vmatprep.subr.mxu0 %v265
    %2475 = vmatpush2.msra.mxu0 %v264
    %2476 = vmatprep.subr.mxu0 %v261
    %2477 = vmatpush2.msra.mxu0 %v260
    %2478 = vmatprep.subr.mxu0 %v257
    %2479 = vmatpush2.msra.mxu0 %v256
    %2480 = vmatprep.subr.mxu0 %v253
    %2481 = vmatpush2.msra.mxu0 %v252
    %2482 = vmatprep.subr.mxu0 %v249
    %2483 = vmatpush2.msra.mxu0 %v248
    %2484 = vmatprep.subr.mxu0 %v245
    %2485 = vmatpush2.msra.mxu0 %v244
    %2486 = vmatprep.subr.mxu0 %v241
    %2487 = vmatpush2.msra.mxu0 %v240
    %2488 = vmatprep.subr.mxu0 %v237
    %2489 = vmatpush2.msra.mxu0 %v236
    %2490 = vmatprep.subr.mxu0 %v233
    %2491 = vmatpush2.msra.mxu0 %v232
    %2492 = vmatprep.subr.mxu0 %v229
    %2493 = vmatpush2.msra.mxu0 %v228
    %2494 = vmatprep.subr.mxu0 %v225
    %2495 = vmatpush2.msra.mxu0 %v224
    %2496 = vmatprep.subr.mxu0 %v221
    %2497 = vmatpush2.msra.mxu0 %v220
    %2498 = vmatprep.mubr.f32.mxu0 %v1794
    %2499 = vmatmul.mubr.f32.gmra.mxu0 %v2356
    %v2500 = vpop.f32.mrf.mxu0
    %v2501 = vadd.f32 %v2361, %v2500
    %v2502 = vpop.f32.mrf.mxu0
    %v2503 = vadd.f32 %v2362, %v2502
    %2504 = vdwg.mxu0
    %v2505 = vadd.f32 %v2430, %v1013
    %v2506 = vadd.f32 %v2432, %v1017
    %v2507 = vadd.f32 %v2501, %v1021
    %v2508 = vadd.f32 %v2503, %v1025
    %v2509 = vxor.u32 %v2505, 2147483648
    %v2510 = vmul.f32 %v2509, 1.442695
    %v2511 = vpow.pop %v2510
    %v2512 = vadd.f32 %v2511, 1.0
    %v2513 = vrcp.pop %v2512
    %v2514 = vmul.f32 1.0, %v2513
    %v2515 = vxor.u32 %v2506, 2147483648
    %v2516 = vmul.f32 %v2515, 1.442695
    %v2517 = vpow.pop %v2516
    %v2518 = vadd.f32 %v2517, 1.0
    %v2519 = vrcp.pop %v2518
    %v2520 = vmul.f32 1.0, %v2519
    %v2521 = vtanh.pop %v2507
    %v2522 = vxor.u32 %v2508, 2147483648
    %v2523 = vmul.f32 %v2522, 1.442695
    %v2524 = vpow.pop %v2523
    %v2525 = vadd.f32 %v2524, 1.0
    %v2526 = vrcp.pop %v2525
    %v2527 = vmul.f32 1.0, %v2526
    %v2528 = vmul.f32 %v2520, %v1792
    %v2529 = vmul.f32 %v2514, %v2521
    %v2530 = vadd.f32 %v2528, %v2529
    %v2531 = vtanh.pop %v2530
    %v2532 = vmul.f32 %v2527, %v2531
    %s2533 = scalar_lea.vmem [#allocation2], 16
    %2534 = vst [vmem:[%s2533] sm:$0xff] %v2532
    %2535 = vmatprep.subr.mxu0 0.0
    %2536 = vmatpush1.msra.mxu0 %v153
    %2537 = vmatprep.subr.mxu0 0.0
    %2538 = vmatpush1.msra.mxu0 %v152
    %2539 = vmatprep.subr.mxu0 0.0
    %2540 = vmatpush1.msra.mxu0 %v151
    %2541 = vmatprep.subr.mxu0 0.0
    %2542 = vmatpush1.msra.mxu0 %v150
    %2543 = vmatprep.subr.mxu0 0.0
    %2544 = vmatpush1.msra.mxu0 %v149
    %2545 = vmatprep.subr.mxu0 0.0
    %2546 = vmatpush1.msra.mxu0 %v148
    %2547 = vmatprep.subr.mxu0 0.0
    %2548 = vmatpush1.msra.mxu0 %v147
    %2549 = vmatprep.subr.mxu0 0.0
    %2550 = vmatpush1.msra.mxu0 %v146
    %2551 = vmatprep.subr.mxu0 0.0
    %2552 = vmatpush1.msra.mxu0 %v145
    %2553 = vmatprep.subr.mxu0 0.0
    %2554 = vmatpush1.msra.mxu0 %v144
    %2555 = vmatprep.subr.mxu0 0.0
    %2556 = vmatpush1.msra.mxu0 %v143
    %2557 = vmatprep.subr.mxu0 0.0
    %2558 = vmatpush1.msra.mxu0 %v142
    %2559 = vmatprep.subr.mxu0 0.0
    %2560 = vmatpush1.msra.mxu0 %v141
    %2561 = vmatprep.subr.mxu0 0.0
    %2562 = vmatpush1.msra.mxu0 %v140
    %2563 = vmatprep.subr.mxu0 0.0
    %2564 = vmatpush1.msra.mxu0 %v139
    %2565 = vmatprep.subr.mxu0 0.0
    %2566 = vmatpush1.msra.mxu0 %v138
    %2567 = vmatprep.subr.mxu0 0.0
    %2568 = vmatpush2.msra.mxu0 0.0
    %2569 = vmatprep.subr.mxu0 0.0
    %2570 = vmatpush2.msra.mxu0 0.0
    %2571 = vmatprep.subr.mxu0 0.0
    %2572 = vmatpush2.msra.mxu0 0.0
    %2573 = vmatprep.subr.mxu0 0.0
    %2574 = vmatpush2.msra.mxu0 0.0
    %2575 = vmatprep.subr.mxu0 0.0
    %2576 = vmatpush2.msra.mxu0 0.0
    %2577 = vmatprep.subr.mxu0 0.0
    %2578 = vmatpush2.msra.mxu0 0.0
    %2579 = vmatprep.subr.mxu0 0.0
    %2580 = vmatpush2.msra.mxu0 0.0
    %2581 = vmatprep.subr.mxu0 0.0
    %2582 = vmatpush2.msra.mxu0 0.0
    %2583 = vmatprep.subr.mxu0 0.0
    %2584 = vmatpush2.msra.mxu0 0.0
    %2585 = vmatprep.subr.mxu0 0.0
    %2586 = vmatpush2.msra.mxu0 0.0
    %2587 = vmatprep.subr.mxu0 0.0
    %2588 = vmatpush2.msra.mxu0 0.0
    %2589 = vmatprep.subr.mxu0 0.0
    %2590 = vmatpush2.msra.mxu0 0.0
    %2591 = vmatprep.subr.mxu0 0.0
    %2592 = vmatpush2.msra.mxu0 0.0
    %2593 = vmatprep.subr.mxu0 0.0
    %2594 = vmatpush2.msra.mxu0 0.0
    %2595 = vmatprep.subr.mxu0 0.0
    %2596 = vmatpush2.msra.mxu0 0.0
    %2597 = vmatprep.subr.mxu0 0.0
    %2598 = vmatpush2.msra.mxu0 0.0
    %2599 = vmatprep.mubr.f32.mxu0 0.0
    %2600 = vmatmul.mubr.f32.gmra.mxu0 %v2530
    %v2601 = vpop.f32.mrf.mxu0
    %v2602 = vadd.f32 0.0, %v2601
    %v2603 = vpop.f32.mrf.mxu0
    %2604 = vdwg.mxu0
    %v2606 = vcombine.high %v2602, %v2602
    %v2608 = vunpack.c.l.s4 1966171168
    %v2609 = vunpack.c.0.s8 %v2608
    %v2610 = vlaneseq
    %v2611 = vshrl.u32 %v2610, 7
    %v2612 = vsub.s32 %v2609, %v2611
    %v2613 = vrot.slane %v2602, %v2612
    %v2615 = vunpack.c.l.s4 1966171168
    %v2616 = vunpack.c.0.s8 %v2615
    %v2617 = vlaneseq
    %v2618 = vshrl.u32 %v2617, 7
    %v2619 = vsub.s32 %v2616, %v2618
    %v2620 = vrot.slane %v2606, %v2619
    %v2621 = vcombine.high %v2613, %v2613
    %v2622 = vcombine.high %v2620, %v2620
    %v2624 = vunpack.c.l.s4 1966171168
    %v2625 = vunpack.c.0.s8 %v2624
    %v2626 = vlaneseq
    %v2627 = vshrl.u32 %v2626, 7
    %v2628 = vsub.s32 %v2625, %v2627
    %v2629 = vrot.slane %v2613, %v2628
    %v2631 = vunpack.c.l.s4 1966171168
    %v2632 = vunpack.c.0.s8 %v2631
    %v2633 = vlaneseq
    %v2634 = vshrl.u32 %v2633, 7
    %v2635 = vsub.s32 %v2632, %v2634
    %v2636 = vrot.slane %v2620, %v2635
    %v2638 = vunpack.c.l.s4 1966171168
    %v2639 = vunpack.c.0.s8 %v2638
    %v2640 = vlaneseq
    %v2641 = vshrl.u32 %v2640, 7
    %v2642 = vsub.s32 %v2639, %v2641
    %v2643 = vrot.slane %v2621, %v2642
    %v2645 = vunpack.c.l.s4 1966171168
    %v2646 = vunpack.c.0.s8 %v2645
    %v2647 = vlaneseq
    %v2648 = vshrl.u32 %v2647, 7
    %v2649 = vsub.s32 %v2646, %v2648
    %v2650 = vrot.slane %v2622, %v2649
    %v2651 = vcombine.high %v2629, %v2629
    %v2652 = vcombine.high %v2636, %v2636
    %v2653 = vcombine.high %v2643, %v2643
    %v2654 = vcombine.high %v2650, %v2650
    %v2655 = vlaneseq
    %v2656 = vshrl.u32 %v2655, 7
    %v2657 = vsub.s32 0, %v2656
    %v2658 = vrot.slane %v2629, %v2657
    %v2659 = vlaneseq
    %v2660 = vshrl.u32 %v2659, 7
    %v2661 = vsub.s32 0, %v2660
    %v2662 = vrot.slane %v2643, %v2661
    %v2663 = vlaneseq
    %v2664 = vshrl.u32 %v2663, 7
    %v2665 = vsub.s32 0, %v2664
    %v2666 = vrot.slane %v2651, %v2665
    %v2667 = vlaneseq
    %v2668 = vshrl.u32 %v2667, 7
    %v2669 = vsub.s32 0, %v2668
    %v2670 = vrot.slane %v2653, %v2669
    %v2671 = vlaneseq
    %v2672 = vshrl.u32 %v2671, 7
    %v2673 = vsub.s32 0, %v2672
    %v2674 = vrot.slane %v2636, %v2673
    %v2675 = vlaneseq
    %v2676 = vshrl.u32 %v2675, 7
    %v2677 = vsub.s32 0, %v2676
    %v2678 = vrot.slane %v2650, %v2677
    %v2679 = vlaneseq
    %v2680 = vshrl.u32 %v2679, 7
    %v2681 = vsub.s32 0, %v2680
    %v2682 = vrot.slane %v2652, %v2681
    %v2683 = vlaneseq
    %v2684 = vshrl.u32 %v2683, 7
    %v2685 = vsub.s32 0, %v2684
    %v2686 = vrot.slane %v2654, %v2685
    %v2695 = vadd.f32 %v129, %v2658
    %v2696 = vadd.f32 %v130, %v2662
    %v2697 = vadd.f32 %v131, %v2666
    %v2698 = vadd.f32 %v132, %v2670
    %v2699 = vadd.f32 %v133, %v2674
    %v2700 = vadd.f32 %v134, %v2678
    %v2701 = vadd.f32 %v135, %v2682
    %v2702 = vadd.f32 %v136, %v2686
    %v2703 = vtanh.pop %v2695
    %v2704 = vtanh.pop %v2696
    %v2705 = vtanh.pop %v2697
    %v2706 = vtanh.pop %v2698
    %v2707 = vtanh.pop %v2699
    %v2708 = vtanh.pop %v2700
    %v2709 = vtanh.pop %v2701
    %v2710 = vtanh.pop %v2702
    %v2711 = vmul.f32 %v2703, %v465
    %v2712 = vmul.f32 %v2704, %v465
    %v2713 = vmul.f32 %v2705, %v465
    %v2714 = vmul.f32 %v2706, %v465
    %v2715 = vmul.f32 %v2707, %v465
    %v2716 = vmul.f32 %v2708, %v465
    %v2717 = vmul.f32 %v2709, %v465
    %v2718 = vmul.f32 %v2710, %v465
    %v2719 = vsel %vm475, %v2711, 0.0
    %2720 = vadd.xlane.f32.xlu0 %v2719
    %v2721 = vpop.xlane.xlu0 %2720
    %v2722 = vsel %vm475, %v2712, 0.0
    %2723 = vadd.xlane.f32.xlu0 %v2722
    %v2724 = vpop.xlane.xlu0 %2723
    %v2725 = vsel %vm475, %v2713, 0.0
    %2726 = vadd.xlane.f32.xlu0 %v2725
    %v2727 = vpop.xlane.xlu0 %2726
    %v2728 = vsel %vm475, %v2714, 0.0
    %2729 = vadd.xlane.f32.xlu0 %v2728
    %v2730 = vpop.xlane.xlu0 %2729
    %v2731 = vsel %vm475, %v2715, 0.0
    %2732 = vadd.xlane.f32.xlu0 %v2731
    %v2733 = vpop.xlane.xlu0 %2732
    %v2734 = vsel %vm475, %v2716, 0.0
    %2735 = vadd.xlane.f32.xlu0 %v2734
    %v2736 = vpop.xlane.xlu0 %2735
    %v2737 = vsel %vm475, %v2717, 0.0
    %2738 = vadd.xlane.f32.xlu0 %v2737
    %v2739 = vpop.xlane.xlu0 %2738
    %v2740 = vsel %vm475, %v2718, 0.0
    %2741 = vadd.xlane.f32.xlu0 %v2740
    %v2742 = vpop.xlane.xlu0 %2741
    %v2751 = vlaneseq
    %v2752 = vshrl.u32 %v2751, 7
    %v2753 = vsub.s32 %v509, %v2752
    %v2754 = vrot.slane %v2721, %v2753
    %v2755 = vlaneseq
    %v2756 = vshrl.u32 %v2755, 7
    %v2757 = vsub.s32 %v509, %v2756
    %v2758 = vrot.slane %v2724, %v2757
    %v2759 = vlaneseq
    %v2760 = vshrl.u32 %v2759, 7
    %v2761 = vsub.s32 %v509, %v2760
    %v2762 = vrot.slane %v2727, %v2761
    %v2763 = vlaneseq
    %v2764 = vshrl.u32 %v2763, 7
    %v2765 = vsub.s32 %v509, %v2764
    %v2766 = vrot.slane %v2730, %v2765
    %v2767 = vlaneseq
    %v2768 = vshrl.u32 %v2767, 7
    %v2769 = vsub.s32 %v509, %v2768
    %v2770 = vrot.slane %v2733, %v2769
    %v2771 = vlaneseq
    %v2772 = vshrl.u32 %v2771, 7
    %v2773 = vsub.s32 %v509, %v2772
    %v2774 = vrot.slane %v2736, %v2773
    %v2775 = vlaneseq
    %v2776 = vshrl.u32 %v2775, 7
    %v2777 = vsub.s32 %v509, %v2776
    %v2778 = vrot.slane %v2739, %v2777
    %v2779 = vlaneseq
    %v2780 = vshrl.u32 %v2779, 7
    %v2781 = vsub.s32 %v509, %v2780
    %v2782 = vrot.slane %v2742, %v2781
    %v2783 = vsel %vm542, %v2758, %v2754
    %v2784 = vsel %vm544, %v2762, %v2783
    %v2785 = vsel %vm546, %v2766, %v2784
    %v2786 = vsel %vm548, %v2770, %v2785
    %v2787 = vsel %vm550, %v2774, %v2786
    %v2788 = vsel %vm552, %v2778, %v2787
    %v2789 = vsel %vm554, %v2782, %v2788
    %v2791 = vsel %vm557, %v2789, -inf
    %2792 = vmax.xlane.f32.xlu0 %v2791
    %v2793 = vpop.xlane.xlu0 %2792
    %v2795 = vlaneseq
    %v2796 = vshrl.u32 %v2795, 7
    %v2797 = vsub.s32 0, %v2796
    %v2798 = vrot.slane %v2793, %v2797
    %v2799 = vlaneseq
    %v2800 = vshrl.u32 %v2799, 7
    %v2801 = vsub.s32 1, %v2800
    %v2802 = vrot.slane %v2793, %v2801
    %v2803 = vlaneseq
    %v2804 = vshrl.u32 %v2803, 7
    %v2805 = vsub.s32 2, %v2804
    %v2806 = vrot.slane %v2793, %v2805
    %v2807 = vlaneseq
    %v2808 = vshrl.u32 %v2807, 7
    %v2809 = vsub.s32 3, %v2808
    %v2810 = vrot.slane %v2793, %v2809
    %v2811 = vlaneseq
    %v2812 = vshrl.u32 %v2811, 7
    %v2813 = vsub.s32 4, %v2812
    %v2814 = vrot.slane %v2793, %v2813
    %v2815 = vlaneseq
    %v2816 = vshrl.u32 %v2815, 7
    %v2817 = vsub.s32 5, %v2816
    %v2818 = vrot.slane %v2793, %v2817
    %v2819 = vlaneseq
    %v2820 = vshrl.u32 %v2819, 7
    %v2821 = vsub.s32 6, %v2820
    %v2822 = vrot.slane %v2793, %v2821
    %v2823 = vlaneseq
    %v2824 = vshrl.u32 %v2823, 7
    %v2825 = vsub.s32 7, %v2824
    %v2826 = vrot.slane %v2793, %v2825
    %v2835 = vsub.f32 %v2721, %v2798
    %v2836 = vsub.f32 %v2724, %v2802
    %v2837 = vsub.f32 %v2727, %v2806
    %v2838 = vsub.f32 %v2730, %v2810
    %v2839 = vsub.f32 %v2733, %v2814
    %v2840 = vsub.f32 %v2736, %v2818
    %v2841 = vsub.f32 %v2739, %v2822
    %v2842 = vsub.f32 %v2742, %v2826
    %v2843 = vmul.f32 %v2835, 1.442695
    %v2844 = vpow.pop %v2843
    %v2845 = vmul.f32 %v2836, 1.442695
    %v2846 = vpow.pop %v2845
    %v2847 = vmul.f32 %v2837, 1.442695
    %v2848 = vpow.pop %v2847
    %v2849 = vmul.f32 %v2838, 1.442695
    %v2850 = vpow.pop %v2849
    %v2851 = vmul.f32 %v2839, 1.442695
    %v2852 = vpow.pop %v2851
    %v2853 = vmul.f32 %v2840, 1.442695
    %v2854 = vpow.pop %v2853
    %v2855 = vmul.f32 %v2841, 1.442695
    %v2856 = vpow.pop %v2855
    %v2857 = vmul.f32 %v2842, 1.442695
    %v2858 = vpow.pop %v2857
    %2867 = vset.pattern.permute.xlu0 0
    %2868 = vperm.xlu0 %2867, %v2844
    %v2869 = vpop.permute.xlu0 %2868
    %2870 = vset.pattern.permute.xlu0 0
    %2871 = vperm.xlu0 %2870, %v2846
    %v2872 = vpop.permute.xlu0 %2871
    %2873 = vset.pattern.permute.xlu0 0
    %2874 = vperm.xlu0 %2873, %v2848
    %v2875 = vpop.permute.xlu0 %2874
    %2876 = vset.pattern.permute.xlu0 0
    %2877 = vperm.xlu0 %2876, %v2850
    %v2878 = vpop.permute.xlu0 %2877
    %2879 = vset.pattern.permute.xlu0 0
    %2880 = vperm.xlu0 %2879, %v2852
    %v2881 = vpop.permute.xlu0 %2880
    %2882 = vset.pattern.permute.xlu0 0
    %2883 = vperm.xlu0 %2882, %v2854
    %v2884 = vpop.permute.xlu0 %2883
    %2885 = vset.pattern.permute.xlu0 0
    %2886 = vperm.xlu0 %2885, %v2856
    %v2887 = vpop.permute.xlu0 %2886
    %2888 = vset.pattern.permute.xlu0 0
    %2889 = vperm.xlu0 %2888, %v2858
    %v2890 = vpop.permute.xlu0 %2889
    %v2891 = vlaneseq
    %v2892 = vshrl.u32 %v2891, 7
    %v2893 = vsub.s32 %v509, %v2892
    %v2894 = vrot.slane %v2869, %v2893
    %v2895 = vlaneseq
    %v2896 = vshrl.u32 %v2895, 7
    %v2897 = vsub.s32 %v509, %v2896
    %v2898 = vrot.slane %v2872, %v2897
    %v2899 = vlaneseq
    %v2900 = vshrl.u32 %v2899, 7
    %v2901 = vsub.s32 %v509, %v2900
    %v2902 = vrot.slane %v2875, %v2901
    %v2903 = vlaneseq
    %v2904 = vshrl.u32 %v2903, 7
    %v2905 = vsub.s32 %v509, %v2904
    %v2906 = vrot.slane %v2878, %v2905
    %v2907 = vlaneseq
    %v2908 = vshrl.u32 %v2907, 7
    %v2909 = vsub.s32 %v509, %v2908
    %v2910 = vrot.slane %v2881, %v2909
    %v2911 = vlaneseq
    %v2912 = vshrl.u32 %v2911, 7
    %v2913 = vsub.s32 %v509, %v2912
    %v2914 = vrot.slane %v2884, %v2913
    %v2915 = vlaneseq
    %v2916 = vshrl.u32 %v2915, 7
    %v2917 = vsub.s32 %v509, %v2916
    %v2918 = vrot.slane %v2887, %v2917
    %v2919 = vlaneseq
    %v2920 = vshrl.u32 %v2919, 7
    %v2921 = vsub.s32 %v509, %v2920
    %v2922 = vrot.slane %v2890, %v2921
    %v2923 = vsel %vm542, %v2898, %v2894
    %v2924 = vsel %vm544, %v2902, %v2923
    %v2925 = vsel %vm546, %v2906, %v2924
    %v2926 = vsel %vm548, %v2910, %v2925
    %v2927 = vsel %vm550, %v2914, %v2926
    %v2928 = vsel %vm552, %v2918, %v2927
    %v2929 = vsel %vm554, %v2922, %v2928
    %v2931 = vsel %vm557, %v2929, 0.0
    %2932 = vadd.xlane.f32.xlu0 %v2931
    %v2933 = vpop.xlane.xlu0 %2932
    %v2934 = vrcp.pop %v2933
    %v2936 = vlaneseq
    %v2937 = vshrl.u32 %v2936, 7
    %v2938 = vsub.s32 0, %v2937
    %v2939 = vrot.slane %v2934, %v2938
    %v2940 = vlaneseq
    %v2941 = vshrl.u32 %v2940, 7
    %v2942 = vsub.s32 1, %v2941
    %v2943 = vrot.slane %v2934, %v2942
    %v2944 = vlaneseq
    %v2945 = vshrl.u32 %v2944, 7
    %v2946 = vsub.s32 2, %v2945
    %v2947 = vrot.slane %v2934, %v2946
    %v2948 = vlaneseq
    %v2949 = vshrl.u32 %v2948, 7
    %v2950 = vsub.s32 3, %v2949
    %v2951 = vrot.slane %v2934, %v2950
    %v2952 = vlaneseq
    %v2953 = vshrl.u32 %v2952, 7
    %v2954 = vsub.s32 4, %v2953
    %v2955 = vrot.slane %v2934, %v2954
    %v2956 = vlaneseq
    %v2957 = vshrl.u32 %v2956, 7
    %v2958 = vsub.s32 5, %v2957
    %v2959 = vrot.slane %v2934, %v2958
    %v2960 = vlaneseq
    %v2961 = vshrl.u32 %v2960, 7
    %v2962 = vsub.s32 6, %v2961
    %v2963 = vrot.slane %v2934, %v2962
    %v2964 = vlaneseq
    %v2965 = vshrl.u32 %v2964, 7
    %v2966 = vsub.s32 7, %v2965
    %v2967 = vrot.slane %v2934, %v2966
    %v2976 = vmul.f32 %v2844, %v2939
    %v2977 = vmul.f32 %v2846, %v2943
    %v2978 = vmul.f32 %v2848, %v2947
    %v2979 = vmul.f32 %v2850, %v2951
    %v2980 = vmul.f32 %v2852, %v2955
    %v2981 = vmul.f32 %v2854, %v2959
    %v2982 = vmul.f32 %v2856, %v2963
    %v2983 = vmul.f32 %v2858, %v2967
    %2985 = vset.pattern.permute.xlu0 0
    %2986 = vperm.xlu0 %2985, %v2976
    %v2987 = vpop.permute.xlu0 %2986
    %2990 = vset.pattern.permute.xlu0 0
    %2991 = vperm.xlu0 %2990, %v2977
    %v2992 = vpop.permute.xlu0 %2991
    %2995 = vset.pattern.permute.xlu0 0
    %2996 = vperm.xlu0 %2995, %v2978
    %v2997 = vpop.permute.xlu0 %2996
    %3000 = vset.pattern.permute.xlu0 0
    %3001 = vperm.xlu0 %3000, %v2979
    %v3002 = vpop.permute.xlu0 %3001
    %3005 = vset.pattern.permute.xlu0 0
    %3006 = vperm.xlu0 %3005, %v2980
    %v3007 = vpop.permute.xlu0 %3006
    %3010 = vset.pattern.permute.xlu0 0
    %3011 = vperm.xlu0 %3010, %v2981
    %v3012 = vpop.permute.xlu0 %3011
    %3015 = vset.pattern.permute.xlu0 0
    %3016 = vperm.xlu0 %3015, %v2982
    %v3017 = vpop.permute.xlu0 %3016
    %3020 = vset.pattern.permute.xlu0 0
    %3021 = vperm.xlu0 %3020, %v2983
    %v3022 = vpop.permute.xlu0 %3021
    %v3024 = vmul.f32 %v2987, %v121
    %v3025 = vmul.f32 %v2992, %v122
    %v3026 = vmul.f32 %v2997, %v123
    %v3027 = vmul.f32 %v3002, %v124
    %v3028 = vmul.f32 %v3007, %v125
    %v3029 = vmul.f32 %v3012, %v126
    %v3030 = vmul.f32 %v3017, %v127
    %v3031 = vmul.f32 %v3022, %v128
    %v3032 = vrot.slane %v3024, 4
    %v3033 = vadd.f32 %v3024, %v3032
    %v3034 = vrot.slane %v3033, 2
    %v3035 = vadd.f32 %v3033, %v3034
    %v3036 = vrot.slane %v3035, 1
    %v3037 = vadd.f32 %v3035, %v3036
    %v3038 = vrot.slane %v3025, 4
    %v3039 = vadd.f32 %v3025, %v3038
    %v3040 = vrot.slane %v3039, 2
    %v3041 = vadd.f32 %v3039, %v3040
    %v3042 = vrot.slane %v3041, 1
    %v3043 = vadd.f32 %v3041, %v3042
    %v3044 = vrot.slane %v3026, 4
    %v3045 = vadd.f32 %v3026, %v3044
    %v3046 = vrot.slane %v3045, 2
    %v3047 = vadd.f32 %v3045, %v3046
    %v3048 = vrot.slane %v3047, 1
    %v3049 = vadd.f32 %v3047, %v3048
    %v3050 = vrot.slane %v3027, 4
    %v3051 = vadd.f32 %v3027, %v3050
    %v3052 = vrot.slane %v3051, 2
    %v3053 = vadd.f32 %v3051, %v3052
    %v3054 = vrot.slane %v3053, 1
    %v3055 = vadd.f32 %v3053, %v3054
    %v3056 = vrot.slane %v3028, 4
    %v3057 = vadd.f32 %v3028, %v3056
    %v3058 = vrot.slane %v3057, 2
    %v3059 = vadd.f32 %v3057, %v3058
    %v3060 = vrot.slane %v3059, 1
    %v3061 = vadd.f32 %v3059, %v3060
    %v3062 = vrot.slane %v3029, 4
    %v3063 = vadd.f32 %v3029, %v3062
    %v3064 = vrot.slane %v3063, 2
    %v3065 = vadd.f32 %v3063, %v3064
    %v3066 = vrot.slane %v3065, 1
    %v3067 = vadd.f32 %v3065, %v3066
    %v3068 = vrot.slane %v3030, 4
    %v3069 = vadd.f32 %v3030, %v3068
    %v3070 = vrot.slane %v3069, 2
    %v3071 = vadd.f32 %v3069, %v3070
    %v3072 = vrot.slane %v3071, 1
    %v3073 = vadd.f32 %v3071, %v3072
    %v3074 = vrot.slane %v3031, 4
    %v3075 = vadd.f32 %v3031, %v3074
    %v3076 = vrot.slane %v3075, 2
    %v3077 = vadd.f32 %v3075, %v3076
    %v3078 = vrot.slane %v3077, 1
    %v3079 = vadd.f32 %v3077, %v3078
    %v3088 = vsel %vm542, %v3043, %v3037
    %v3089 = vsel %vm544, %v3049, %v3088
    %v3090 = vsel %vm546, %v3055, %v3089
    %v3091 = vsel %vm548, %v3061, %v3090
    %v3092 = vsel %vm550, %v3067, %v3091
    %v3093 = vsel %vm552, %v3073, %v3092
    %v3094 = vsel %vm554, %v3079, %v3093
    %s3096 = scalar_lea.vmem %s4, 96
    %v3097 = vld [vmem:[%s3096] sm:$0xff]
    %v3098 = vld [vmem:[%s3096 + $0x8] sm:$0xff]
    %v3099 = vld [vmem:[%s3096 + $0x10] sm:$0xff]
    %v3100 = vld [vmem:[%s3096 + $0x18] sm:$0xff]
    %3101 = vmatprep.subr.mxu0 %v215
    %3102 = vmatpush1.msra.mxu0 %v214
    %3103 = vmatprep.subr.mxu0 %v211
    %3104 = vmatpush1.msra.mxu0 %v210
    %3105 = vmatprep.subr.mxu0 %v207
    %3106 = vmatpush1.msra.mxu0 %v206
    %3107 = vmatprep.subr.mxu0 %v203
    %3108 = vmatpush1.msra.mxu0 %v202
    %3109 = vmatprep.subr.mxu0 %v199
    %3110 = vmatpush1.msra.mxu0 %v198
    %3111 = vmatprep.subr.mxu0 %v195
    %3112 = vmatpush1.msra.mxu0 %v194
    %3113 = vmatprep.subr.mxu0 %v191
    %3114 = vmatpush1.msra.mxu0 %v190
    %3115 = vmatprep.subr.mxu0 %v187
    %3116 = vmatpush1.msra.mxu0 %v186
    %3117 = vmatprep.subr.mxu0 %v183
    %3118 = vmatpush1.msra.mxu0 %v182
    %3119 = vmatprep.subr.mxu0 %v179
    %3120 = vmatpush1.msra.mxu0 %v178
    %3121 = vmatprep.subr.mxu0 %v175
    %3122 = vmatpush1.msra.mxu0 %v174
    %3123 = vmatprep.subr.mxu0 %v171
    %3124 = vmatpush1.msra.mxu0 %v170
    %3125 = vmatprep.subr.mxu0 %v167
    %3126 = vmatpush1.msra.mxu0 %v166
    %3127 = vmatprep.subr.mxu0 %v163
    %3128 = vmatpush1.msra.mxu0 %v162
    %3129 = vmatprep.subr.mxu0 %v159
    %3130 = vmatpush1.msra.mxu0 %v158
    %3131 = vmatprep.subr.mxu0 %v155
    %3132 = vmatpush1.msra.mxu0 %v154
    %3133 = vmatprep.subr.mxu0 %v279
    %3134 = vmatpush2.msra.mxu0 %v278
    %3135 = vmatprep.subr.mxu0 %v275
    %3136 = vmatpush2.msra.mxu0 %v274
    %3137 = vmatprep.subr.mxu0 %v271
    %3138 = vmatpush2.msra.mxu0 %v270
    %3139 = vmatprep.subr.mxu0 %v267
    %3140 = vmatpush2.msra.mxu0 %v266
    %3141 = vmatprep.subr.mxu0 %v263
    %3142 = vmatpush2.msra.mxu0 %v262
    %3143 = vmatprep.subr.mxu0 %v259
    %3144 = vmatpush2.msra.mxu0 %v258
    %3145 = vmatprep.subr.mxu0 %v255
    %3146 = vmatpush2.msra.mxu0 %v254
    %3147 = vmatprep.subr.mxu0 %v251
    %3148 = vmatpush2.msra.mxu0 %v250
    %3149 = vmatprep.subr.mxu0 %v247
    %3150 = vmatpush2.msra.mxu0 %v246
    %3151 = vmatprep.subr.mxu0 %v243
    %3152 = vmatpush2.msra.mxu0 %v242
    %3153 = vmatprep.subr.mxu0 %v239
    %3154 = vmatpush2.msra.mxu0 %v238
    %3155 = vmatprep.subr.mxu0 %v235
    %3156 = vmatpush2.msra.mxu0 %v234
    %3157 = vmatprep.subr.mxu0 %v231
    %3158 = vmatpush2.msra.mxu0 %v230
    %3159 = vmatprep.subr.mxu0 %v227
    %3160 = vmatpush2.msra.mxu0 %v226
    %3161 = vmatprep.subr.mxu0 %v223
    %3162 = vmatpush2.msra.mxu0 %v222
    %3163 = vmatprep.subr.mxu0 %v219
    %3164 = vmatpush2.msra.mxu0 %v218
    %3165 = vmatprep.mubr.f32.mxu0 %v2532
    %3166 = vmatmul.mubr.f32.gmra.mxu0 %v3094
    %v3167 = vpop.f32.mrf.mxu0
    %v3168 = vadd.f32 %v3097, %v3167
    %v3169 = vpop.f32.mrf.mxu0
    %v3170 = vadd.f32 %v3098, %v3169
    %3171 = vdwg.mxu0
    %3172 = vmatprep.subr.mxu0 %v217
    %3173 = vmatpush1.msra.mxu0 %v216
    %3174 = vmatprep.subr.mxu0 %v213
    %3175 = vmatpush1.msra.mxu0 %v212
    %3176 = vmatprep.subr.mxu0 %v209
    %3177 = vmatpush1.msra.mxu0 %v208
    %3178 = vmatprep.subr.mxu0 %v205
    %3179 = vmatpush1.msra.mxu0 %v204
    %3180 = vmatprep.subr.mxu0 %v201
    %3181 = vmatpush1.msra.mxu0 %v200
    %3182 = vmatprep.subr.mxu0 %v197
    %3183 = vmatpush1.msra.mxu0 %v196
    %3184 = vmatprep.subr.mxu0 %v193
    %3185 = vmatpush1.msra.mxu0 %v192
    %3186 = vmatprep.subr.mxu0 %v189
    %3187 = vmatpush1.msra.mxu0 %v188
    %3188 = vmatprep.subr.mxu0 %v185
    %3189 = vmatpush1.msra.mxu0 %v184
    %3190 = vmatprep.subr.mxu0 %v181
    %3191 = vmatpush1.msra.mxu0 %v180
    %3192 = vmatprep.subr.mxu0 %v177
    %3193 = vmatpush1.msra.mxu0 %v176
    %3194 = vmatprep.subr.mxu0 %v173
    %3195 = vmatpush1.msra.mxu0 %v172
    %3196 = vmatprep.subr.mxu0 %v169
    %3197 = vmatpush1.msra.mxu0 %v168
    %3198 = vmatprep.subr.mxu0 %v165
    %3199 = vmatpush1.msra.mxu0 %v164
    %3200 = vmatprep.subr.mxu0 %v161
    %3201 = vmatpush1.msra.mxu0 %v160
    %3202 = vmatprep.subr.mxu0 %v157
    %3203 = vmatpush1.msra.mxu0 %v156
    %3204 = vmatprep.subr.mxu0 %v281
    %3205 = vmatpush2.msra.mxu0 %v280
    %3206 = vmatprep.subr.mxu0 %v277
    %3207 = vmatpush2.msra.mxu0 %v276
    %3208 = vmatprep.subr.mxu0 %v273
    %3209 = vmatpush2.msra.mxu0 %v272
    %3210 = vmatprep.subr.mxu0 %v269
    %3211 = vmatpush2.msra.mxu0 %v268
    %3212 = vmatprep.subr.mxu0 %v265
    %3213 = vmatpush2.msra.mxu0 %v264
    %3214 = vmatprep.subr.mxu0 %v261
    %3215 = vmatpush2.msra.mxu0 %v260
    %3216 = vmatprep.subr.mxu0 %v257
    %3217 = vmatpush2.msra.mxu0 %v256
    %3218 = vmatprep.subr.mxu0 %v253
    %3219 = vmatpush2.msra.mxu0 %v252
    %3220 = vmatprep.subr.mxu0 %v249
    %3221 = vmatpush2.msra.mxu0 %v248
    %3222 = vmatprep.subr.mxu0 %v245
    %3223 = vmatpush2.msra.mxu0 %v244
    %3224 = vmatprep.subr.mxu0 %v241
    %3225 = vmatpush2.msra.mxu0 %v240
    %3226 = vmatprep.subr.mxu0 %v237
    %3227 = vmatpush2.msra.mxu0 %v236
    %3228 = vmatprep.subr.mxu0 %v233
    %3229 = vmatpush2.msra.mxu0 %v232
    %3230 = vmatprep.subr.mxu0 %v229
    %3231 = vmatpush2.msra.mxu0 %v228
    %3232 = vmatprep.subr.mxu0 %v225
    %3233 = vmatpush2.msra.mxu0 %v224
    %3234 = vmatprep.subr.mxu0 %v221
    %3235 = vmatpush2.msra.mxu0 %v220
    %3236 = vmatprep.mubr.f32.mxu0 %v2532
    %3237 = vmatmul.mubr.f32.gmra.mxu0 %v3094
    %v3238 = vpop.f32.mrf.mxu0
    %v3239 = vadd.f32 %v3099, %v3238
    %v3240 = vpop.f32.mrf.mxu0
    %v3241 = vadd.f32 %v3100, %v3240
    %3242 = vdwg.mxu0
    %v3243 = vadd.f32 %v3168, %v1013
    %v3244 = vadd.f32 %v3170, %v1017
    %v3245 = vadd.f32 %v3239, %v1021
    %v3246 = vadd.f32 %v3241, %v1025
    %v3247 = vxor.u32 %v3243, 2147483648
    %v3248 = vmul.f32 %v3247, 1.442695
    %v3249 = vpow.pop %v3248
    %v3250 = vadd.f32 %v3249, 1.0
    %v3251 = vrcp.pop %v3250
    %v3252 = vmul.f32 1.0, %v3251
    %v3253 = vxor.u32 %v3244, 2147483648
    %v3254 = vmul.f32 %v3253, 1.442695
    %v3255 = vpow.pop %v3254
    %v3256 = vadd.f32 %v3255, 1.0
    %v3257 = vrcp.pop %v3256
    %v3258 = vmul.f32 1.0, %v3257
    %v3259 = vtanh.pop %v3245
    %v3260 = vxor.u32 %v3246, 2147483648
    %v3261 = vmul.f32 %v3260, 1.442695
    %v3262 = vpow.pop %v3261
    %v3263 = vadd.f32 %v3262, 1.0
    %v3264 = vrcp.pop %v3263
    %v3265 = vmul.f32 1.0, %v3264
    %v3266 = vmul.f32 %v3258, %v2530
    %v3267 = vmul.f32 %v3252, %v3259
    %v3268 = vadd.f32 %v3266, %v3267
    %v3269 = vtanh.pop %v3268
    %v3270 = vmul.f32 %v3265, %v3269
    %s3271 = scalar_lea.vmem [#allocation2], 24
    %3272 = vst [vmem:[%s3271] sm:$0xff] %v3270
    %3273 = vmatprep.subr.mxu0 0.0
    %3274 = vmatpush1.msra.mxu0 %v153
    %3275 = vmatprep.subr.mxu0 0.0
    %3276 = vmatpush1.msra.mxu0 %v152
    %3277 = vmatprep.subr.mxu0 0.0
    %3278 = vmatpush1.msra.mxu0 %v151
    %3279 = vmatprep.subr.mxu0 0.0
    %3280 = vmatpush1.msra.mxu0 %v150
    %3281 = vmatprep.subr.mxu0 0.0
    %3282 = vmatpush1.msra.mxu0 %v149
    %3283 = vmatprep.subr.mxu0 0.0
    %3284 = vmatpush1.msra.mxu0 %v148
    %3285 = vmatprep.subr.mxu0 0.0
    %3286 = vmatpush1.msra.mxu0 %v147
    %3287 = vmatprep.subr.mxu0 0.0
    %3288 = vmatpush1.msra.mxu0 %v146
    %3289 = vmatprep.subr.mxu0 0.0
    %3290 = vmatpush1.msra.mxu0 %v145
    %3291 = vmatprep.subr.mxu0 0.0
    %3292 = vmatpush1.msra.mxu0 %v144
    %3293 = vmatprep.subr.mxu0 0.0
    %3294 = vmatpush1.msra.mxu0 %v143
    %3295 = vmatprep.subr.mxu0 0.0
    %3296 = vmatpush1.msra.mxu0 %v142
    %3297 = vmatprep.subr.mxu0 0.0
    %3298 = vmatpush1.msra.mxu0 %v141
    %3299 = vmatprep.subr.mxu0 0.0
    %3300 = vmatpush1.msra.mxu0 %v140
    %3301 = vmatprep.subr.mxu0 0.0
    %3302 = vmatpush1.msra.mxu0 %v139
    %3303 = vmatprep.subr.mxu0 0.0
    %3304 = vmatpush1.msra.mxu0 %v138
    %3305 = vmatprep.subr.mxu0 0.0
    %3306 = vmatpush2.msra.mxu0 0.0
    %3307 = vmatprep.subr.mxu0 0.0
    %3308 = vmatpush2.msra.mxu0 0.0
    %3309 = vmatprep.subr.mxu0 0.0
    %3310 = vmatpush2.msra.mxu0 0.0
    %3311 = vmatprep.subr.mxu0 0.0
    %3312 = vmatpush2.msra.mxu0 0.0
    %3313 = vmatprep.subr.mxu0 0.0
    %3314 = vmatpush2.msra.mxu0 0.0
    %3315 = vmatprep.subr.mxu0 0.0
    %3316 = vmatpush2.msra.mxu0 0.0
    %3317 = vmatprep.subr.mxu0 0.0
    %3318 = vmatpush2.msra.mxu0 0.0
    %3319 = vmatprep.subr.mxu0 0.0
    %3320 = vmatpush2.msra.mxu0 0.0
    %3321 = vmatprep.subr.mxu0 0.0
    %3322 = vmatpush2.msra.mxu0 0.0
    %3323 = vmatprep.subr.mxu0 0.0
    %3324 = vmatpush2.msra.mxu0 0.0
    %3325 = vmatprep.subr.mxu0 0.0
    %3326 = vmatpush2.msra.mxu0 0.0
    %3327 = vmatprep.subr.mxu0 0.0
    %3328 = vmatpush2.msra.mxu0 0.0
    %3329 = vmatprep.subr.mxu0 0.0
    %3330 = vmatpush2.msra.mxu0 0.0
    %3331 = vmatprep.subr.mxu0 0.0
    %3332 = vmatpush2.msra.mxu0 0.0
    %3333 = vmatprep.subr.mxu0 0.0
    %3334 = vmatpush2.msra.mxu0 0.0
    %3335 = vmatprep.subr.mxu0 0.0
    %3336 = vmatpush2.msra.mxu0 0.0
    %3337 = vmatprep.mubr.f32.mxu0 0.0
    %3338 = vmatmul.mubr.f32.gmra.mxu0 %v3268
    %v3339 = vpop.f32.mrf.mxu0
    %v3340 = vadd.f32 0.0, %v3339
    %v3341 = vpop.f32.mrf.mxu0
    %3342 = vdwg.mxu0
    %v3344 = vcombine.high %v3340, %v3340
    %v3346 = vunpack.c.l.s4 1966171168
    %v3347 = vunpack.c.0.s8 %v3346
    %v3348 = vlaneseq
    %v3349 = vshrl.u32 %v3348, 7
    %v3350 = vsub.s32 %v3347, %v3349
    %v3351 = vrot.slane %v3340, %v3350
    %v3353 = vunpack.c.l.s4 1966171168
    %v3354 = vunpack.c.0.s8 %v3353
    %v3355 = vlaneseq
    %v3356 = vshrl.u32 %v3355, 7
    %v3357 = vsub.s32 %v3354, %v3356
    %v3358 = vrot.slane %v3344, %v3357
    %v3359 = vcombine.high %v3351, %v3351
    %v3360 = vcombine.high %v3358, %v3358
    %v3362 = vunpack.c.l.s4 1966171168
    %v3363 = vunpack.c.0.s8 %v3362
    %v3364 = vlaneseq
    %v3365 = vshrl.u32 %v3364, 7
    %v3366 = vsub.s32 %v3363, %v3365
    %v3367 = vrot.slane %v3351, %v3366
    %v3369 = vunpack.c.l.s4 1966171168
    %v3370 = vunpack.c.0.s8 %v3369
    %v3371 = vlaneseq
    %v3372 = vshrl.u32 %v3371, 7
    %v3373 = vsub.s32 %v3370, %v3372
    %v3374 = vrot.slane %v3358, %v3373
    %v3376 = vunpack.c.l.s4 1966171168
    %v3377 = vunpack.c.0.s8 %v3376
    %v3378 = vlaneseq
    %v3379 = vshrl.u32 %v3378, 7
    %v3380 = vsub.s32 %v3377, %v3379
    %v3381 = vrot.slane %v3359, %v3380
    %v3383 = vunpack.c.l.s4 1966171168
    %v3384 = vunpack.c.0.s8 %v3383
    %v3385 = vlaneseq
    %v3386 = vshrl.u32 %v3385, 7
    %v3387 = vsub.s32 %v3384, %v3386
    %v3388 = vrot.slane %v3360, %v3387
    %v3389 = vcombine.high %v3367, %v3367
    %v3390 = vcombine.high %v3374, %v3374
    %v3391 = vcombine.high %v3381, %v3381
    %v3392 = vcombine.high %v3388, %v3388
    %v3393 = vlaneseq
    %v3394 = vshrl.u32 %v3393, 7
    %v3395 = vsub.s32 0, %v3394
    %v3396 = vrot.slane %v3367, %v3395
    %v3397 = vlaneseq
    %v3398 = vshrl.u32 %v3397, 7
    %v3399 = vsub.s32 0, %v3398
    %v3400 = vrot.slane %v3381, %v3399
    %v3401 = vlaneseq
    %v3402 = vshrl.u32 %v3401, 7
    %v3403 = vsub.s32 0, %v3402
    %v3404 = vrot.slane %v3389, %v3403
    %v3405 = vlaneseq
    %v3406 = vshrl.u32 %v3405, 7
    %v3407 = vsub.s32 0, %v3406
    %v3408 = vrot.slane %v3391, %v3407
    %v3409 = vlaneseq
    %v3410 = vshrl.u32 %v3409, 7
    %v3411 = vsub.s32 0, %v3410
    %v3412 = vrot.slane %v3374, %v3411
    %v3413 = vlaneseq
    %v3414 = vshrl.u32 %v3413, 7
    %v3415 = vsub.s32 0, %v3414
    %v3416 = vrot.slane %v3388, %v3415
    %v3417 = vlaneseq
    %v3418 = vshrl.u32 %v3417, 7
    %v3419 = vsub.s32 0, %v3418
    %v3420 = vrot.slane %v3390, %v3419
    %v3421 = vlaneseq
    %v3422 = vshrl.u32 %v3421, 7
    %v3423 = vsub.s32 0, %v3422
    %v3424 = vrot.slane %v3392, %v3423
    %v3433 = vadd.f32 %v129, %v3396
    %v3434 = vadd.f32 %v130, %v3400
    %v3435 = vadd.f32 %v131, %v3404
    %v3436 = vadd.f32 %v132, %v3408
    %v3437 = vadd.f32 %v133, %v3412
    %v3438 = vadd.f32 %v134, %v3416
    %v3439 = vadd.f32 %v135, %v3420
    %v3440 = vadd.f32 %v136, %v3424
    %v3441 = vtanh.pop %v3433
    %v3442 = vtanh.pop %v3434
    %v3443 = vtanh.pop %v3435
    %v3444 = vtanh.pop %v3436
    %v3445 = vtanh.pop %v3437
    %v3446 = vtanh.pop %v3438
    %v3447 = vtanh.pop %v3439
    %v3448 = vtanh.pop %v3440
    %v3449 = vmul.f32 %v3441, %v465
    %v3450 = vmul.f32 %v3442, %v465
    %v3451 = vmul.f32 %v3443, %v465
    %v3452 = vmul.f32 %v3444, %v465
    %v3453 = vmul.f32 %v3445, %v465
    %v3454 = vmul.f32 %v3446, %v465
    %v3455 = vmul.f32 %v3447, %v465
    %v3456 = vmul.f32 %v3448, %v465
    %v3457 = vsel %vm475, %v3449, 0.0
    %3458 = vadd.xlane.f32.xlu0 %v3457
    %v3459 = vpop.xlane.xlu0 %3458
    %v3460 = vsel %vm475, %v3450, 0.0
    %3461 = vadd.xlane.f32.xlu0 %v3460
    %v3462 = vpop.xlane.xlu0 %3461
    %v3463 = vsel %vm475, %v3451, 0.0
    %3464 = vadd.xlane.f32.xlu0 %v3463
    %v3465 = vpop.xlane.xlu0 %3464
    %v3466 = vsel %vm475, %v3452, 0.0
    %3467 = vadd.xlane.f32.xlu0 %v3466
    %v3468 = vpop.xlane.xlu0 %3467
    %v3469 = vsel %vm475, %v3453, 0.0
    %3470 = vadd.xlane.f32.xlu0 %v3469
    %v3471 = vpop.xlane.xlu0 %3470
    %v3472 = vsel %vm475, %v3454, 0.0
    %3473 = vadd.xlane.f32.xlu0 %v3472
    %v3474 = vpop.xlane.xlu0 %3473
    %v3475 = vsel %vm475, %v3455, 0.0
    %3476 = vadd.xlane.f32.xlu0 %v3475
    %v3477 = vpop.xlane.xlu0 %3476
    %v3478 = vsel %vm475, %v3456, 0.0
    %3479 = vadd.xlane.f32.xlu0 %v3478
    %v3480 = vpop.xlane.xlu0 %3479
    %v3489 = vlaneseq
    %v3490 = vshrl.u32 %v3489, 7
    %v3491 = vsub.s32 %v509, %v3490
    %v3492 = vrot.slane %v3459, %v3491
    %v3493 = vlaneseq
    %v3494 = vshrl.u32 %v3493, 7
    %v3495 = vsub.s32 %v509, %v3494
    %v3496 = vrot.slane %v3462, %v3495
    %v3497 = vlaneseq
    %v3498 = vshrl.u32 %v3497, 7
    %v3499 = vsub.s32 %v509, %v3498
    %v3500 = vrot.slane %v3465, %v3499
    %v3501 = vlaneseq
    %v3502 = vshrl.u32 %v3501, 7
    %v3503 = vsub.s32 %v509, %v3502
    %v3504 = vrot.slane %v3468, %v3503
    %v3505 = vlaneseq
    %v3506 = vshrl.u32 %v3505, 7
    %v3507 = vsub.s32 %v509, %v3506
    %v3508 = vrot.slane %v3471, %v3507
    %v3509 = vlaneseq
    %v3510 = vshrl.u32 %v3509, 7
    %v3511 = vsub.s32 %v509, %v3510
    %v3512 = vrot.slane %v3474, %v3511
    %v3513 = vlaneseq
    %v3514 = vshrl.u32 %v3513, 7
    %v3515 = vsub.s32 %v509, %v3514
    %v3516 = vrot.slane %v3477, %v3515
    %v3517 = vlaneseq
    %v3518 = vshrl.u32 %v3517, 7
    %v3519 = vsub.s32 %v509, %v3518
    %v3520 = vrot.slane %v3480, %v3519
    %v3521 = vsel %vm542, %v3496, %v3492
    %v3522 = vsel %vm544, %v3500, %v3521
    %v3523 = vsel %vm546, %v3504, %v3522
    %v3524 = vsel %vm548, %v3508, %v3523
    %v3525 = vsel %vm550, %v3512, %v3524
    %v3526 = vsel %vm552, %v3516, %v3525
    %v3527 = vsel %vm554, %v3520, %v3526
    %v3529 = vsel %vm557, %v3527, -inf
    %3530 = vmax.xlane.f32.xlu0 %v3529
    %v3531 = vpop.xlane.xlu0 %3530
    %v3533 = vlaneseq
    %v3534 = vshrl.u32 %v3533, 7
    %v3535 = vsub.s32 0, %v3534
    %v3536 = vrot.slane %v3531, %v3535
    %v3537 = vlaneseq
    %v3538 = vshrl.u32 %v3537, 7
    %v3539 = vsub.s32 1, %v3538
    %v3540 = vrot.slane %v3531, %v3539
    %v3541 = vlaneseq
    %v3542 = vshrl.u32 %v3541, 7
    %v3543 = vsub.s32 2, %v3542
    %v3544 = vrot.slane %v3531, %v3543
    %v3545 = vlaneseq
    %v3546 = vshrl.u32 %v3545, 7
    %v3547 = vsub.s32 3, %v3546
    %v3548 = vrot.slane %v3531, %v3547
    %v3549 = vlaneseq
    %v3550 = vshrl.u32 %v3549, 7
    %v3551 = vsub.s32 4, %v3550
    %v3552 = vrot.slane %v3531, %v3551
    %v3553 = vlaneseq
    %v3554 = vshrl.u32 %v3553, 7
    %v3555 = vsub.s32 5, %v3554
    %v3556 = vrot.slane %v3531, %v3555
    %v3557 = vlaneseq
    %v3558 = vshrl.u32 %v3557, 7
    %v3559 = vsub.s32 6, %v3558
    %v3560 = vrot.slane %v3531, %v3559
    %v3561 = vlaneseq
    %v3562 = vshrl.u32 %v3561, 7
    %v3563 = vsub.s32 7, %v3562
    %v3564 = vrot.slane %v3531, %v3563
    %v3573 = vsub.f32 %v3459, %v3536
    %v3574 = vsub.f32 %v3462, %v3540
    %v3575 = vsub.f32 %v3465, %v3544
    %v3576 = vsub.f32 %v3468, %v3548
    %v3577 = vsub.f32 %v3471, %v3552
    %v3578 = vsub.f32 %v3474, %v3556
    %v3579 = vsub.f32 %v3477, %v3560
    %v3580 = vsub.f32 %v3480, %v3564
    %v3581 = vmul.f32 %v3573, 1.442695
    %v3582 = vpow.pop %v3581
    %v3583 = vmul.f32 %v3574, 1.442695
    %v3584 = vpow.pop %v3583
    %v3585 = vmul.f32 %v3575, 1.442695
    %v3586 = vpow.pop %v3585
    %v3587 = vmul.f32 %v3576, 1.442695
    %v3588 = vpow.pop %v3587
    %v3589 = vmul.f32 %v3577, 1.442695
    %v3590 = vpow.pop %v3589
    %v3591 = vmul.f32 %v3578, 1.442695
    %v3592 = vpow.pop %v3591
    %v3593 = vmul.f32 %v3579, 1.442695
    %v3594 = vpow.pop %v3593
    %v3595 = vmul.f32 %v3580, 1.442695
    %v3596 = vpow.pop %v3595
    %3605 = vset.pattern.permute.xlu0 0
    %3606 = vperm.xlu0 %3605, %v3582
    %v3607 = vpop.permute.xlu0 %3606
    %3608 = vset.pattern.permute.xlu0 0
    %3609 = vperm.xlu0 %3608, %v3584
    %v3610 = vpop.permute.xlu0 %3609
    %3611 = vset.pattern.permute.xlu0 0
    %3612 = vperm.xlu0 %3611, %v3586
    %v3613 = vpop.permute.xlu0 %3612
    %3614 = vset.pattern.permute.xlu0 0
    %3615 = vperm.xlu0 %3614, %v3588
    %v3616 = vpop.permute.xlu0 %3615
    %3617 = vset.pattern.permute.xlu0 0
    %3618 = vperm.xlu0 %3617, %v3590
    %v3619 = vpop.permute.xlu0 %3618
    %3620 = vset.pattern.permute.xlu0 0
    %3621 = vperm.xlu0 %3620, %v3592
    %v3622 = vpop.permute.xlu0 %3621
    %3623 = vset.pattern.permute.xlu0 0
    %3624 = vperm.xlu0 %3623, %v3594
    %v3625 = vpop.permute.xlu0 %3624
    %3626 = vset.pattern.permute.xlu0 0
    %3627 = vperm.xlu0 %3626, %v3596
    %v3628 = vpop.permute.xlu0 %3627
    %v3629 = vlaneseq
    %v3630 = vshrl.u32 %v3629, 7
    %v3631 = vsub.s32 %v509, %v3630
    %v3632 = vrot.slane %v3607, %v3631
    %v3633 = vlaneseq
    %v3634 = vshrl.u32 %v3633, 7
    %v3635 = vsub.s32 %v509, %v3634
    %v3636 = vrot.slane %v3610, %v3635
    %v3637 = vlaneseq
    %v3638 = vshrl.u32 %v3637, 7
    %v3639 = vsub.s32 %v509, %v3638
    %v3640 = vrot.slane %v3613, %v3639
    %v3641 = vlaneseq
    %v3642 = vshrl.u32 %v3641, 7
    %v3643 = vsub.s32 %v509, %v3642
    %v3644 = vrot.slane %v3616, %v3643
    %v3645 = vlaneseq
    %v3646 = vshrl.u32 %v3645, 7
    %v3647 = vsub.s32 %v509, %v3646
    %v3648 = vrot.slane %v3619, %v3647
    %v3649 = vlaneseq
    %v3650 = vshrl.u32 %v3649, 7
    %v3651 = vsub.s32 %v509, %v3650
    %v3652 = vrot.slane %v3622, %v3651
    %v3653 = vlaneseq
    %v3654 = vshrl.u32 %v3653, 7
    %v3655 = vsub.s32 %v509, %v3654
    %v3656 = vrot.slane %v3625, %v3655
    %v3657 = vlaneseq
    %v3658 = vshrl.u32 %v3657, 7
    %v3659 = vsub.s32 %v509, %v3658
    %v3660 = vrot.slane %v3628, %v3659
    %v3661 = vsel %vm542, %v3636, %v3632
    %v3662 = vsel %vm544, %v3640, %v3661
    %v3663 = vsel %vm546, %v3644, %v3662
    %v3664 = vsel %vm548, %v3648, %v3663
    %v3665 = vsel %vm550, %v3652, %v3664
    %v3666 = vsel %vm552, %v3656, %v3665
    %v3667 = vsel %vm554, %v3660, %v3666
    %v3669 = vsel %vm557, %v3667, 0.0
    %3670 = vadd.xlane.f32.xlu0 %v3669
    %v3671 = vpop.xlane.xlu0 %3670
    %v3672 = vrcp.pop %v3671
    %v3674 = vlaneseq
    %v3675 = vshrl.u32 %v3674, 7
    %v3676 = vsub.s32 0, %v3675
    %v3677 = vrot.slane %v3672, %v3676
    %v3678 = vlaneseq
    %v3679 = vshrl.u32 %v3678, 7
    %v3680 = vsub.s32 1, %v3679
    %v3681 = vrot.slane %v3672, %v3680
    %v3682 = vlaneseq
    %v3683 = vshrl.u32 %v3682, 7
    %v3684 = vsub.s32 2, %v3683
    %v3685 = vrot.slane %v3672, %v3684
    %v3686 = vlaneseq
    %v3687 = vshrl.u32 %v3686, 7
    %v3688 = vsub.s32 3, %v3687
    %v3689 = vrot.slane %v3672, %v3688
    %v3690 = vlaneseq
    %v3691 = vshrl.u32 %v3690, 7
    %v3692 = vsub.s32 4, %v3691
    %v3693 = vrot.slane %v3672, %v3692
    %v3694 = vlaneseq
    %v3695 = vshrl.u32 %v3694, 7
    %v3696 = vsub.s32 5, %v3695
    %v3697 = vrot.slane %v3672, %v3696
    %v3698 = vlaneseq
    %v3699 = vshrl.u32 %v3698, 7
    %v3700 = vsub.s32 6, %v3699
    %v3701 = vrot.slane %v3672, %v3700
    %v3702 = vlaneseq
    %v3703 = vshrl.u32 %v3702, 7
    %v3704 = vsub.s32 7, %v3703
    %v3705 = vrot.slane %v3672, %v3704
    %v3714 = vmul.f32 %v3582, %v3677
    %v3715 = vmul.f32 %v3584, %v3681
    %v3716 = vmul.f32 %v3586, %v3685
    %v3717 = vmul.f32 %v3588, %v3689
    %v3718 = vmul.f32 %v3590, %v3693
    %v3719 = vmul.f32 %v3592, %v3697
    %v3720 = vmul.f32 %v3594, %v3701
    %v3721 = vmul.f32 %v3596, %v3705
    %3723 = vset.pattern.permute.xlu0 0
    %3724 = vperm.xlu0 %3723, %v3714
    %v3725 = vpop.permute.xlu0 %3724
    %3728 = vset.pattern.permute.xlu0 0
    %3729 = vperm.xlu0 %3728, %v3715
    %v3730 = vpop.permute.xlu0 %3729
    %3733 = vset.pattern.permute.xlu0 0
    %3734 = vperm.xlu0 %3733, %v3716
    %v3735 = vpop.permute.xlu0 %3734
    %3738 = vset.pattern.permute.xlu0 0
    %3739 = vperm.xlu0 %3738, %v3717
    %v3740 = vpop.permute.xlu0 %3739
    %3743 = vset.pattern.permute.xlu0 0
    %3744 = vperm.xlu0 %3743, %v3718
    %v3745 = vpop.permute.xlu0 %3744
    %3748 = vset.pattern.permute.xlu0 0
    %3749 = vperm.xlu0 %3748, %v3719
    %v3750 = vpop.permute.xlu0 %3749
    %3753 = vset.pattern.permute.xlu0 0
    %3754 = vperm.xlu0 %3753, %v3720
    %v3755 = vpop.permute.xlu0 %3754
    %3758 = vset.pattern.permute.xlu0 0
    %3759 = vperm.xlu0 %3758, %v3721
    %v3760 = vpop.permute.xlu0 %3759
    %v3762 = vmul.f32 %v3725, %v121
    %v3763 = vmul.f32 %v3730, %v122
    %v3764 = vmul.f32 %v3735, %v123
    %v3765 = vmul.f32 %v3740, %v124
    %v3766 = vmul.f32 %v3745, %v125
    %v3767 = vmul.f32 %v3750, %v126
    %v3768 = vmul.f32 %v3755, %v127
    %v3769 = vmul.f32 %v3760, %v128
    %v3770 = vrot.slane %v3762, 4
    %v3771 = vadd.f32 %v3762, %v3770
    %v3772 = vrot.slane %v3771, 2
    %v3773 = vadd.f32 %v3771, %v3772
    %v3774 = vrot.slane %v3773, 1
    %v3775 = vadd.f32 %v3773, %v3774
    %v3776 = vrot.slane %v3763, 4
    %v3777 = vadd.f32 %v3763, %v3776
    %v3778 = vrot.slane %v3777, 2
    %v3779 = vadd.f32 %v3777, %v3778
    %v3780 = vrot.slane %v3779, 1
    %v3781 = vadd.f32 %v3779, %v3780
    %v3782 = vrot.slane %v3764, 4
    %v3783 = vadd.f32 %v3764, %v3782
    %v3784 = vrot.slane %v3783, 2
    %v3785 = vadd.f32 %v3783, %v3784
    %v3786 = vrot.slane %v3785, 1
    %v3787 = vadd.f32 %v3785, %v3786
    %v3788 = vrot.slane %v3765, 4
    %v3789 = vadd.f32 %v3765, %v3788
    %v3790 = vrot.slane %v3789, 2
    %v3791 = vadd.f32 %v3789, %v3790
    %v3792 = vrot.slane %v3791, 1
    %v3793 = vadd.f32 %v3791, %v3792
    %v3794 = vrot.slane %v3766, 4
    %v3795 = vadd.f32 %v3766, %v3794
    %v3796 = vrot.slane %v3795, 2
    %v3797 = vadd.f32 %v3795, %v3796
    %v3798 = vrot.slane %v3797, 1
    %v3799 = vadd.f32 %v3797, %v3798
    %v3800 = vrot.slane %v3767, 4
    %v3801 = vadd.f32 %v3767, %v3800
    %v3802 = vrot.slane %v3801, 2
    %v3803 = vadd.f32 %v3801, %v3802
    %v3804 = vrot.slane %v3803, 1
    %v3805 = vadd.f32 %v3803, %v3804
    %v3806 = vrot.slane %v3768, 4
    %v3807 = vadd.f32 %v3768, %v3806
    %v3808 = vrot.slane %v3807, 2
    %v3809 = vadd.f32 %v3807, %v3808
    %v3810 = vrot.slane %v3809, 1
    %v3811 = vadd.f32 %v3809, %v3810
    %v3812 = vrot.slane %v3769, 4
    %v3813 = vadd.f32 %v3769, %v3812
    %v3814 = vrot.slane %v3813, 2
    %v3815 = vadd.f32 %v3813, %v3814
    %v3816 = vrot.slane %v3815, 1
    %v3817 = vadd.f32 %v3815, %v3816
    %v3826 = vsel %vm542, %v3781, %v3775
    %v3827 = vsel %vm544, %v3787, %v3826
    %v3828 = vsel %vm546, %v3793, %v3827
    %v3829 = vsel %vm548, %v3799, %v3828
    %v3830 = vsel %vm550, %v3805, %v3829
    %v3831 = vsel %vm552, %v3811, %v3830
    %v3832 = vsel %vm554, %v3817, %v3831
    %s3834 = scalar_lea.vmem %s4, 128
    %v3835 = vld [vmem:[%s3834] sm:$0xff]
    %v3836 = vld [vmem:[%s3834 + $0x8] sm:$0xff]
    %v3837 = vld [vmem:[%s3834 + $0x10] sm:$0xff]
    %v3838 = vld [vmem:[%s3834 + $0x18] sm:$0xff]
    %3839 = vmatprep.subr.mxu0 %v215
    %3840 = vmatpush1.msra.mxu0 %v214
    %3841 = vmatprep.subr.mxu0 %v211
    %3842 = vmatpush1.msra.mxu0 %v210
    %3843 = vmatprep.subr.mxu0 %v207
    %3844 = vmatpush1.msra.mxu0 %v206
    %3845 = vmatprep.subr.mxu0 %v203
    %3846 = vmatpush1.msra.mxu0 %v202
    %3847 = vmatprep.subr.mxu0 %v199
    %3848 = vmatpush1.msra.mxu0 %v198
    %3849 = vmatprep.subr.mxu0 %v195
    %3850 = vmatpush1.msra.mxu0 %v194
    %3851 = vmatprep.subr.mxu0 %v191
    %3852 = vmatpush1.msra.mxu0 %v190
    %3853 = vmatprep.subr.mxu0 %v187
    %3854 = vmatpush1.msra.mxu0 %v186
    %3855 = vmatprep.subr.mxu0 %v183
    %3856 = vmatpush1.msra.mxu0 %v182
    %3857 = vmatprep.subr.mxu0 %v179
    %3858 = vmatpush1.msra.mxu0 %v178
    %3859 = vmatprep.subr.mxu0 %v175
    %3860 = vmatpush1.msra.mxu0 %v174
    %3861 = vmatprep.subr.mxu0 %v171
    %3862 = vmatpush1.msra.mxu0 %v170
    %3863 = vmatprep.subr.mxu0 %v167
    %3864 = vmatpush1.msra.mxu0 %v166
    %3865 = vmatprep.subr.mxu0 %v163
    %3866 = vmatpush1.msra.mxu0 %v162
    %3867 = vmatprep.subr.mxu0 %v159
    %3868 = vmatpush1.msra.mxu0 %v158
    %3869 = vmatprep.subr.mxu0 %v155
    %3870 = vmatpush1.msra.mxu0 %v154
    %3871 = vmatprep.subr.mxu0 %v279
    %3872 = vmatpush2.msra.mxu0 %v278
    %3873 = vmatprep.subr.mxu0 %v275
    %3874 = vmatpush2.msra.mxu0 %v274
    %3875 = vmatprep.subr.mxu0 %v271
    %3876 = vmatpush2.msra.mxu0 %v270
    %3877 = vmatprep.subr.mxu0 %v267
    %3878 = vmatpush2.msra.mxu0 %v266
    %3879 = vmatprep.subr.mxu0 %v263
    %3880 = vmatpush2.msra.mxu0 %v262
    %3881 = vmatprep.subr.mxu0 %v259
    %3882 = vmatpush2.msra.mxu0 %v258
    %3883 = vmatprep.subr.mxu0 %v255
    %3884 = vmatpush2.msra.mxu0 %v254
    %3885 = vmatprep.subr.mxu0 %v251
    %3886 = vmatpush2.msra.mxu0 %v250
    %3887 = vmatprep.subr.mxu0 %v247
    %3888 = vmatpush2.msra.mxu0 %v246
    %3889 = vmatprep.subr.mxu0 %v243
    %3890 = vmatpush2.msra.mxu0 %v242
    %3891 = vmatprep.subr.mxu0 %v239
    %3892 = vmatpush2.msra.mxu0 %v238
    %3893 = vmatprep.subr.mxu0 %v235
    %3894 = vmatpush2.msra.mxu0 %v234
    %3895 = vmatprep.subr.mxu0 %v231
    %3896 = vmatpush2.msra.mxu0 %v230
    %3897 = vmatprep.subr.mxu0 %v227
    %3898 = vmatpush2.msra.mxu0 %v226
    %3899 = vmatprep.subr.mxu0 %v223
    %3900 = vmatpush2.msra.mxu0 %v222
    %3901 = vmatprep.subr.mxu0 %v219
    %3902 = vmatpush2.msra.mxu0 %v218
    %3903 = vmatprep.mubr.f32.mxu0 %v3270
    %3904 = vmatmul.mubr.f32.gmra.mxu0 %v3832
    %v3905 = vpop.f32.mrf.mxu0
    %v3906 = vadd.f32 %v3835, %v3905
    %v3907 = vpop.f32.mrf.mxu0
    %v3908 = vadd.f32 %v3836, %v3907
    %3909 = vdwg.mxu0
    %3910 = vmatprep.subr.mxu0 %v217
    %3911 = vmatpush1.msra.mxu0 %v216
    %3912 = vmatprep.subr.mxu0 %v213
    %3913 = vmatpush1.msra.mxu0 %v212
    %3914 = vmatprep.subr.mxu0 %v209
    %3915 = vmatpush1.msra.mxu0 %v208
    %3916 = vmatprep.subr.mxu0 %v205
    %3917 = vmatpush1.msra.mxu0 %v204
    %3918 = vmatprep.subr.mxu0 %v201
    %3919 = vmatpush1.msra.mxu0 %v200
    %3920 = vmatprep.subr.mxu0 %v197
    %3921 = vmatpush1.msra.mxu0 %v196
    %3922 = vmatprep.subr.mxu0 %v193
    %3923 = vmatpush1.msra.mxu0 %v192
    %3924 = vmatprep.subr.mxu0 %v189
    %3925 = vmatpush1.msra.mxu0 %v188
    %3926 = vmatprep.subr.mxu0 %v185
    %3927 = vmatpush1.msra.mxu0 %v184
    %3928 = vmatprep.subr.mxu0 %v181
    %3929 = vmatpush1.msra.mxu0 %v180
    %3930 = vmatprep.subr.mxu0 %v177
    %3931 = vmatpush1.msra.mxu0 %v176
    %3932 = vmatprep.subr.mxu0 %v173
    %3933 = vmatpush1.msra.mxu0 %v172
    %3934 = vmatprep.subr.mxu0 %v169
    %3935 = vmatpush1.msra.mxu0 %v168
    %3936 = vmatprep.subr.mxu0 %v165
    %3937 = vmatpush1.msra.mxu0 %v164
    %3938 = vmatprep.subr.mxu0 %v161
    %3939 = vmatpush1.msra.mxu0 %v160
    %3940 = vmatprep.subr.mxu0 %v157
    %3941 = vmatpush1.msra.mxu0 %v156
    %3942 = vmatprep.subr.mxu0 %v281
    %3943 = vmatpush2.msra.mxu0 %v280
    %3944 = vmatprep.subr.mxu0 %v277
    %3945 = vmatpush2.msra.mxu0 %v276
    %3946 = vmatprep.subr.mxu0 %v273
    %3947 = vmatpush2.msra.mxu0 %v272
    %3948 = vmatprep.subr.mxu0 %v269
    %3949 = vmatpush2.msra.mxu0 %v268
    %3950 = vmatprep.subr.mxu0 %v265
    %3951 = vmatpush2.msra.mxu0 %v264
    %3952 = vmatprep.subr.mxu0 %v261
    %3953 = vmatpush2.msra.mxu0 %v260
    %3954 = vmatprep.subr.mxu0 %v257
    %3955 = vmatpush2.msra.mxu0 %v256
    %3956 = vmatprep.subr.mxu0 %v253
    %3957 = vmatpush2.msra.mxu0 %v252
    %3958 = vmatprep.subr.mxu0 %v249
    %3959 = vmatpush2.msra.mxu0 %v248
    %3960 = vmatprep.subr.mxu0 %v245
    %3961 = vmatpush2.msra.mxu0 %v244
    %3962 = vmatprep.subr.mxu0 %v241
    %3963 = vmatpush2.msra.mxu0 %v240
    %3964 = vmatprep.subr.mxu0 %v237
    %3965 = vmatpush2.msra.mxu0 %v236
    %3966 = vmatprep.subr.mxu0 %v233
    %3967 = vmatpush2.msra.mxu0 %v232
    %3968 = vmatprep.subr.mxu0 %v229
    %3969 = vmatpush2.msra.mxu0 %v228
    %3970 = vmatprep.subr.mxu0 %v225
    %3971 = vmatpush2.msra.mxu0 %v224
    %3972 = vmatprep.subr.mxu0 %v221
    %3973 = vmatpush2.msra.mxu0 %v220
    %3974 = vmatprep.mubr.f32.mxu0 %v3270
    %3975 = vmatmul.mubr.f32.gmra.mxu0 %v3832
    %v3976 = vpop.f32.mrf.mxu0
    %v3977 = vadd.f32 %v3837, %v3976
    %v3978 = vpop.f32.mrf.mxu0
    %v3979 = vadd.f32 %v3838, %v3978
    %3980 = vdwg.mxu0
    %v3981 = vadd.f32 %v3906, %v1013
    %v3982 = vadd.f32 %v3908, %v1017
    %v3983 = vadd.f32 %v3977, %v1021
    %v3984 = vadd.f32 %v3979, %v1025
    %v3985 = vxor.u32 %v3981, 2147483648
    %v3986 = vmul.f32 %v3985, 1.442695
    %v3987 = vpow.pop %v3986
    %v3988 = vadd.f32 %v3987, 1.0
    %v3989 = vrcp.pop %v3988
    %v3990 = vmul.f32 1.0, %v3989
    %v3991 = vxor.u32 %v3982, 2147483648
    %v3992 = vmul.f32 %v3991, 1.442695
    %v3993 = vpow.pop %v3992
    %v3994 = vadd.f32 %v3993, 1.0
    %v3995 = vrcp.pop %v3994
    %v3996 = vmul.f32 1.0, %v3995
    %v3997 = vtanh.pop %v3983
    %v3998 = vxor.u32 %v3984, 2147483648
    %v3999 = vmul.f32 %v3998, 1.442695
    %v4000 = vpow.pop %v3999
    %v4001 = vadd.f32 %v4000, 1.0
    %v4002 = vrcp.pop %v4001
    %v4003 = vmul.f32 1.0, %v4002
    %v4004 = vmul.f32 %v3996, %v3268
    %v4005 = vmul.f32 %v3990, %v3997
    %v4006 = vadd.f32 %v4004, %v4005
    %v4007 = vtanh.pop %v4006
    %v4008 = vmul.f32 %v4003, %v4007
    %s4009 = scalar_lea.vmem [#allocation2], 32
    %4010 = vst [vmem:[%s4009] sm:$0xff] %v4008
    %4011 = vmatprep.subr.mxu0 0.0
    %4012 = vmatpush1.msra.mxu0 %v153
    %4013 = vmatprep.subr.mxu0 0.0
    %4014 = vmatpush1.msra.mxu0 %v152
    %4015 = vmatprep.subr.mxu0 0.0
    %4016 = vmatpush1.msra.mxu0 %v151
    %4017 = vmatprep.subr.mxu0 0.0
    %4018 = vmatpush1.msra.mxu0 %v150
    %4019 = vmatprep.subr.mxu0 0.0
    %4020 = vmatpush1.msra.mxu0 %v149
    %4021 = vmatprep.subr.mxu0 0.0
    %4022 = vmatpush1.msra.mxu0 %v148
    %4023 = vmatprep.subr.mxu0 0.0
    %4024 = vmatpush1.msra.mxu0 %v147
    %4025 = vmatprep.subr.mxu0 0.0
    %4026 = vmatpush1.msra.mxu0 %v146
    %4027 = vmatprep.subr.mxu0 0.0
    %4028 = vmatpush1.msra.mxu0 %v145
    %4029 = vmatprep.subr.mxu0 0.0
    %4030 = vmatpush1.msra.mxu0 %v144
    %4031 = vmatprep.subr.mxu0 0.0
    %4032 = vmatpush1.msra.mxu0 %v143
    %4033 = vmatprep.subr.mxu0 0.0
    %4034 = vmatpush1.msra.mxu0 %v142
    %4035 = vmatprep.subr.mxu0 0.0
    %4036 = vmatpush1.msra.mxu0 %v141
    %4037 = vmatprep.subr.mxu0 0.0
    %4038 = vmatpush1.msra.mxu0 %v140
    %4039 = vmatprep.subr.mxu0 0.0
    %4040 = vmatpush1.msra.mxu0 %v139
    %4041 = vmatprep.subr.mxu0 0.0
    %4042 = vmatpush1.msra.mxu0 %v138
    %4043 = vmatprep.subr.mxu0 0.0
    %4044 = vmatpush2.msra.mxu0 0.0
    %4045 = vmatprep.subr.mxu0 0.0
    %4046 = vmatpush2.msra.mxu0 0.0
    %4047 = vmatprep.subr.mxu0 0.0
    %4048 = vmatpush2.msra.mxu0 0.0
    %4049 = vmatprep.subr.mxu0 0.0
    %4050 = vmatpush2.msra.mxu0 0.0
    %4051 = vmatprep.subr.mxu0 0.0
    %4052 = vmatpush2.msra.mxu0 0.0
    %4053 = vmatprep.subr.mxu0 0.0
    %4054 = vmatpush2.msra.mxu0 0.0
    %4055 = vmatprep.subr.mxu0 0.0
    %4056 = vmatpush2.msra.mxu0 0.0
    %4057 = vmatprep.subr.mxu0 0.0
    %4058 = vmatpush2.msra.mxu0 0.0
    %4059 = vmatprep.subr.mxu0 0.0
    %4060 = vmatpush2.msra.mxu0 0.0
    %4061 = vmatprep.subr.mxu0 0.0
    %4062 = vmatpush2.msra.mxu0 0.0
    %4063 = vmatprep.subr.mxu0 0.0
    %4064 = vmatpush2.msra.mxu0 0.0
    %4065 = vmatprep.subr.mxu0 0.0
    %4066 = vmatpush2.msra.mxu0 0.0
    %4067 = vmatprep.subr.mxu0 0.0
    %4068 = vmatpush2.msra.mxu0 0.0
    %4069 = vmatprep.subr.mxu0 0.0
    %4070 = vmatpush2.msra.mxu0 0.0
    %4071 = vmatprep.subr.mxu0 0.0
    %4072 = vmatpush2.msra.mxu0 0.0
    %4073 = vmatprep.subr.mxu0 0.0
    %4074 = vmatpush2.msra.mxu0 0.0
    %4075 = vmatprep.mubr.f32.mxu0 0.0
    %4076 = vmatmul.mubr.f32.gmra.mxu0 %v4006
    %v4077 = vpop.f32.mrf.mxu0
    %v4078 = vadd.f32 0.0, %v4077
    %v4079 = vpop.f32.mrf.mxu0
    %4080 = vdwg.mxu0
    %v4082 = vcombine.high %v4078, %v4078
    %v4084 = vunpack.c.l.s4 1966171168
    %v4085 = vunpack.c.0.s8 %v4084
    %v4086 = vlaneseq
    %v4087 = vshrl.u32 %v4086, 7
    %v4088 = vsub.s32 %v4085, %v4087
    %v4089 = vrot.slane %v4078, %v4088
    %v4091 = vunpack.c.l.s4 1966171168
    %v4092 = vunpack.c.0.s8 %v4091
    %v4093 = vlaneseq
    %v4094 = vshrl.u32 %v4093, 7
    %v4095 = vsub.s32 %v4092, %v4094
    %v4096 = vrot.slane %v4082, %v4095
    %v4097 = vcombine.high %v4089, %v4089
    %v4098 = vcombine.high %v4096, %v4096
    %v4100 = vunpack.c.l.s4 1966171168
    %v4101 = vunpack.c.0.s8 %v4100
    %v4102 = vlaneseq
    %v4103 = vshrl.u32 %v4102, 7
    %v4104 = vsub.s32 %v4101, %v4103
    %v4105 = vrot.slane %v4089, %v4104
    %v4107 = vunpack.c.l.s4 1966171168
    %v4108 = vunpack.c.0.s8 %v4107
    %v4109 = vlaneseq
    %v4110 = vshrl.u32 %v4109, 7
    %v4111 = vsub.s32 %v4108, %v4110
    %v4112 = vrot.slane %v4096, %v4111
    %v4114 = vunpack.c.l.s4 1966171168
    %v4115 = vunpack.c.0.s8 %v4114
    %v4116 = vlaneseq
    %v4117 = vshrl.u32 %v4116, 7
    %v4118 = vsub.s32 %v4115, %v4117
    %v4119 = vrot.slane %v4097, %v4118
    %v4121 = vunpack.c.l.s4 1966171168
    %v4122 = vunpack.c.0.s8 %v4121
    %v4123 = vlaneseq
    %v4124 = vshrl.u32 %v4123, 7
    %v4125 = vsub.s32 %v4122, %v4124
    %v4126 = vrot.slane %v4098, %v4125
    %v4127 = vcombine.high %v4105, %v4105
    %v4128 = vcombine.high %v4112, %v4112
    %v4129 = vcombine.high %v4119, %v4119
    %v4130 = vcombine.high %v4126, %v4126
    %v4131 = vlaneseq
    %v4132 = vshrl.u32 %v4131, 7
    %v4133 = vsub.s32 0, %v4132
    %v4134 = vrot.slane %v4105, %v4133
    %v4135 = vlaneseq
    %v4136 = vshrl.u32 %v4135, 7
    %v4137 = vsub.s32 0, %v4136
    %v4138 = vrot.slane %v4119, %v4137
    %v4139 = vlaneseq
    %v4140 = vshrl.u32 %v4139, 7
    %v4141 = vsub.s32 0, %v4140
    %v4142 = vrot.slane %v4127, %v4141
    %v4143 = vlaneseq
    %v4144 = vshrl.u32 %v4143, 7
    %v4145 = vsub.s32 0, %v4144
    %v4146 = vrot.slane %v4129, %v4145
    %v4147 = vlaneseq
    %v4148 = vshrl.u32 %v4147, 7
    %v4149 = vsub.s32 0, %v4148
    %v4150 = vrot.slane %v4112, %v4149
    %v4151 = vlaneseq
    %v4152 = vshrl.u32 %v4151, 7
    %v4153 = vsub.s32 0, %v4152
    %v4154 = vrot.slane %v4126, %v4153
    %v4155 = vlaneseq
    %v4156 = vshrl.u32 %v4155, 7
    %v4157 = vsub.s32 0, %v4156
    %v4158 = vrot.slane %v4128, %v4157
    %v4159 = vlaneseq
    %v4160 = vshrl.u32 %v4159, 7
    %v4161 = vsub.s32 0, %v4160
    %v4162 = vrot.slane %v4130, %v4161
    %v4171 = vadd.f32 %v129, %v4134
    %v4172 = vadd.f32 %v130, %v4138
    %v4173 = vadd.f32 %v131, %v4142
    %v4174 = vadd.f32 %v132, %v4146
    %v4175 = vadd.f32 %v133, %v4150
    %v4176 = vadd.f32 %v134, %v4154
    %v4177 = vadd.f32 %v135, %v4158
    %v4178 = vadd.f32 %v136, %v4162
    %v4179 = vtanh.pop %v4171
    %v4180 = vtanh.pop %v4172
    %v4181 = vtanh.pop %v4173
    %v4182 = vtanh.pop %v4174
    %v4183 = vtanh.pop %v4175
    %v4184 = vtanh.pop %v4176
    %v4185 = vtanh.pop %v4177
    %v4186 = vtanh.pop %v4178
    %v4187 = vmul.f32 %v4179, %v465
    %v4188 = vmul.f32 %v4180, %v465
    %v4189 = vmul.f32 %v4181, %v465
    %v4190 = vmul.f32 %v4182, %v465
    %v4191 = vmul.f32 %v4183, %v465
    %v4192 = vmul.f32 %v4184, %v465
    %v4193 = vmul.f32 %v4185, %v465
    %v4194 = vmul.f32 %v4186, %v465
    %v4195 = vsel %vm475, %v4187, 0.0
    %4196 = vadd.xlane.f32.xlu0 %v4195
    %v4197 = vpop.xlane.xlu0 %4196
    %v4198 = vsel %vm475, %v4188, 0.0
    %4199 = vadd.xlane.f32.xlu0 %v4198
    %v4200 = vpop.xlane.xlu0 %4199
    %v4201 = vsel %vm475, %v4189, 0.0
    %4202 = vadd.xlane.f32.xlu0 %v4201
    %v4203 = vpop.xlane.xlu0 %4202
    %v4204 = vsel %vm475, %v4190, 0.0
    %4205 = vadd.xlane.f32.xlu0 %v4204
    %v4206 = vpop.xlane.xlu0 %4205
    %v4207 = vsel %vm475, %v4191, 0.0
    %4208 = vadd.xlane.f32.xlu0 %v4207
    %v4209 = vpop.xlane.xlu0 %4208
    %v4210 = vsel %vm475, %v4192, 0.0
    %4211 = vadd.xlane.f32.xlu0 %v4210
    %v4212 = vpop.xlane.xlu0 %4211
    %v4213 = vsel %vm475, %v4193, 0.0
    %4214 = vadd.xlane.f32.xlu0 %v4213
    %v4215 = vpop.xlane.xlu0 %4214
    %v4216 = vsel %vm475, %v4194, 0.0
    %4217 = vadd.xlane.f32.xlu0 %v4216
    %v4218 = vpop.xlane.xlu0 %4217
    %v4227 = vlaneseq
    %v4228 = vshrl.u32 %v4227, 7
    %v4229 = vsub.s32 %v509, %v4228
    %v4230 = vrot.slane %v4197, %v4229
    %v4231 = vlaneseq
    %v4232 = vshrl.u32 %v4231, 7
    %v4233 = vsub.s32 %v509, %v4232
    %v4234 = vrot.slane %v4200, %v4233
    %v4235 = vlaneseq
    %v4236 = vshrl.u32 %v4235, 7
    %v4237 = vsub.s32 %v509, %v4236
    %v4238 = vrot.slane %v4203, %v4237
    %v4239 = vlaneseq
    %v4240 = vshrl.u32 %v4239, 7
    %v4241 = vsub.s32 %v509, %v4240
    %v4242 = vrot.slane %v4206, %v4241
    %v4243 = vlaneseq
    %v4244 = vshrl.u32 %v4243, 7
    %v4245 = vsub.s32 %v509, %v4244
    %v4246 = vrot.slane %v4209, %v4245
    %v4247 = vlaneseq
    %v4248 = vshrl.u32 %v4247, 7
    %v4249 = vsub.s32 %v509, %v4248
    %v4250 = vrot.slane %v4212, %v4249
    %v4251 = vlaneseq
    %v4252 = vshrl.u32 %v4251, 7
    %v4253 = vsub.s32 %v509, %v4252
    %v4254 = vrot.slane %v4215, %v4253
    %v4255 = vlaneseq
    %v4256 = vshrl.u32 %v4255, 7
    %v4257 = vsub.s32 %v509, %v4256
    %v4258 = vrot.slane %v4218, %v4257
    %v4259 = vsel %vm542, %v4234, %v4230
    %v4260 = vsel %vm544, %v4238, %v4259
    %v4261 = vsel %vm546, %v4242, %v4260
    %v4262 = vsel %vm548, %v4246, %v4261
    %v4263 = vsel %vm550, %v4250, %v4262
    %v4264 = vsel %vm552, %v4254, %v4263
    %v4265 = vsel %vm554, %v4258, %v4264
    %v4267 = vsel %vm557, %v4265, -inf
    %4268 = vmax.xlane.f32.xlu0 %v4267
    %v4269 = vpop.xlane.xlu0 %4268
    %v4271 = vlaneseq
    %v4272 = vshrl.u32 %v4271, 7
    %v4273 = vsub.s32 0, %v4272
    %v4274 = vrot.slane %v4269, %v4273
    %v4275 = vlaneseq
    %v4276 = vshrl.u32 %v4275, 7
    %v4277 = vsub.s32 1, %v4276
    %v4278 = vrot.slane %v4269, %v4277
    %v4279 = vlaneseq
    %v4280 = vshrl.u32 %v4279, 7
    %v4281 = vsub.s32 2, %v4280
    %v4282 = vrot.slane %v4269, %v4281
    %v4283 = vlaneseq
    %v4284 = vshrl.u32 %v4283, 7
    %v4285 = vsub.s32 3, %v4284
    %v4286 = vrot.slane %v4269, %v4285
    %v4287 = vlaneseq
    %v4288 = vshrl.u32 %v4287, 7
    %v4289 = vsub.s32 4, %v4288
    %v4290 = vrot.slane %v4269, %v4289
    %v4291 = vlaneseq
    %v4292 = vshrl.u32 %v4291, 7
    %v4293 = vsub.s32 5, %v4292
    %v4294 = vrot.slane %v4269, %v4293
    %v4295 = vlaneseq
    %v4296 = vshrl.u32 %v4295, 7
    %v4297 = vsub.s32 6, %v4296
    %v4298 = vrot.slane %v4269, %v4297
    %v4299 = vlaneseq
    %v4300 = vshrl.u32 %v4299, 7
    %v4301 = vsub.s32 7, %v4300
    %v4302 = vrot.slane %v4269, %v4301
    %v4311 = vsub.f32 %v4197, %v4274
    %v4312 = vsub.f32 %v4200, %v4278
    %v4313 = vsub.f32 %v4203, %v4282
    %v4314 = vsub.f32 %v4206, %v4286
    %v4315 = vsub.f32 %v4209, %v4290
    %v4316 = vsub.f32 %v4212, %v4294
    %v4317 = vsub.f32 %v4215, %v4298
    %v4318 = vsub.f32 %v4218, %v4302
    %v4319 = vmul.f32 %v4311, 1.442695
    %v4320 = vpow.pop %v4319
    %v4321 = vmul.f32 %v4312, 1.442695
    %v4322 = vpow.pop %v4321
    %v4323 = vmul.f32 %v4313, 1.442695
    %v4324 = vpow.pop %v4323
    %v4325 = vmul.f32 %v4314, 1.442695
    %v4326 = vpow.pop %v4325
    %v4327 = vmul.f32 %v4315, 1.442695
    %v4328 = vpow.pop %v4327
    %v4329 = vmul.f32 %v4316, 1.442695
    %v4330 = vpow.pop %v4329
    %v4331 = vmul.f32 %v4317, 1.442695
    %v4332 = vpow.pop %v4331
    %v4333 = vmul.f32 %v4318, 1.442695
    %v4334 = vpow.pop %v4333
    %4343 = vset.pattern.permute.xlu0 0
    %4344 = vperm.xlu0 %4343, %v4320
    %v4345 = vpop.permute.xlu0 %4344
    %4346 = vset.pattern.permute.xlu0 0
    %4347 = vperm.xlu0 %4346, %v4322
    %v4348 = vpop.permute.xlu0 %4347
    %4349 = vset.pattern.permute.xlu0 0
    %4350 = vperm.xlu0 %4349, %v4324
    %v4351 = vpop.permute.xlu0 %4350
    %4352 = vset.pattern.permute.xlu0 0
    %4353 = vperm.xlu0 %4352, %v4326
    %v4354 = vpop.permute.xlu0 %4353
    %4355 = vset.pattern.permute.xlu0 0
    %4356 = vperm.xlu0 %4355, %v4328
    %v4357 = vpop.permute.xlu0 %4356
    %4358 = vset.pattern.permute.xlu0 0
    %4359 = vperm.xlu0 %4358, %v4330
    %v4360 = vpop.permute.xlu0 %4359
    %4361 = vset.pattern.permute.xlu0 0
    %4362 = vperm.xlu0 %4361, %v4332
    %v4363 = vpop.permute.xlu0 %4362
    %4364 = vset.pattern.permute.xlu0 0
    %4365 = vperm.xlu0 %4364, %v4334
    %v4366 = vpop.permute.xlu0 %4365
    %v4367 = vlaneseq
    %v4368 = vshrl.u32 %v4367, 7
    %v4369 = vsub.s32 %v509, %v4368
    %v4370 = vrot.slane %v4345, %v4369
    %v4371 = vlaneseq
    %v4372 = vshrl.u32 %v4371, 7
    %v4373 = vsub.s32 %v509, %v4372
    %v4374 = vrot.slane %v4348, %v4373
    %v4375 = vlaneseq
    %v4376 = vshrl.u32 %v4375, 7
    %v4377 = vsub.s32 %v509, %v4376
    %v4378 = vrot.slane %v4351, %v4377
    %v4379 = vlaneseq
    %v4380 = vshrl.u32 %v4379, 7
    %v4381 = vsub.s32 %v509, %v4380
    %v4382 = vrot.slane %v4354, %v4381
    %v4383 = vlaneseq
    %v4384 = vshrl.u32 %v4383, 7
    %v4385 = vsub.s32 %v509, %v4384
    %v4386 = vrot.slane %v4357, %v4385
    %v4387 = vlaneseq
    %v4388 = vshrl.u32 %v4387, 7
    %v4389 = vsub.s32 %v509, %v4388
    %v4390 = vrot.slane %v4360, %v4389
    %v4391 = vlaneseq
    %v4392 = vshrl.u32 %v4391, 7
    %v4393 = vsub.s32 %v509, %v4392
    %v4394 = vrot.slane %v4363, %v4393
    %v4395 = vlaneseq
    %v4396 = vshrl.u32 %v4395, 7
    %v4397 = vsub.s32 %v509, %v4396
    %v4398 = vrot.slane %v4366, %v4397
    %v4399 = vsel %vm542, %v4374, %v4370
    %v4400 = vsel %vm544, %v4378, %v4399
    %v4401 = vsel %vm546, %v4382, %v4400
    %v4402 = vsel %vm548, %v4386, %v4401
    %v4403 = vsel %vm550, %v4390, %v4402
    %v4404 = vsel %vm552, %v4394, %v4403
    %v4405 = vsel %vm554, %v4398, %v4404
    %v4407 = vsel %vm557, %v4405, 0.0
    %4408 = vadd.xlane.f32.xlu0 %v4407
    %v4409 = vpop.xlane.xlu0 %4408
    %v4410 = vrcp.pop %v4409
    %v4412 = vlaneseq
    %v4413 = vshrl.u32 %v4412, 7
    %v4414 = vsub.s32 0, %v4413
    %v4415 = vrot.slane %v4410, %v4414
    %v4416 = vlaneseq
    %v4417 = vshrl.u32 %v4416, 7
    %v4418 = vsub.s32 1, %v4417
    %v4419 = vrot.slane %v4410, %v4418
    %v4420 = vlaneseq
    %v4421 = vshrl.u32 %v4420, 7
    %v4422 = vsub.s32 2, %v4421
    %v4423 = vrot.slane %v4410, %v4422
    %v4424 = vlaneseq
    %v4425 = vshrl.u32 %v4424, 7
    %v4426 = vsub.s32 3, %v4425
    %v4427 = vrot.slane %v4410, %v4426
    %v4428 = vlaneseq
    %v4429 = vshrl.u32 %v4428, 7
    %v4430 = vsub.s32 4, %v4429
    %v4431 = vrot.slane %v4410, %v4430
    %v4432 = vlaneseq
    %v4433 = vshrl.u32 %v4432, 7
    %v4434 = vsub.s32 5, %v4433
    %v4435 = vrot.slane %v4410, %v4434
    %v4436 = vlaneseq
    %v4437 = vshrl.u32 %v4436, 7
    %v4438 = vsub.s32 6, %v4437
    %v4439 = vrot.slane %v4410, %v4438
    %v4440 = vlaneseq
    %v4441 = vshrl.u32 %v4440, 7
    %v4442 = vsub.s32 7, %v4441
    %v4443 = vrot.slane %v4410, %v4442
    %v4452 = vmul.f32 %v4320, %v4415
    %v4453 = vmul.f32 %v4322, %v4419
    %v4454 = vmul.f32 %v4324, %v4423
    %v4455 = vmul.f32 %v4326, %v4427
    %v4456 = vmul.f32 %v4328, %v4431
    %v4457 = vmul.f32 %v4330, %v4435
    %v4458 = vmul.f32 %v4332, %v4439
    %v4459 = vmul.f32 %v4334, %v4443
    %4461 = vset.pattern.permute.xlu0 0
    %4462 = vperm.xlu0 %4461, %v4452
    %v4463 = vpop.permute.xlu0 %4462
    %4466 = vset.pattern.permute.xlu0 0
    %4467 = vperm.xlu0 %4466, %v4453
    %v4468 = vpop.permute.xlu0 %4467
    %4471 = vset.pattern.permute.xlu0 0
    %4472 = vperm.xlu0 %4471, %v4454
    %v4473 = vpop.permute.xlu0 %4472
    %4476 = vset.pattern.permute.xlu0 0
    %4477 = vperm.xlu0 %4476, %v4455
    %v4478 = vpop.permute.xlu0 %4477
    %4481 = vset.pattern.permute.xlu0 0
    %4482 = vperm.xlu0 %4481, %v4456
    %v4483 = vpop.permute.xlu0 %4482
    %4486 = vset.pattern.permute.xlu0 0
    %4487 = vperm.xlu0 %4486, %v4457
    %v4488 = vpop.permute.xlu0 %4487
    %4491 = vset.pattern.permute.xlu0 0
    %4492 = vperm.xlu0 %4491, %v4458
    %v4493 = vpop.permute.xlu0 %4492
    %4496 = vset.pattern.permute.xlu0 0
    %4497 = vperm.xlu0 %4496, %v4459
    %v4498 = vpop.permute.xlu0 %4497
    %v4500 = vmul.f32 %v4463, %v121
    %v4501 = vmul.f32 %v4468, %v122
    %v4502 = vmul.f32 %v4473, %v123
    %v4503 = vmul.f32 %v4478, %v124
    %v4504 = vmul.f32 %v4483, %v125
    %v4505 = vmul.f32 %v4488, %v126
    %v4506 = vmul.f32 %v4493, %v127
    %v4507 = vmul.f32 %v4498, %v128
    %v4508 = vrot.slane %v4500, 4
    %v4509 = vadd.f32 %v4500, %v4508
    %v4510 = vrot.slane %v4509, 2
    %v4511 = vadd.f32 %v4509, %v4510
    %v4512 = vrot.slane %v4511, 1
    %v4513 = vadd.f32 %v4511, %v4512
    %v4514 = vrot.slane %v4501, 4
    %v4515 = vadd.f32 %v4501, %v4514
    %v4516 = vrot.slane %v4515, 2
    %v4517 = vadd.f32 %v4515, %v4516
    %v4518 = vrot.slane %v4517, 1
    %v4519 = vadd.f32 %v4517, %v4518
    %v4520 = vrot.slane %v4502, 4
    %v4521 = vadd.f32 %v4502, %v4520
    %v4522 = vrot.slane %v4521, 2
    %v4523 = vadd.f32 %v4521, %v4522
    %v4524 = vrot.slane %v4523, 1
    %v4525 = vadd.f32 %v4523, %v4524
    %v4526 = vrot.slane %v4503, 4
    %v4527 = vadd.f32 %v4503, %v4526
    %v4528 = vrot.slane %v4527, 2
    %v4529 = vadd.f32 %v4527, %v4528
    %v4530 = vrot.slane %v4529, 1
    %v4531 = vadd.f32 %v4529, %v4530
    %v4532 = vrot.slane %v4504, 4
    %v4533 = vadd.f32 %v4504, %v4532
    %v4534 = vrot.slane %v4533, 2
    %v4535 = vadd.f32 %v4533, %v4534
    %v4536 = vrot.slane %v4535, 1
    %v4537 = vadd.f32 %v4535, %v4536
    %v4538 = vrot.slane %v4505, 4
    %v4539 = vadd.f32 %v4505, %v4538
    %v4540 = vrot.slane %v4539, 2
    %v4541 = vadd.f32 %v4539, %v4540
    %v4542 = vrot.slane %v4541, 1
    %v4543 = vadd.f32 %v4541, %v4542
    %v4544 = vrot.slane %v4506, 4
    %v4545 = vadd.f32 %v4506, %v4544
    %v4546 = vrot.slane %v4545, 2
    %v4547 = vadd.f32 %v4545, %v4546
    %v4548 = vrot.slane %v4547, 1
    %v4549 = vadd.f32 %v4547, %v4548
    %v4550 = vrot.slane %v4507, 4
    %v4551 = vadd.f32 %v4507, %v4550
    %v4552 = vrot.slane %v4551, 2
    %v4553 = vadd.f32 %v4551, %v4552
    %v4554 = vrot.slane %v4553, 1
    %v4555 = vadd.f32 %v4553, %v4554
    %v4564 = vsel %vm542, %v4519, %v4513
    %v4565 = vsel %vm544, %v4525, %v4564
    %v4566 = vsel %vm546, %v4531, %v4565
    %v4567 = vsel %vm548, %v4537, %v4566
    %v4568 = vsel %vm550, %v4543, %v4567
    %v4569 = vsel %vm552, %v4549, %v4568
    %v4570 = vsel %vm554, %v4555, %v4569
    %s4572 = scalar_lea.vmem %s4, 160
    %v4573 = vld [vmem:[%s4572] sm:$0xff]
    %v4574 = vld [vmem:[%s4572 + $0x8] sm:$0xff]
    %v4575 = vld [vmem:[%s4572 + $0x10] sm:$0xff]
    %v4576 = vld [vmem:[%s4572 + $0x18] sm:$0xff]
    %4577 = vmatprep.subr.mxu0 %v215
    %4578 = vmatpush1.msra.mxu0 %v214
    %4579 = vmatprep.subr.mxu0 %v211
    %4580 = vmatpush1.msra.mxu0 %v210
    %4581 = vmatprep.subr.mxu0 %v207
    %4582 = vmatpush1.msra.mxu0 %v206
    %4583 = vmatprep.subr.mxu0 %v203
    %4584 = vmatpush1.msra.mxu0 %v202
    %4585 = vmatprep.subr.mxu0 %v199
    %4586 = vmatpush1.msra.mxu0 %v198
    %4587 = vmatprep.subr.mxu0 %v195
    %4588 = vmatpush1.msra.mxu0 %v194
    %4589 = vmatprep.subr.mxu0 %v191
    %4590 = vmatpush1.msra.mxu0 %v190
    %4591 = vmatprep.subr.mxu0 %v187
    %4592 = vmatpush1.msra.mxu0 %v186
    %4593 = vmatprep.subr.mxu0 %v183
    %4594 = vmatpush1.msra.mxu0 %v182
    %4595 = vmatprep.subr.mxu0 %v179
    %4596 = vmatpush1.msra.mxu0 %v178
    %4597 = vmatprep.subr.mxu0 %v175
    %4598 = vmatpush1.msra.mxu0 %v174
    %4599 = vmatprep.subr.mxu0 %v171
    %4600 = vmatpush1.msra.mxu0 %v170
    %4601 = vmatprep.subr.mxu0 %v167
    %4602 = vmatpush1.msra.mxu0 %v166
    %4603 = vmatprep.subr.mxu0 %v163
    %4604 = vmatpush1.msra.mxu0 %v162
    %4605 = vmatprep.subr.mxu0 %v159
    %4606 = vmatpush1.msra.mxu0 %v158
    %4607 = vmatprep.subr.mxu0 %v155
    %4608 = vmatpush1.msra.mxu0 %v154
    %4609 = vmatprep.subr.mxu0 %v279
    %4610 = vmatpush2.msra.mxu0 %v278
    %4611 = vmatprep.subr.mxu0 %v275
    %4612 = vmatpush2.msra.mxu0 %v274
    %4613 = vmatprep.subr.mxu0 %v271
    %4614 = vmatpush2.msra.mxu0 %v270
    %4615 = vmatprep.subr.mxu0 %v267
    %4616 = vmatpush2.msra.mxu0 %v266
    %4617 = vmatprep.subr.mxu0 %v263
    %4618 = vmatpush2.msra.mxu0 %v262
    %4619 = vmatprep.subr.mxu0 %v259
    %4620 = vmatpush2.msra.mxu0 %v258
    %4621 = vmatprep.subr.mxu0 %v255
    %4622 = vmatpush2.msra.mxu0 %v254
    %4623 = vmatprep.subr.mxu0 %v251
    %4624 = vmatpush2.msra.mxu0 %v250
    %4625 = vmatprep.subr.mxu0 %v247
    %4626 = vmatpush2.msra.mxu0 %v246
    %4627 = vmatprep.subr.mxu0 %v243
    %4628 = vmatpush2.msra.mxu0 %v242
    %4629 = vmatprep.subr.mxu0 %v239
    %4630 = vmatpush2.msra.mxu0 %v238
    %4631 = vmatprep.subr.mxu0 %v235
    %4632 = vmatpush2.msra.mxu0 %v234
    %4633 = vmatprep.subr.mxu0 %v231
    %4634 = vmatpush2.msra.mxu0 %v230
    %4635 = vmatprep.subr.mxu0 %v227
    %4636 = vmatpush2.msra.mxu0 %v226
    %4637 = vmatprep.subr.mxu0 %v223
    %4638 = vmatpush2.msra.mxu0 %v222
    %4639 = vmatprep.subr.mxu0 %v219
    %4640 = vmatpush2.msra.mxu0 %v218
    %4641 = vmatprep.mubr.f32.mxu0 %v4008
    %4642 = vmatmul.mubr.f32.gmra.mxu0 %v4570
    %v4643 = vpop.f32.mrf.mxu0
    %v4644 = vadd.f32 %v4573, %v4643
    %v4645 = vpop.f32.mrf.mxu0
    %v4646 = vadd.f32 %v4574, %v4645
    %4647 = vdwg.mxu0
    %4648 = vmatprep.subr.mxu0 %v217
    %4649 = vmatpush1.msra.mxu0 %v216
    %4650 = vmatprep.subr.mxu0 %v213
    %4651 = vmatpush1.msra.mxu0 %v212
    %4652 = vmatprep.subr.mxu0 %v209
    %4653 = vmatpush1.msra.mxu0 %v208
    %4654 = vmatprep.subr.mxu0 %v205
    %4655 = vmatpush1.msra.mxu0 %v204
    %4656 = vmatprep.subr.mxu0 %v201
    %4657 = vmatpush1.msra.mxu0 %v200
    %4658 = vmatprep.subr.mxu0 %v197
    %4659 = vmatpush1.msra.mxu0 %v196
    %4660 = vmatprep.subr.mxu0 %v193
    %4661 = vmatpush1.msra.mxu0 %v192
    %4662 = vmatprep.subr.mxu0 %v189
    %4663 = vmatpush1.msra.mxu0 %v188
    %4664 = vmatprep.subr.mxu0 %v185
    %4665 = vmatpush1.msra.mxu0 %v184
    %4666 = vmatprep.subr.mxu0 %v181
    %4667 = vmatpush1.msra.mxu0 %v180
    %4668 = vmatprep.subr.mxu0 %v177
    %4669 = vmatpush1.msra.mxu0 %v176
    %4670 = vmatprep.subr.mxu0 %v173
    %4671 = vmatpush1.msra.mxu0 %v172
    %4672 = vmatprep.subr.mxu0 %v169
    %4673 = vmatpush1.msra.mxu0 %v168
    %4674 = vmatprep.subr.mxu0 %v165
    %4675 = vmatpush1.msra.mxu0 %v164
    %4676 = vmatprep.subr.mxu0 %v161
    %4677 = vmatpush1.msra.mxu0 %v160
    %4678 = vmatprep.subr.mxu0 %v157
    %4679 = vmatpush1.msra.mxu0 %v156
    %4680 = vmatprep.subr.mxu0 %v281
    %4681 = vmatpush2.msra.mxu0 %v280
    %4682 = vmatprep.subr.mxu0 %v277
    %4683 = vmatpush2.msra.mxu0 %v276
    %4684 = vmatprep.subr.mxu0 %v273
    %4685 = vmatpush2.msra.mxu0 %v272
    %4686 = vmatprep.subr.mxu0 %v269
    %4687 = vmatpush2.msra.mxu0 %v268
    %4688 = vmatprep.subr.mxu0 %v265
    %4689 = vmatpush2.msra.mxu0 %v264
    %4690 = vmatprep.subr.mxu0 %v261
    %4691 = vmatpush2.msra.mxu0 %v260
    %4692 = vmatprep.subr.mxu0 %v257
    %4693 = vmatpush2.msra.mxu0 %v256
    %4694 = vmatprep.subr.mxu0 %v253
    %4695 = vmatpush2.msra.mxu0 %v252
    %4696 = vmatprep.subr.mxu0 %v249
    %4697 = vmatpush2.msra.mxu0 %v248
    %4698 = vmatprep.subr.mxu0 %v245
    %4699 = vmatpush2.msra.mxu0 %v244
    %4700 = vmatprep.subr.mxu0 %v241
    %4701 = vmatpush2.msra.mxu0 %v240
    %4702 = vmatprep.subr.mxu0 %v237
    %4703 = vmatpush2.msra.mxu0 %v236
    %4704 = vmatprep.subr.mxu0 %v233
    %4705 = vmatpush2.msra.mxu0 %v232
    %4706 = vmatprep.subr.mxu0 %v229
    %4707 = vmatpush2.msra.mxu0 %v228
    %4708 = vmatprep.subr.mxu0 %v225
    %4709 = vmatpush2.msra.mxu0 %v224
    %4710 = vmatprep.subr.mxu0 %v221
    %4711 = vmatpush2.msra.mxu0 %v220
    %4712 = vmatprep.mubr.f32.mxu0 %v4008
    %4713 = vmatmul.mubr.f32.gmra.mxu0 %v4570
    %v4714 = vpop.f32.mrf.mxu0
    %v4715 = vadd.f32 %v4575, %v4714
    %v4716 = vpop.f32.mrf.mxu0
    %v4717 = vadd.f32 %v4576, %v4716
    %4718 = vdwg.mxu0
    %v4719 = vadd.f32 %v4644, %v1013
    %v4720 = vadd.f32 %v4646, %v1017
    %v4721 = vadd.f32 %v4715, %v1021
    %v4722 = vadd.f32 %v4717, %v1025
    %v4723 = vxor.u32 %v4719, 2147483648
    %v4724 = vmul.f32 %v4723, 1.442695
    %v4725 = vpow.pop %v4724
    %v4726 = vadd.f32 %v4725, 1.0
    %v4727 = vrcp.pop %v4726
    %v4728 = vmul.f32 1.0, %v4727
    %v4729 = vxor.u32 %v4720, 2147483648
    %v4730 = vmul.f32 %v4729, 1.442695
    %v4731 = vpow.pop %v4730
    %v4732 = vadd.f32 %v4731, 1.0
    %v4733 = vrcp.pop %v4732
    %v4734 = vmul.f32 1.0, %v4733
    %v4735 = vtanh.pop %v4721
    %v4736 = vxor.u32 %v4722, 2147483648
    %v4737 = vmul.f32 %v4736, 1.442695
    %v4738 = vpow.pop %v4737
    %v4739 = vadd.f32 %v4738, 1.0
    %v4740 = vrcp.pop %v4739
    %v4741 = vmul.f32 1.0, %v4740
    %v4742 = vmul.f32 %v4734, %v4006
    %v4743 = vmul.f32 %v4728, %v4735
    %v4744 = vadd.f32 %v4742, %v4743
    %v4745 = vtanh.pop %v4744
    %v4746 = vmul.f32 %v4741, %v4745
    %s4747 = scalar_lea.vmem [#allocation2], 40
    %4748 = vst [vmem:[%s4747] sm:$0xff] %v4746
    %v4749 = vld [vmem:[#allocation2] sm:$0xff]
    %v4750 = vld [vmem:[#allocation2 + $0x8] sm:$0xff]
    %v4751 = vld [vmem:[#allocation2 + $0x10] sm:$0xff]
    %v4752 = vld [vmem:[#allocation2 + $0x18] sm:$0xff]
    %v4753 = vld [vmem:[#allocation2 + $0x20] sm:$0xff]
    %v4754 = vld [vmem:[#allocation2 + $0x28] sm:$0xff]
    %v4755 = vld [vmem:[#allocation12] sm:$0xff]
    %v4756 = vld [vmem:[#allocation12 + $0x8] sm:$0xff]
    %v4757 = vld [vmem:[#allocation12 + $0x10] sm:$0xff]
    %v4758 = vld [vmem:[#allocation12 + $0x18] sm:$0xff]
    %v4759 = vld [vmem:[#allocation12 + $0x20] sm:$0xff]
    %v4760 = vld [vmem:[#allocation12 + $0x28] sm:$0xff]
    %v4761 = vld [vmem:[#allocation12 + $0x30] sm:$0xff]
    %v4762 = vld [vmem:[#allocation12 + $0x38] sm:$0xff]
    %v4763 = vld [vmem:[#allocation12 + $0x40] sm:$0xff]
    %v4764 = vld [vmem:[#allocation12 + $0x48] sm:$0xff]
    %v4765 = vld [vmem:[#allocation12 + $0x50] sm:$0xff]
    %v4766 = vld [vmem:[#allocation12 + $0x58] sm:$0xff]
    %v4767 = vld [vmem:[#allocation12 + $0x60] sm:$0xff]
    %v4768 = vld [vmem:[#allocation12 + $0x68] sm:$0xff]
    %v4769 = vld [vmem:[#allocation12 + $0x70] sm:$0xff]
    %v4770 = vld [vmem:[#allocation12 + $0x78] sm:$0xff]
    %v4771 = vld [vmem:[#allocation12 + $0x80] sm:$0xff]
    %v4772 = vld [vmem:[#allocation12 + $0x88] sm:$0xff]
    %v4773 = vld [vmem:[#allocation12 + $0x90] sm:$0xff]
    %v4774 = vld [vmem:[#allocation12 + $0x98] sm:$0xff]
    %v4775 = vld [vmem:[#allocation12 + $0xa0] sm:$0xff]
    %v4776 = vld [vmem:[#allocation12 + $0xa8] sm:$0xff]
    %v4777 = vld [vmem:[#allocation12 + $0xb0] sm:$0xff]
    %v4778 = vld [vmem:[#allocation12 + $0xb8] sm:$0xff]
    %v4779 = vld [vmem:[#allocation12 + $0xc0] sm:$0xff]
    %v4780 = vld [vmem:[#allocation12 + $0xc8] sm:$0xff]
    %v4781 = vld [vmem:[#allocation12 + $0xd0] sm:$0xff]
    %v4782 = vld [vmem:[#allocation12 + $0xd8] sm:$0xff]
    %v4783 = vld [vmem:[#allocation12 + $0xe0] sm:$0xff]
    %v4784 = vld [vmem:[#allocation12 + $0xe8] sm:$0xff]
    %v4785 = vld [vmem:[#allocation12 + $0xf0] sm:$0xff]
    %v4786 = vld [vmem:[#allocation12 + $0xf8] sm:$0xff]
    %v4787 = vld [vmem:[%s10] sm:$0x3]
    %v4789 = vlaneseq
    %v4790 = vshrl.u32 %v4789, 7
    %v4791 = vsub.s32 0, %v4790
    %v4792 = vrot.slane %v4787, %v4791
    %v4793 = vlaneseq
    %v4794 = vshrl.u32 %v4793, 7
    %v4795 = vsub.s32 1, %v4794
    %v4796 = vrot.slane %v4787, %v4795
    %4799 = vmatprep.subr.mxu0 %v4786
    %4800 = vmatpush1.msra.mxu0 %v4785
    %4801 = vmatprep.subr.mxu0 %v4784
    %4802 = vmatpush1.msra.mxu0 %v4783
    %4803 = vmatprep.subr.mxu0 %v4782
    %4804 = vmatpush1.msra.mxu0 %v4781
    %4805 = vmatprep.subr.mxu0 %v4780
    %4806 = vmatpush1.msra.mxu0 %v4779
    %4807 = vmatprep.subr.mxu0 %v4778
    %4808 = vmatpush1.msra.mxu0 %v4777
    %4809 = vmatprep.subr.mxu0 %v4776
    %4810 = vmatpush1.msra.mxu0 %v4775
    %4811 = vmatprep.subr.mxu0 %v4774
    %4812 = vmatpush1.msra.mxu0 %v4773
    %4813 = vmatprep.subr.mxu0 %v4772
    %4814 = vmatpush1.msra.mxu0 %v4771
    %4815 = vmatprep.subr.mxu0 %v4770
    %4816 = vmatpush1.msra.mxu0 %v4769
    %4817 = vmatprep.subr.mxu0 %v4768
    %4818 = vmatpush1.msra.mxu0 %v4767
    %4819 = vmatprep.subr.mxu0 %v4766
    %4820 = vmatpush1.msra.mxu0 %v4765
    %4821 = vmatprep.subr.mxu0 %v4764
    %4822 = vmatpush1.msra.mxu0 %v4763
    %4823 = vmatprep.subr.mxu0 %v4762
    %4824 = vmatpush1.msra.mxu0 %v4761
    %4825 = vmatprep.subr.mxu0 %v4760
    %4826 = vmatpush1.msra.mxu0 %v4759
    %4827 = vmatprep.subr.mxu0 %v4758
    %4828 = vmatpush1.msra.mxu0 %v4757
    %4829 = vmatprep.subr.mxu0 %v4756
    %4830 = vmatpush1.msra.mxu0 %v4755
    %4831 = vmatprep.subr.mxu0 0.0
    %4832 = vmatpush2.msra.mxu0 0.0
    %4833 = vmatprep.subr.mxu0 0.0
    %4834 = vmatpush2.msra.mxu0 0.0
    %4835 = vmatprep.subr.mxu0 0.0
    %4836 = vmatpush2.msra.mxu0 0.0
    %4837 = vmatprep.subr.mxu0 0.0
    %4838 = vmatpush2.msra.mxu0 0.0
    %4839 = vmatprep.subr.mxu0 0.0
    %4840 = vmatpush2.msra.mxu0 0.0
    %4841 = vmatprep.subr.mxu0 0.0
    %4842 = vmatpush2.msra.mxu0 0.0
    %4843 = vmatprep.subr.mxu0 0.0
    %4844 = vmatpush2.msra.mxu0 0.0
    %4845 = vmatprep.subr.mxu0 0.0
    %4846 = vmatpush2.msra.mxu0 0.0
    %4847 = vmatprep.subr.mxu0 0.0
    %4848 = vmatpush2.msra.mxu0 0.0
    %4849 = vmatprep.subr.mxu0 0.0
    %4850 = vmatpush2.msra.mxu0 0.0
    %4851 = vmatprep.subr.mxu0 0.0
    %4852 = vmatpush2.msra.mxu0 0.0
    %4853 = vmatprep.subr.mxu0 0.0
    %4854 = vmatpush2.msra.mxu0 0.0
    %4855 = vmatprep.subr.mxu0 0.0
    %4856 = vmatpush2.msra.mxu0 0.0
    %4857 = vmatprep.subr.mxu0 0.0
    %4858 = vmatpush2.msra.mxu0 0.0
    %4859 = vmatprep.subr.mxu0 0.0
    %4860 = vmatpush2.msra.mxu0 0.0
    %4861 = vmatprep.subr.mxu0 0.0
    %4862 = vmatpush2.msra.mxu0 0.0
    %4863 = vmatprep.mubr.f32.mxu0 0.0
    %4864 = vmatmul.mubr.f32.gmra.mxu0 %v4749
    %v4865 = vpop.f32.mrf.mxu0
    %v4866 = vadd.f32 %v4792, %v4865
    %v4867 = vpop.f32.mrf.mxu0
    %v4868 = vadd.f32 %v4796, %v4867
    %4869 = vmatprep.mubr.f32.mxu0 0.0
    %4870 = vmatmul.mubr.f32.gmra.mxu0 %v4750
    %v4871 = vpop.f32.mrf.mxu0
    %v4872 = vadd.f32 %v4792, %v4871
    %v4873 = vpop.f32.mrf.mxu0
    %v4874 = vadd.f32 %v4796, %v4873
    %4875 = vmatprep.mubr.f32.mxu0 0.0
    %4876 = vmatmul.mubr.f32.gmra.mxu0 %v4751
    %v4877 = vpop.f32.mrf.mxu0
    %v4878 = vadd.f32 %v4792, %v4877
    %v4879 = vpop.f32.mrf.mxu0
    %v4880 = vadd.f32 %v4796, %v4879
    %4881 = vmatprep.mubr.f32.mxu0 0.0
    %4882 = vmatmul.mubr.f32.gmra.mxu0 %v4752
    %v4883 = vpop.f32.mrf.mxu0
    %v4884 = vadd.f32 %v4792, %v4883
    %v4885 = vpop.f32.mrf.mxu0
    %v4886 = vadd.f32 %v4796, %v4885
    %4887 = vmatprep.mubr.f32.mxu0 0.0
    %4888 = vmatmul.mubr.f32.gmra.mxu0 %v4753
    %v4889 = vpop.f32.mrf.mxu0
    %v4890 = vadd.f32 %v4792, %v4889
    %v4891 = vpop.f32.mrf.mxu0
    %v4892 = vadd.f32 %v4796, %v4891
    %4893 = vmatprep.mubr.f32.mxu0 0.0
    %4894 = vmatmul.mubr.f32.gmra.mxu0 %v4754
    %v4895 = vpop.f32.mrf.mxu0
    %v4896 = vadd.f32 %v4792, %v4895
    %v4897 = vpop.f32.mrf.mxu0
    %v4898 = vadd.f32 %v4796, %v4897
    %4899 = vdwg.mxu0
    %4900 = vst [vmem:[#allocation14] sm:$0xff] %v4866
    %4901 = vst [vmem:[#allocation14 + $0x8] sm:$0xff] %v4868
    %4902 = vst [vmem:[#allocation14 + $0x10] sm:$0xff] %v4872
    %4903 = vst [vmem:[#allocation14 + $0x18] sm:$0xff] %v4874
    %4904 = vst [vmem:[#allocation14 + $0x20] sm:$0xff] %v4878
    %4905 = vst [vmem:[#allocation14 + $0x28] sm:$0xff] %v4880
    %4906 = vst [vmem:[#allocation14 + $0x30] sm:$0xff] %v4884
    %4907 = vst [vmem:[#allocation14 + $0x38] sm:$0xff] %v4886
    %4908 = vst [vmem:[#allocation14 + $0x40] sm:$0xff] %v4890
    %4909 = vst [vmem:[#allocation14 + $0x48] sm:$0xff] %v4892
    %4910 = vst [vmem:[#allocation14 + $0x50] sm:$0xff] %v4896
    %4911 = vst [vmem:[#allocation14 + $0x58] sm:$0xff] %v4898
    %4912 = vst [vmem:[#allocation15] sm:$0xff] %v4746
    %4913 = vst [vmem:[#allocation17] sm:$0xff] %v4744
    // Predicated region
    $region70: #{tpu_custom_call.1} parent=1 // pred_check
      _
    $region71: #{tpu_custom_call.1} parent=1 // pred_check_branch
      %4915 = sbr.rel (0) target = $region73
    $region72: #{tpu_custom_call.1} parent=1 // pred_region
      %s4917 = ssub.s32 1536, 1536
      %4918 = vsyncadd [#allocation5], %s4917
      %s4919 = sshll.u32 [#allocation14], 4
      %s4920 = int_to_ptr.vmem [resolvable:$true] %s4919
      %4925 = dma.vmem_to_hbm [thread:$0]  %s4920, 1536, %s11, [#allocation5], 256, 256, 16
    $region73: #{tpu_custom_call.1} parent=1 // pred_fallthru
      _
    // Predicated region
    $region74: #{tpu_custom_call.1} parent=1 // pred_check
      _
    $region75: #{tpu_custom_call.1} parent=1 // pred_check_branch
      %4927 = sbr.rel (0) target = $region77
    $region76: #{tpu_custom_call.1} parent=1 // pred_region
      %s4929 = ssub.s32 128, 128
      %4930 = vsyncadd [#allocation16], %s4929
      %s4932 = sshll.u32 [#allocation15], 4
      %s4933 = int_to_ptr.vmem [resolvable:$true] %s4932
      %4935 = dma.vmem_to_hbm [thread:$0]  %s4933, 128, %s12, [#allocation16]
    $region77: #{tpu_custom_call.1} parent=1 // pred_fallthru
      _
    // Predicated region
    $region78: #{tpu_custom_call.1} parent=1 // pred_check
      _
    $region79: #{tpu_custom_call.1} parent=1 // pred_check_branch
      %4937 = sbr.rel (0) target = $region81
    $region80: #{tpu_custom_call.1} parent=1 // pred_region
      %s4939 = ssub.s32 128, 128
      %4940 = vsyncadd [#allocation16], %s4939
      %s4942 = sshll.u32 [#allocation17], 4
      %s4943 = int_to_ptr.vmem [resolvable:$true] %s4942
      %4945 = dma.vmem_to_hbm [thread:$0]  %s4943, 128, %s13, [#allocation16]
    $region81: #{tpu_custom_call.1} parent=1 // pred_fallthru
      _
    // Predicated region
    $region82: #{tpu_custom_call.1} parent=1 // pred_check
      _
    $region83: #{tpu_custom_call.1} parent=1 // pred_check_branch
      %4947 = sbr.rel (0) target = $region85
    $region84: #{tpu_custom_call.1} parent=1 // pred_region
      %4948 = dma.done [#allocation5], 1536
    $region85: #{tpu_custom_call.1} parent=1 // pred_fallthru
      _
    // Predicated region
    $region86: #{tpu_custom_call.1} parent=1 // pred_check
      _
    $region87: #{tpu_custom_call.1} parent=1 // pred_check_branch
      %4950 = sbr.rel (0) target = $region89
    $region88: #{tpu_custom_call.1} parent=1 // pred_region
      %4951 = dma.done [#allocation16], 128
    $region89: #{tpu_custom_call.1} parent=1 // pred_fallthru
      _
    // Predicated region
    $region90: #{tpu_custom_call.1} parent=1 // pred_check
      _
    $region91: #{tpu_custom_call.1} parent=1 // pred_check_branch
      %4953 = sbr.rel (0) target = $region93
    $region92: #{tpu_custom_call.1} parent=1 // pred_region
      %4954 = dma.done [#allocation16], 128
    $region93: #{tpu_custom_call.1} parent=1 // pred_fallthru
      _
    %4955 = vsyncpa [#allocation4], 1
    %4956 = vsyncpa [#allocation7], 1
    %4957 = vsyncpa [#allocation10], 1
    %4958 = vsyncpa [#allocation13], 1
    %4959 = vsyncpa [#allocation5], 1
    %4960 = vsyncpa [#allocation16], 1

</llo_original>
